<compile_context>
chip_gen: v6e
topology: v6e:2x2x1
jax: 0.10.0
libtpu: 0.0.40
codegen_flags: <defaults>
</compile_context>

<pallas_src>
import functools

import jax
import jax.numpy as jnp
from jax import lax
from jax.experimental import pallas as pl
from jax.experimental.pallas import tpu as pltpu


def _focal_loss_kernel(x_ref, tgt_ref, at_ref, loss_ref, *, gamma):
    # x_ref:    (TN, C) logits (any float dtype; cast to f32 in-kernel)
    # tgt_ref:  (TN, 1) i32 class indices
    # at_ref:   (TN, 1) f32 per-sample alpha weight (already gathered)
    # loss_ref: (TN, 1) f32 per-sample focal loss
    x = x_ref[...].astype(jnp.float32)                 # (TN, C)
    tgt = tgt_ref[...]                                 # (TN, 1)
    at = at_ref[...]                                   # (TN, 1)

    tn, c = x.shape

    # Numerically-stable log-softmax along the class (lane) axis.
    m = jnp.max(x, axis=-1, keepdims=True)             # (TN, 1)  XLU reduce
    shifted = x - m                                    # (TN, C)
    ex = jnp.exp(shifted)                              # (TN, C)  EUP
    sumexp = jnp.sum(ex, axis=-1, keepdims=True)       # (TN, 1)  XLU reduce
    logsumexp = jnp.log(sumexp)                        # (TN, 1)  EUP (narrow)

    # Gather shifted logit at the target index via a one-hot masked reduce
    # (no dynamic per-row gather on the VPU).
    col = lax.broadcasted_iota(jnp.int32, (tn, c), 1)  # (TN, C)
    mask = col == tgt                                  # (TN, C)
    x_t = jnp.sum(jnp.where(mask, shifted, jnp.zeros_like(shifted)),
                  axis=-1, keepdims=True)              # (TN, 1)

    logpt = x_t - logsumexp                            # (TN, 1), always <= 0
    pt = jnp.exp(logpt)                                # (TN, 1), always <= 1
    logpt = logpt * at                                 # alpha weighting

    # loss = -(1 - pt)^gamma * logpt
    if gamma == 0:
        modulator = jnp.ones_like(pt)
    elif float(gamma) == int(gamma) and 1 <= int(gamma) <= 4:
        base = 1.0 - pt
        modulator = base
        for _ in range(int(gamma) - 1):
            modulator = modulator * base               # cheap VALU chain
    else:
        modulator = (1.0 - pt) ** gamma                # generic pow (EUP)
    loss_ref[...] = -1.0 * modulator * logpt


def focal_loss(logits, target, *, gamma=0.0, alpha=None, reduction="none"):
    """Pallas implementation of FocalLoss.forward.

    logits: (N, C) float (f32 or bf16), target: (N,) int,
    alpha: optional length-C list/array of per-class weights.
    """
    n, c = logits.shape
    x = logits  # keep caller dtype; cast to f32 inside the kernel
    tgt = target.astype(jnp.int32)

    # alpha gather hoisted out of the kernel: at[i] = alpha[target[i]]
    if alpha is None:
        at = jnp.ones((n,), dtype=jnp.float32)
    else:
        alpha_arr = jnp.asarray(alpha, dtype=jnp.float32).reshape(c)
        at = jnp.take(alpha_arr, tgt)

    # Tile size over the batch axis: multiple of 8, logits tile <= ~4 MiB so a
    # double-buffered pipeline fits well under the explicit VMEM limit on every
    # generation (v5e/v6e/v7x).
    itemsize = jnp.dtype(x.dtype).itemsize
    max_rows = max(8, (4 * 1024 * 1024) // max(1, c * itemsize))
    tn = min(1024, max_rows)
    tn = max(8, (tn // 8) * 8)

    n_pad = ((n + tn - 1) // tn) * tn
    pad = n_pad - n
    if pad:
        x = jnp.pad(x, ((0, pad), (0, 0)))
        tgt = jnp.pad(tgt, (0, pad))     # pads with class 0 -> valid, sliced off
        at = jnp.pad(at, (0, pad))

    tgt2 = tgt.reshape(n_pad, 1)
    at2 = at.reshape(n_pad, 1).astype(jnp.float32)

    kernel = functools.partial(_focal_loss_kernel, gamma=gamma)

    loss = pl.pallas_call(
        kernel,
        out_shape=jax.ShapeDtypeStruct((n_pad, 1), jnp.float32),
        grid=(n_pad // tn,),
        in_specs=[
            pl.BlockSpec((tn, c), lambda i: (i, 0)),
            pl.BlockSpec((tn, 1), lambda i: (i, 0)),
            pl.BlockSpec((tn, 1), lambda i: (i, 0)),
        ],
        out_specs=pl.BlockSpec((tn, 1), lambda i: (i, 0)),
        compiler_params=pltpu.CompilerParams(
            dimension_semantics=("parallel",),
            vmem_limit_bytes=32 * 1024 * 1024,
        ),
    )(x, tgt2, at2)

    loss = loss[:n, 0]  # per-sample loss, shape (N,)

    if reduction == "none":
        return loss
    if reduction == "mean":
        return loss.mean()
    return loss.sum()


def _focal_loss_ref(logits, target, *, gamma=0.0, alpha=None, reduction="none"):
    """Pure-JAX reference mirroring the PyTorch forward exactly."""
    logits = logits.astype(jnp.float32)
    p = jax.nn.softmax(logits, axis=-1)
    logp = jax.nn.log_softmax(logits, axis=-1)
    pt = jnp.take_along_axis(p, target[:, None], axis=1)[:, 0]
    logpt = jnp.take_along_axis(logp, target[:, None], axis=1)[:, 0]
    if alpha is not None:
        at = jnp.asarray(alpha, dtype=logpt.dtype)[target]
        logpt = logpt * at
    loss = -1.0 * (1.0 - pt) ** gamma * logpt
    if reduction == "none":
        return loss
    if reduction == "mean":
        return loss.mean()
    return loss.sum()


if __name__ == "__main__":
    key = jax.random.PRNGKey(0)
    k1, k2, k3, k4 = jax.random.split(key, 4)

    # Test 1: canonical shapes from the module docstring-style example.
    N, C = 8, 7
    gamma = 2.0
    alpha = [0.5, 1.0, 1.5, 2.0, 0.75, 1.25, 1.0]

    logits = jax.random.normal(k1, (N, C), dtype=jnp.float32)
    target = jax.random.randint(k2, (N,), 0, C, dtype=jnp.int32)

    out = focal_loss(logits, target, gamma=gamma, alpha=alpha, reduction="none")
    out = jax.block_until_ready(out)
    ref = _focal_loss_ref(logits, target, gamma=gamma, alpha=alpha, reduction="none")
    assert out.shape == (N,)
    assert jnp.allclose(out, ref, atol=1e-5, rtol=1e-5), (out, ref)

    out_mean = focal_loss(logits, target, gamma=gamma, alpha=alpha, reduction="mean")
    out_mean = jax.block_until_ready(out_mean)
    ref_mean = _focal_loss_ref(logits, target, gamma=gamma, alpha=alpha, reduction="mean")
    assert jnp.allclose(out_mean, ref_mean, atol=1e-5, rtol=1e-5), (out_mean, ref_mean)

    # Test 2: N not a multiple of the tile (exercises padding path), no alpha,
    # non-integer gamma path.
    N2, C2 = 11, 13
    logits2 = jax.random.normal(k3, (N2, C2), dtype=jnp.float32)
    target2 = jax.random.randint(k4, (N2,), 0, C2, dtype=jnp.int32)

    out2 = focal_loss(logits2, target2, gamma=1.5, alpha=None, reduction="sum")
    out2 = jax.block_until_ready(out2)
    ref2 = _focal_loss_ref(logits2, target2, gamma=1.5, alpha=None, reduction="sum")
    assert jnp.allclose(out2, ref2, atol=1e-5, rtol=1e-5), (out2, ref2)

    print("KERNEL_OK")
</pallas_src>

<mosaic_0001>
module attributes {stable_mosaic.version = 11 : i64} {
  func.func @_focal_loss_kernel(%arg0: i32, %arg1: memref<1024x7xf32, #tpu.memory_space<vmem>>, %arg2: memref<1024x1xi32, #tpu.memory_space<vmem>>, %arg3: memref<1024x1xf32, #tpu.memory_space<vmem>>, %arg4: memref<1024x1xf32, #tpu.memory_space<vmem>>) attributes {dimension_semantics = [#tpu.dimension_semantics<parallel>], iteration_bounds = array<i64: 1>, scalar_prefetch = 0 : i64, scratch_operands = 0 : i64, tpu.core_type = #tpu.core_type<tc>, window_params = [{transform_indices = @transform_0, window_bounds = array<i64: 1024, 7>}, {transform_indices = @transform_1, window_bounds = array<i64: 1024, 1>}, {transform_indices = @transform_2, window_bounds = array<i64: 1024, 1>}, {transform_indices = @transform_3, window_bounds = array<i64: 1024, 1>}]} {
    %c0 = arith.constant 0 : index
    %c0_0 = arith.constant 0 : index
    %0 = vector.load %arg1[%c0, %c0_0] : memref<1024x7xf32, #tpu.memory_space<vmem>>, vector<1024x7xf32>
    %c0_1 = arith.constant 0 : index
    %c0_2 = arith.constant 0 : index
    %1 = vector.load %arg2[%c0_1, %c0_2] : memref<1024x1xi32, #tpu.memory_space<vmem>>, vector<1024x1xi32>
    %c0_3 = arith.constant 0 : index
    %c0_4 = arith.constant 0 : index
    %2 = vector.load %arg3[%c0_3, %c0_4] : memref<1024x1xf32, #tpu.memory_space<vmem>>, vector<1024x1xf32>
    %cst = arith.constant dense<0xFF800000> : vector<1024xf32>
    %3 = vector.multi_reduction <maximumf>, %0, %cst [1] : vector<1024x7xf32> to vector<1024xf32>
    %4 = vector.shape_cast %3 : vector<1024xf32> to vector<1024x1xf32>
    %5 = vector.broadcast %4 : vector<1024x1xf32> to vector<1024x7xf32>
    %6 = arith.subf %0, %5 : vector<1024x7xf32>
    %7 = math.exp %6 : vector<1024x7xf32>
    %cst_5 = arith.constant dense<0.000000e+00> : vector<1024xf32>
    %8 = vector.multi_reduction <add>, %7, %cst_5 [1] : vector<1024x7xf32> to vector<1024xf32>
    %9 = vector.shape_cast %8 : vector<1024xf32> to vector<1024x1xf32>
    %10 = math.log %9 : vector<1024x1xf32>
    %11 = tpu.iota {dimensions = array<i32: 1>} : vector<1024x7xi32>
    %12 = vector.broadcast %1 : vector<1024x1xi32> to vector<1024x7xi32>
    %13 = arith.cmpi eq, %11, %12 : vector<1024x7xi32>
    %cst_6 = arith.constant 0.000000e+00 : f32
    %14 = vector.broadcast %cst_6 : f32 to vector<1024x7xf32>
    %15 = arith.select %13, %6, %14 : vector<1024x7xi1>, vector<1024x7xf32>
    %cst_7 = arith.constant dense<0.000000e+00> : vector<1024xf32>
    %16 = vector.multi_reduction <add>, %15, %cst_7 [1] : vector<1024x7xf32> to vector<1024xf32>
    %17 = vector.shape_cast %16 : vector<1024xf32> to vector<1024x1xf32>
    %18 = arith.subf %17, %10 : vector<1024x1xf32>
    %19 = math.exp %18 : vector<1024x1xf32>
    %20 = arith.mulf %18, %2 : vector<1024x1xf32>
    %cst_8 = arith.constant 1.000000e+00 : f32
    %21 = vector.broadcast %cst_8 : f32 to vector<1024x1xf32>
    %22 = arith.subf %21, %19 : vector<1024x1xf32>
    %23 = arith.mulf %22, %22 : vector<1024x1xf32>
    %cst_9 = arith.constant -1.000000e+00 : f32
    %24 = vector.broadcast %cst_9 : f32 to vector<1024x1xf32>
    %25 = arith.mulf %24, %23 : vector<1024x1xf32>
    %26 = arith.mulf %25, %20 : vector<1024x1xf32>
    %c0_10 = arith.constant 0 : index
    %c0_11 = arith.constant 0 : index
    %27 = vector.load %arg4[%c0_10, %c0_11] : memref<1024x1xf32, #tpu.memory_space<vmem>>, vector<1024x1xf32>
    tpu.vector_store %arg4[%c0_10, %c0_11], %26 {strides = array<i32>} : memref<1024x1xf32, #tpu.memory_space<vmem>>, vector<1024x1xf32>,
    return
  }
  func.func @transform_0(%arg0: i32) -> (i32, i32) {
    %c0_i32 = arith.constant 0 : i32
    %c0_i32_0 = arith.constant 0 : i32
    return %arg0, %c0_i32 : i32, i32
  }
  func.func @transform_1(%arg0: i32) -> (i32, i32) {
    %c0_i32 = arith.constant 0 : i32
    %c0_i32_0 = arith.constant 0 : i32
    return %arg0, %c0_i32 : i32, i32
  }
  func.func @transform_2(%arg0: i32) -> (i32, i32) {
    %c0_i32 = arith.constant 0 : i32
    %c0_i32_0 = arith.constant 0 : i32
    return %arg0, %c0_i32 : i32, i32
  }
  func.func @transform_3(%arg0: i32) -> (i32, i32) {
    %c0_i32 = arith.constant 0 : i32
    %c0_i32_0 = arith.constant 0 : i32
    return %arg0, %c0_i32 : i32, i32
  }
}

</mosaic_0001>

<llo_original>
// kernel: tpu_custom_call.1
$region0: #{tpu_custom_call.1}
  #allocation0 [shape = 'u32[]', space=smem, size = 0x4, offset = 0x4, fixed_abs, tag = 'smem constant byte address 0x4 - core index']
  #allocation1 [shape = 'u32[144,128]{1,0:T(1,128)}', space=vmem, size = 0x12000, scoped, tag = 'internal scratch']
  %s0 = inlined_call_operand.vmem [shape: f32[1024,7], index: 0, kind: input, shape index: {}]
  %s1 = inlined_call_operand.vmem [shape: s32[1024,1], index: 1, kind: input, shape index: {}]
  %s2 = inlined_call_operand.vmem [shape: f32[1024,1], index: 2, kind: input, shape index: {}]
  %s3 = inlined_call_operand.vmem [shape: f32[1024,1], index: 3, kind: output, shape index: {}]
  %s4 = sld [smem:[#allocation0]]
  $region22: #{tpu_custom_call.1} parent=0
    _
  %s6 = ssub.s32 1, %s4
  %s7 = scalar_select 0, %s6, %s4
  // Predicated region
  $region2: #{tpu_custom_call.1} parent=0 // pred_check
    _
  $region3: #{tpu_custom_call.1} parent=0 // pred_check_branch
    %9 = sbr.rel (0) target = $region5
  $region4: #{tpu_custom_call.1} parent=0 // pred_region
    _
  $region5: #{tpu_custom_call.1} parent=0 // pred_fallthru
    _
  // Predicated region
  $region6: #{tpu_custom_call.1} parent=0 // pred_check
    _
  $region7: #{tpu_custom_call.1} parent=0 // pred_check_branch
    %11 = sbr.rel (0) target = $region9
  $region8: #{tpu_custom_call.1} parent=0 // pred_region
    _
  $region9: #{tpu_custom_call.1} parent=0 // pred_fallthru
    _
  // Predicated region
  $region10: #{tpu_custom_call.1} parent=0 // pred_check
    _
  $region11: #{tpu_custom_call.1} parent=0 // pred_check_branch
    %13 = sbr.rel (0) target = $region13
  $region12: #{tpu_custom_call.1} parent=0 // pred_region
    _
  $region13: #{tpu_custom_call.1} parent=0 // pred_fallthru
    _
  %v14 = vld [vmem:[%s0] sm:$0xff]
  %v15 = vld [vmem:[%s0 + $0x8] sm:$0xff]
  %v16 = vld [vmem:[%s0 + $0x10] sm:$0xff]
  %v17 = vld [vmem:[%s0 + $0x18] sm:$0xff]
  %v18 = vld [vmem:[%s0 + $0x20] sm:$0xff]
  %v19 = vld [vmem:[%s0 + $0x28] sm:$0xff]
  %v20 = vld [vmem:[%s0 + $0x30] sm:$0xff]
  %v21 = vld [vmem:[%s0 + $0x38] sm:$0xff]
  %v22 = vld [vmem:[%s0 + $0x40] sm:$0xff]
  %v23 = vld [vmem:[%s0 + $0x48] sm:$0xff]
  %v24 = vld [vmem:[%s0 + $0x50] sm:$0xff]
  %v25 = vld [vmem:[%s0 + $0x58] sm:$0xff]
  %v26 = vld [vmem:[%s0 + $0x60] sm:$0xff]
  %v27 = vld [vmem:[%s0 + $0x68] sm:$0xff]
  %v28 = vld [vmem:[%s0 + $0x70] sm:$0xff]
  %v29 = vld [vmem:[%s0 + $0x78] sm:$0xff]
  %v30 = vld [vmem:[%s0 + $0x80] sm:$0xff]
  %v31 = vld [vmem:[%s0 + $0x88] sm:$0xff]
  %v32 = vld [vmem:[%s0 + $0x90] sm:$0xff]
  %v33 = vld [vmem:[%s0 + $0x98] sm:$0xff]
  %v34 = vld [vmem:[%s0 + $0xa0] sm:$0xff]
  %v35 = vld [vmem:[%s0 + $0xa8] sm:$0xff]
  %v36 = vld [vmem:[%s0 + $0xb0] sm:$0xff]
  %v37 = vld [vmem:[%s0 + $0xb8] sm:$0xff]
  %v38 = vld [vmem:[%s0 + $0xc0] sm:$0xff]
  %v39 = vld [vmem:[%s0 + $0xc8] sm:$0xff]
  %v40 = vld [vmem:[%s0 + $0xd0] sm:$0xff]
  %v41 = vld [vmem:[%s0 + $0xd8] sm:$0xff]
  %v42 = vld [vmem:[%s0 + $0xe0] sm:$0xff]
  %v43 = vld [vmem:[%s0 + $0xe8] sm:$0xff]
  %v44 = vld [vmem:[%s0 + $0xf0] sm:$0xff]
  %v45 = vld [vmem:[%s0 + $0xf8] sm:$0xff]
  %v46 = vld [vmem:[%s0 + $0x100] sm:$0xff]
  %v47 = vld [vmem:[%s0 + $0x108] sm:$0xff]
  %v48 = vld [vmem:[%s0 + $0x110] sm:$0xff]
  %v49 = vld [vmem:[%s0 + $0x118] sm:$0xff]
  %v50 = vld [vmem:[%s0 + $0x120] sm:$0xff]
  %v51 = vld [vmem:[%s0 + $0x128] sm:$0xff]
  %v52 = vld [vmem:[%s0 + $0x130] sm:$0xff]
  %v53 = vld [vmem:[%s0 + $0x138] sm:$0xff]
  %v54 = vld [vmem:[%s0 + $0x140] sm:$0xff]
  %v55 = vld [vmem:[%s0 + $0x148] sm:$0xff]
  %v56 = vld [vmem:[%s0 + $0x150] sm:$0xff]
  %v57 = vld [vmem:[%s0 + $0x158] sm:$0xff]
  %v58 = vld [vmem:[%s0 + $0x160] sm:$0xff]
  %v59 = vld [vmem:[%s0 + $0x168] sm:$0xff]
  %v60 = vld [vmem:[%s0 + $0x170] sm:$0xff]
  %v61 = vld [vmem:[%s0 + $0x178] sm:$0xff]
  %v62 = vld [vmem:[%s0 + $0x180] sm:$0xff]
  %v63 = vld [vmem:[%s0 + $0x188] sm:$0xff]
  %v64 = vld [vmem:[%s0 + $0x190] sm:$0xff]
  %v65 = vld [vmem:[%s0 + $0x198] sm:$0xff]
  %v66 = vld [vmem:[%s0 + $0x1a0] sm:$0xff]
  %v67 = vld [vmem:[%s0 + $0x1a8] sm:$0xff]
  %v68 = vld [vmem:[%s0 + $0x1b0] sm:$0xff]
  %v69 = vld [vmem:[%s0 + $0x1b8] sm:$0xff]
  %v70 = vld [vmem:[%s0 + $0x1c0] sm:$0xff]
  %v71 = vld [vmem:[%s0 + $0x1c8] sm:$0xff]
  %v72 = vld [vmem:[%s0 + $0x1d0] sm:$0xff]
  %v73 = vld [vmem:[%s0 + $0x1d8] sm:$0xff]
  %v74 = vld [vmem:[%s0 + $0x1e0] sm:$0xff]
  %v75 = vld [vmem:[%s0 + $0x1e8] sm:$0xff]
  %v76 = vld [vmem:[%s0 + $0x1f0] sm:$0xff]
  %v77 = vld [vmem:[%s0 + $0x1f8] sm:$0xff]
  %v78 = vld [vmem:[%s0 + $0x200] sm:$0xff]
  %v79 = vld [vmem:[%s0 + $0x208] sm:$0xff]
  %v80 = vld [vmem:[%s0 + $0x210] sm:$0xff]
  %v81 = vld [vmem:[%s0 + $0x218] sm:$0xff]
  %v82 = vld [vmem:[%s0 + $0x220] sm:$0xff]
  %v83 = vld [vmem:[%s0 + $0x228] sm:$0xff]
  %v84 = vld [vmem:[%s0 + $0x230] sm:$0xff]
  %v85 = vld [vmem:[%s0 + $0x238] sm:$0xff]
  %v86 = vld [vmem:[%s0 + $0x240] sm:$0xff]
  %v87 = vld [vmem:[%s0 + $0x248] sm:$0xff]
  %v88 = vld [vmem:[%s0 + $0x250] sm:$0xff]
  %v89 = vld [vmem:[%s0 + $0x258] sm:$0xff]
  %v90 = vld [vmem:[%s0 + $0x260] sm:$0xff]
  %v91 = vld [vmem:[%s0 + $0x268] sm:$0xff]
  %v92 = vld [vmem:[%s0 + $0x270] sm:$0xff]
  %v93 = vld [vmem:[%s0 + $0x278] sm:$0xff]
  %v94 = vld [vmem:[%s0 + $0x280] sm:$0xff]
  %v95 = vld [vmem:[%s0 + $0x288] sm:$0xff]
  %v96 = vld [vmem:[%s0 + $0x290] sm:$0xff]
  %v97 = vld [vmem:[%s0 + $0x298] sm:$0xff]
  %v98 = vld [vmem:[%s0 + $0x2a0] sm:$0xff]
  %v99 = vld [vmem:[%s0 + $0x2a8] sm:$0xff]
  %v100 = vld [vmem:[%s0 + $0x2b0] sm:$0xff]
  %v101 = vld [vmem:[%s0 + $0x2b8] sm:$0xff]
  %v102 = vld [vmem:[%s0 + $0x2c0] sm:$0xff]
  %v103 = vld [vmem:[%s0 + $0x2c8] sm:$0xff]
  %v104 = vld [vmem:[%s0 + $0x2d0] sm:$0xff]
  %v105 = vld [vmem:[%s0 + $0x2d8] sm:$0xff]
  %v106 = vld [vmem:[%s0 + $0x2e0] sm:$0xff]
  %v107 = vld [vmem:[%s0 + $0x2e8] sm:$0xff]
  %v108 = vld [vmem:[%s0 + $0x2f0] sm:$0xff]
  %v109 = vld [vmem:[%s0 + $0x2f8] sm:$0xff]
  %v110 = vld [vmem:[%s0 + $0x300] sm:$0xff]
  %v111 = vld [vmem:[%s0 + $0x308] sm:$0xff]
  %v112 = vld [vmem:[%s0 + $0x310] sm:$0xff]
  %v113 = vld [vmem:[%s0 + $0x318] sm:$0xff]
  %v114 = vld [vmem:[%s0 + $0x320] sm:$0xff]
  %v115 = vld [vmem:[%s0 + $0x328] sm:$0xff]
  %v116 = vld [vmem:[%s0 + $0x330] sm:$0xff]
  %v117 = vld [vmem:[%s0 + $0x338] sm:$0xff]
  %v118 = vld [vmem:[%s0 + $0x340] sm:$0xff]
  %v119 = vld [vmem:[%s0 + $0x348] sm:$0xff]
  %v120 = vld [vmem:[%s0 + $0x350] sm:$0xff]
  %v121 = vld [vmem:[%s0 + $0x358] sm:$0xff]
  %v122 = vld [vmem:[%s0 + $0x360] sm:$0xff]
  %v123 = vld [vmem:[%s0 + $0x368] sm:$0xff]
  %v124 = vld [vmem:[%s0 + $0x370] sm:$0xff]
  %v125 = vld [vmem:[%s0 + $0x378] sm:$0xff]
  %v126 = vld [vmem:[%s0 + $0x380] sm:$0xff]
  %v127 = vld [vmem:[%s0 + $0x388] sm:$0xff]
  %v128 = vld [vmem:[%s0 + $0x390] sm:$0xff]
  %v129 = vld [vmem:[%s0 + $0x398] sm:$0xff]
  %v130 = vld [vmem:[%s0 + $0x3a0] sm:$0xff]
  %v131 = vld [vmem:[%s0 + $0x3a8] sm:$0xff]
  %v132 = vld [vmem:[%s0 + $0x3b0] sm:$0xff]
  %v133 = vld [vmem:[%s0 + $0x3b8] sm:$0xff]
  %v134 = vld [vmem:[%s0 + $0x3c0] sm:$0xff]
  %v135 = vld [vmem:[%s0 + $0x3c8] sm:$0xff]
  %v136 = vld [vmem:[%s0 + $0x3d0] sm:$0xff]
  %v137 = vld [vmem:[%s0 + $0x3d8] sm:$0xff]
  %v138 = vld [vmem:[%s0 + $0x3e0] sm:$0xff]
  %v139 = vld [vmem:[%s0 + $0x3e8] sm:$0xff]
  %v140 = vld [vmem:[%s0 + $0x3f0] sm:$0xff]
  %v141 = vld [vmem:[%s0 + $0x3f8] sm:$0xff]
  %v142 = vld [vmem:[%s1] sm:$0xff]
  %v143 = vld [vmem:[%s1 + $0x8] sm:$0xff]
  %v144 = vld [vmem:[%s1 + $0x10] sm:$0xff]
  %v145 = vld [vmem:[%s1 + $0x18] sm:$0xff]
  %v146 = vld [vmem:[%s1 + $0x20] sm:$0xff]
  %v147 = vld [vmem:[%s1 + $0x28] sm:$0xff]
  %v148 = vld [vmem:[%s1 + $0x30] sm:$0xff]
  %v149 = vld [vmem:[%s1 + $0x38] sm:$0xff]
  %v150 = vld [vmem:[%s1 + $0x40] sm:$0xff]
  %v151 = vld [vmem:[%s1 + $0x48] sm:$0xff]
  %v152 = vld [vmem:[%s1 + $0x50] sm:$0xff]
  %v153 = vld [vmem:[%s1 + $0x58] sm:$0xff]
  %v154 = vld [vmem:[%s1 + $0x60] sm:$0xff]
  %v155 = vld [vmem:[%s1 + $0x68] sm:$0xff]
  %v156 = vld [vmem:[%s1 + $0x70] sm:$0xff]
  %v157 = vld [vmem:[%s1 + $0x78] sm:$0xff]
  %v158 = vld [vmem:[%s1 + $0x80] sm:$0xff]
  %v159 = vld [vmem:[%s1 + $0x88] sm:$0xff]
  %v160 = vld [vmem:[%s1 + $0x90] sm:$0xff]
  %v161 = vld [vmem:[%s1 + $0x98] sm:$0xff]
  %v162 = vld [vmem:[%s1 + $0xa0] sm:$0xff]
  %v163 = vld [vmem:[%s1 + $0xa8] sm:$0xff]
  %v164 = vld [vmem:[%s1 + $0xb0] sm:$0xff]
  %v165 = vld [vmem:[%s1 + $0xb8] sm:$0xff]
  %v166 = vld [vmem:[%s1 + $0xc0] sm:$0xff]
  %v167 = vld [vmem:[%s1 + $0xc8] sm:$0xff]
  %v168 = vld [vmem:[%s1 + $0xd0] sm:$0xff]
  %v169 = vld [vmem:[%s1 + $0xd8] sm:$0xff]
  %v170 = vld [vmem:[%s1 + $0xe0] sm:$0xff]
  %v171 = vld [vmem:[%s1 + $0xe8] sm:$0xff]
  %v172 = vld [vmem:[%s1 + $0xf0] sm:$0xff]
  %v173 = vld [vmem:[%s1 + $0xf8] sm:$0xff]
  %v174 = vld [vmem:[%s1 + $0x100] sm:$0xff]
  %v175 = vld [vmem:[%s1 + $0x108] sm:$0xff]
  %v176 = vld [vmem:[%s1 + $0x110] sm:$0xff]
  %v177 = vld [vmem:[%s1 + $0x118] sm:$0xff]
  %v178 = vld [vmem:[%s1 + $0x120] sm:$0xff]
  %v179 = vld [vmem:[%s1 + $0x128] sm:$0xff]
  %v180 = vld [vmem:[%s1 + $0x130] sm:$0xff]
  %v181 = vld [vmem:[%s1 + $0x138] sm:$0xff]
  %v182 = vld [vmem:[%s1 + $0x140] sm:$0xff]
  %v183 = vld [vmem:[%s1 + $0x148] sm:$0xff]
  %v184 = vld [vmem:[%s1 + $0x150] sm:$0xff]
  %v185 = vld [vmem:[%s1 + $0x158] sm:$0xff]
  %v186 = vld [vmem:[%s1 + $0x160] sm:$0xff]
  %v187 = vld [vmem:[%s1 + $0x168] sm:$0xff]
  %v188 = vld [vmem:[%s1 + $0x170] sm:$0xff]
  %v189 = vld [vmem:[%s1 + $0x178] sm:$0xff]
  %v190 = vld [vmem:[%s1 + $0x180] sm:$0xff]
  %v191 = vld [vmem:[%s1 + $0x188] sm:$0xff]
  %v192 = vld [vmem:[%s1 + $0x190] sm:$0xff]
  %v193 = vld [vmem:[%s1 + $0x198] sm:$0xff]
  %v194 = vld [vmem:[%s1 + $0x1a0] sm:$0xff]
  %v195 = vld [vmem:[%s1 + $0x1a8] sm:$0xff]
  %v196 = vld [vmem:[%s1 + $0x1b0] sm:$0xff]
  %v197 = vld [vmem:[%s1 + $0x1b8] sm:$0xff]
  %v198 = vld [vmem:[%s1 + $0x1c0] sm:$0xff]
  %v199 = vld [vmem:[%s1 + $0x1c8] sm:$0xff]
  %v200 = vld [vmem:[%s1 + $0x1d0] sm:$0xff]
  %v201 = vld [vmem:[%s1 + $0x1d8] sm:$0xff]
  %v202 = vld [vmem:[%s1 + $0x1e0] sm:$0xff]
  %v203 = vld [vmem:[%s1 + $0x1e8] sm:$0xff]
  %v204 = vld [vmem:[%s1 + $0x1f0] sm:$0xff]
  %v205 = vld [vmem:[%s1 + $0x1f8] sm:$0xff]
  %v206 = vld [vmem:[%s1 + $0x200] sm:$0xff]
  %v207 = vld [vmem:[%s1 + $0x208] sm:$0xff]
  %v208 = vld [vmem:[%s1 + $0x210] sm:$0xff]
  %v209 = vld [vmem:[%s1 + $0x218] sm:$0xff]
  %v210 = vld [vmem:[%s1 + $0x220] sm:$0xff]
  %v211 = vld [vmem:[%s1 + $0x228] sm:$0xff]
  %v212 = vld [vmem:[%s1 + $0x230] sm:$0xff]
  %v213 = vld [vmem:[%s1 + $0x238] sm:$0xff]
  %v214 = vld [vmem:[%s1 + $0x240] sm:$0xff]
  %v215 = vld [vmem:[%s1 + $0x248] sm:$0xff]
  %v216 = vld [vmem:[%s1 + $0x250] sm:$0xff]
  %v217 = vld [vmem:[%s1 + $0x258] sm:$0xff]
  %v218 = vld [vmem:[%s1 + $0x260] sm:$0xff]
  %v219 = vld [vmem:[%s1 + $0x268] sm:$0xff]
  %v220 = vld [vmem:[%s1 + $0x270] sm:$0xff]
  %v221 = vld [vmem:[%s1 + $0x278] sm:$0xff]
  %v222 = vld [vmem:[%s1 + $0x280] sm:$0xff]
  %v223 = vld [vmem:[%s1 + $0x288] sm:$0xff]
  %v224 = vld [vmem:[%s1 + $0x290] sm:$0xff]
  %v225 = vld [vmem:[%s1 + $0x298] sm:$0xff]
  %v226 = vld [vmem:[%s1 + $0x2a0] sm:$0xff]
  %v227 = vld [vmem:[%s1 + $0x2a8] sm:$0xff]
  %v228 = vld [vmem:[%s1 + $0x2b0] sm:$0xff]
  %v229 = vld [vmem:[%s1 + $0x2b8] sm:$0xff]
  %v230 = vld [vmem:[%s1 + $0x2c0] sm:$0xff]
  %v231 = vld [vmem:[%s1 + $0x2c8] sm:$0xff]
  %v232 = vld [vmem:[%s1 + $0x2d0] sm:$0xff]
  %v233 = vld [vmem:[%s1 + $0x2d8] sm:$0xff]
  %v234 = vld [vmem:[%s1 + $0x2e0] sm:$0xff]
  %v235 = vld [vmem:[%s1 + $0x2e8] sm:$0xff]
  %v236 = vld [vmem:[%s1 + $0x2f0] sm:$0xff]
  %v237 = vld [vmem:[%s1 + $0x2f8] sm:$0xff]
  %v238 = vld [vmem:[%s1 + $0x300] sm:$0xff]
  %v239 = vld [vmem:[%s1 + $0x308] sm:$0xff]
  %v240 = vld [vmem:[%s1 + $0x310] sm:$0xff]
  %v241 = vld [vmem:[%s1 + $0x318] sm:$0xff]
  %v242 = vld [vmem:[%s1 + $0x320] sm:$0xff]
  %v243 = vld [vmem:[%s1 + $0x328] sm:$0xff]
  %v244 = vld [vmem:[%s1 + $0x330] sm:$0xff]
  %v245 = vld [vmem:[%s1 + $0x338] sm:$0xff]
  %v246 = vld [vmem:[%s1 + $0x340] sm:$0xff]
  %v247 = vld [vmem:[%s1 + $0x348] sm:$0xff]
  %v248 = vld [vmem:[%s1 + $0x350] sm:$0xff]
  %v249 = vld [vmem:[%s1 + $0x358] sm:$0xff]
  %v250 = vld [vmem:[%s1 + $0x360] sm:$0xff]
  %v251 = vld [vmem:[%s1 + $0x368] sm:$0xff]
  %v252 = vld [vmem:[%s1 + $0x370] sm:$0xff]
  %v253 = vld [vmem:[%s1 + $0x378] sm:$0xff]
  %v254 = vld [vmem:[%s1 + $0x380] sm:$0xff]
  %v255 = vld [vmem:[%s1 + $0x388] sm:$0xff]
  %v256 = vld [vmem:[%s1 + $0x390] sm:$0xff]
  %v257 = vld [vmem:[%s1 + $0x398] sm:$0xff]
  %v258 = vld [vmem:[%s1 + $0x3a0] sm:$0xff]
  %v259 = vld [vmem:[%s1 + $0x3a8] sm:$0xff]
  %v260 = vld [vmem:[%s1 + $0x3b0] sm:$0xff]
  %v261 = vld [vmem:[%s1 + $0x3b8] sm:$0xff]
  %v262 = vld [vmem:[%s1 + $0x3c0] sm:$0xff]
  %v263 = vld [vmem:[%s1 + $0x3c8] sm:$0xff]
  %v264 = vld [vmem:[%s1 + $0x3d0] sm:$0xff]
  %v265 = vld [vmem:[%s1 + $0x3d8] sm:$0xff]
  %v266 = vld [vmem:[%s1 + $0x3e0] sm:$0xff]
  %v267 = vld [vmem:[%s1 + $0x3e8] sm:$0xff]
  %v268 = vld [vmem:[%s1 + $0x3f0] sm:$0xff]
  %v269 = vld [vmem:[%s1 + $0x3f8] sm:$0xff]
  %v270 = vld [vmem:[%s2] sm:$0xff]
  %v271 = vld [vmem:[%s2 + $0x8] sm:$0xff]
  %v272 = vld [vmem:[%s2 + $0x10] sm:$0xff]
  %v273 = vld [vmem:[%s2 + $0x18] sm:$0xff]
  %v274 = vld [vmem:[%s2 + $0x20] sm:$0xff]
  %v275 = vld [vmem:[%s2 + $0x28] sm:$0xff]
  %v276 = vld [vmem:[%s2 + $0x30] sm:$0xff]
  %v277 = vld [vmem:[%s2 + $0x38] sm:$0xff]
  %v278 = vld [vmem:[%s2 + $0x40] sm:$0xff]
  %v279 = vld [vmem:[%s2 + $0x48] sm:$0xff]
  %v280 = vld [vmem:[%s2 + $0x50] sm:$0xff]
  %v281 = vld [vmem:[%s2 + $0x58] sm:$0xff]
  %v282 = vld [vmem:[%s2 + $0x60] sm:$0xff]
  %v283 = vld [vmem:[%s2 + $0x68] sm:$0xff]
  %v284 = vld [vmem:[%s2 + $0x70] sm:$0xff]
  %v285 = vld [vmem:[%s2 + $0x78] sm:$0xff]
  %v286 = vld [vmem:[%s2 + $0x80] sm:$0xff]
  %v287 = vld [vmem:[%s2 + $0x88] sm:$0xff]
  %v288 = vld [vmem:[%s2 + $0x90] sm:$0xff]
  %v289 = vld [vmem:[%s2 + $0x98] sm:$0xff]
  %v290 = vld [vmem:[%s2 + $0xa0] sm:$0xff]
  %v291 = vld [vmem:[%s2 + $0xa8] sm:$0xff]
  %v292 = vld [vmem:[%s2 + $0xb0] sm:$0xff]
  %v293 = vld [vmem:[%s2 + $0xb8] sm:$0xff]
  %v294 = vld [vmem:[%s2 + $0xc0] sm:$0xff]
  %v295 = vld [vmem:[%s2 + $0xc8] sm:$0xff]
  %v296 = vld [vmem:[%s2 + $0xd0] sm:$0xff]
  %v297 = vld [vmem:[%s2 + $0xd8] sm:$0xff]
  %v298 = vld [vmem:[%s2 + $0xe0] sm:$0xff]
  %v299 = vld [vmem:[%s2 + $0xe8] sm:$0xff]
  %v300 = vld [vmem:[%s2 + $0xf0] sm:$0xff]
  %v301 = vld [vmem:[%s2 + $0xf8] sm:$0xff]
  %v302 = vld [vmem:[%s2 + $0x100] sm:$0xff]
  %v303 = vld [vmem:[%s2 + $0x108] sm:$0xff]
  %v304 = vld [vmem:[%s2 + $0x110] sm:$0xff]
  %v305 = vld [vmem:[%s2 + $0x118] sm:$0xff]
  %v306 = vld [vmem:[%s2 + $0x120] sm:$0xff]
  %v307 = vld [vmem:[%s2 + $0x128] sm:$0xff]
  %v308 = vld [vmem:[%s2 + $0x130] sm:$0xff]
  %v309 = vld [vmem:[%s2 + $0x138] sm:$0xff]
  %v310 = vld [vmem:[%s2 + $0x140] sm:$0xff]
  %v311 = vld [vmem:[%s2 + $0x148] sm:$0xff]
  %v312 = vld [vmem:[%s2 + $0x150] sm:$0xff]
  %v313 = vld [vmem:[%s2 + $0x158] sm:$0xff]
  %v314 = vld [vmem:[%s2 + $0x160] sm:$0xff]
  %v315 = vld [vmem:[%s2 + $0x168] sm:$0xff]
  %v316 = vld [vmem:[%s2 + $0x170] sm:$0xff]
  %v317 = vld [vmem:[%s2 + $0x178] sm:$0xff]
  %v318 = vld [vmem:[%s2 + $0x180] sm:$0xff]
  %v319 = vld [vmem:[%s2 + $0x188] sm:$0xff]
  %v320 = vld [vmem:[%s2 + $0x190] sm:$0xff]
  %v321 = vld [vmem:[%s2 + $0x198] sm:$0xff]
  %v322 = vld [vmem:[%s2 + $0x1a0] sm:$0xff]
  %v323 = vld [vmem:[%s2 + $0x1a8] sm:$0xff]
  %v324 = vld [vmem:[%s2 + $0x1b0] sm:$0xff]
  %v325 = vld [vmem:[%s2 + $0x1b8] sm:$0xff]
  %v326 = vld [vmem:[%s2 + $0x1c0] sm:$0xff]
  %v327 = vld [vmem:[%s2 + $0x1c8] sm:$0xff]
  %v328 = vld [vmem:[%s2 + $0x1d0] sm:$0xff]
  %v329 = vld [vmem:[%s2 + $0x1d8] sm:$0xff]
  %v330 = vld [vmem:[%s2 + $0x1e0] sm:$0xff]
  %v331 = vld [vmem:[%s2 + $0x1e8] sm:$0xff]
  %v332 = vld [vmem:[%s2 + $0x1f0] sm:$0xff]
  %v333 = vld [vmem:[%s2 + $0x1f8] sm:$0xff]
  %v334 = vld [vmem:[%s2 + $0x200] sm:$0xff]
  %v335 = vld [vmem:[%s2 + $0x208] sm:$0xff]
  %v336 = vld [vmem:[%s2 + $0x210] sm:$0xff]
  %v337 = vld [vmem:[%s2 + $0x218] sm:$0xff]
  %v338 = vld [vmem:[%s2 + $0x220] sm:$0xff]
  %v339 = vld [vmem:[%s2 + $0x228] sm:$0xff]
  %v340 = vld [vmem:[%s2 + $0x230] sm:$0xff]
  %v341 = vld [vmem:[%s2 + $0x238] sm:$0xff]
  %v342 = vld [vmem:[%s2 + $0x240] sm:$0xff]
  %v343 = vld [vmem:[%s2 + $0x248] sm:$0xff]
  %v344 = vld [vmem:[%s2 + $0x250] sm:$0xff]
  %v345 = vld [vmem:[%s2 + $0x258] sm:$0xff]
  %v346 = vld [vmem:[%s2 + $0x260] sm:$0xff]
  %v347 = vld [vmem:[%s2 + $0x268] sm:$0xff]
  %v348 = vld [vmem:[%s2 + $0x270] sm:$0xff]
  %v349 = vld [vmem:[%s2 + $0x278] sm:$0xff]
  %v350 = vld [vmem:[%s2 + $0x280] sm:$0xff]
  %v351 = vld [vmem:[%s2 + $0x288] sm:$0xff]
  %v352 = vld [vmem:[%s2 + $0x290] sm:$0xff]
  %v353 = vld [vmem:[%s2 + $0x298] sm:$0xff]
  %v354 = vld [vmem:[%s2 + $0x2a0] sm:$0xff]
  %v355 = vld [vmem:[%s2 + $0x2a8] sm:$0xff]
  %v356 = vld [vmem:[%s2 + $0x2b0] sm:$0xff]
  %v357 = vld [vmem:[%s2 + $0x2b8] sm:$0xff]
  %v358 = vld [vmem:[%s2 + $0x2c0] sm:$0xff]
  %v359 = vld [vmem:[%s2 + $0x2c8] sm:$0xff]
  %v360 = vld [vmem:[%s2 + $0x2d0] sm:$0xff]
  %v361 = vld [vmem:[%s2 + $0x2d8] sm:$0xff]
  %v362 = vld [vmem:[%s2 + $0x2e0] sm:$0xff]
  %v363 = vld [vmem:[%s2 + $0x2e8] sm:$0xff]
  %v364 = vld [vmem:[%s2 + $0x2f0] sm:$0xff]
  %v365 = vld [vmem:[%s2 + $0x2f8] sm:$0xff]
  %v366 = vld [vmem:[%s2 + $0x300] sm:$0xff]
  %v367 = vld [vmem:[%s2 + $0x308] sm:$0xff]
  %v368 = vld [vmem:[%s2 + $0x310] sm:$0xff]
  %v369 = vld [vmem:[%s2 + $0x318] sm:$0xff]
  %v370 = vld [vmem:[%s2 + $0x320] sm:$0xff]
  %v371 = vld [vmem:[%s2 + $0x328] sm:$0xff]
  %v372 = vld [vmem:[%s2 + $0x330] sm:$0xff]
  %v373 = vld [vmem:[%s2 + $0x338] sm:$0xff]
  %v374 = vld [vmem:[%s2 + $0x340] sm:$0xff]
  %v375 = vld [vmem:[%s2 + $0x348] sm:$0xff]
  %v376 = vld [vmem:[%s2 + $0x350] sm:$0xff]
  %v377 = vld [vmem:[%s2 + $0x358] sm:$0xff]
  %v378 = vld [vmem:[%s2 + $0x360] sm:$0xff]
  %v379 = vld [vmem:[%s2 + $0x368] sm:$0xff]
  %v380 = vld [vmem:[%s2 + $0x370] sm:$0xff]
  %v381 = vld [vmem:[%s2 + $0x378] sm:$0xff]
  %v382 = vld [vmem:[%s2 + $0x380] sm:$0xff]
  %v383 = vld [vmem:[%s2 + $0x388] sm:$0xff]
  %v384 = vld [vmem:[%s2 + $0x390] sm:$0xff]
  %v385 = vld [vmem:[%s2 + $0x398] sm:$0xff]
  %v386 = vld [vmem:[%s2 + $0x3a0] sm:$0xff]
  %v387 = vld [vmem:[%s2 + $0x3a8] sm:$0xff]
  %v388 = vld [vmem:[%s2 + $0x3b0] sm:$0xff]
  %v389 = vld [vmem:[%s2 + $0x3b8] sm:$0xff]
  %v390 = vld [vmem:[%s2 + $0x3c0] sm:$0xff]
  %v391 = vld [vmem:[%s2 + $0x3c8] sm:$0xff]
  %v392 = vld [vmem:[%s2 + $0x3d0] sm:$0xff]
  %v393 = vld [vmem:[%s2 + $0x3d8] sm:$0xff]
  %v394 = vld [vmem:[%s2 + $0x3e0] sm:$0xff]
  %v395 = vld [vmem:[%s2 + $0x3e8] sm:$0xff]
  %v396 = vld [vmem:[%s2 + $0x3f0] sm:$0xff]
  %v397 = vld [vmem:[%s2 + $0x3f8] sm:$0xff]
  %vm398 = vcmask 56320
  %v399 = vsel %vm398, %v14, -inf
  %400 = vmax.xlane.f32.xlu0 %v399
  %v401 = vpop.xlane.xlu0 %400
  %v402 = vsel %vm398, %v15, -inf
  %403 = vmax.xlane.f32.xlu0 %v402
  %v404 = vpop.xlane.xlu0 %403
  %v405 = vsel %vm398, %v16, -inf
  %406 = vmax.xlane.f32.xlu0 %v405
  %v407 = vpop.xlane.xlu0 %406
  %v408 = vsel %vm398, %v17, -inf
  %409 = vmax.xlane.f32.xlu0 %v408
  %v410 = vpop.xlane.xlu0 %409
  %v411 = vsel %vm398, %v18, -inf
  %412 = vmax.xlane.f32.xlu0 %v411
  %v413 = vpop.xlane.xlu0 %412
  %v414 = vsel %vm398, %v19, -inf
  %415 = vmax.xlane.f32.xlu0 %v414
  %v416 = vpop.xlane.xlu0 %415
  %v417 = vsel %vm398, %v20, -inf
  %418 = vmax.xlane.f32.xlu0 %v417
  %v419 = vpop.xlane.xlu0 %418
  %v420 = vsel %vm398, %v21, -inf
  %421 = vmax.xlane.f32.xlu0 %v420
  %v422 = vpop.xlane.xlu0 %421
  %v423 = vsel %vm398, %v22, -inf
  %424 = vmax.xlane.f32.xlu0 %v423
  %v425 = vpop.xlane.xlu0 %424
  %v426 = vsel %vm398, %v23, -inf
  %427 = vmax.xlane.f32.xlu0 %v426
  %v428 = vpop.xlane.xlu0 %427
  %v429 = vsel %vm398, %v24, -inf
  %430 = vmax.xlane.f32.xlu0 %v429
  %v431 = vpop.xlane.xlu0 %430
  %v432 = vsel %vm398, %v25, -inf
  %433 = vmax.xlane.f32.xlu0 %v432
  %v434 = vpop.xlane.xlu0 %433
  %v435 = vsel %vm398, %v26, -inf
  %436 = vmax.xlane.f32.xlu0 %v435
  %v437 = vpop.xlane.xlu0 %436
  %v438 = vsel %vm398, %v27, -inf
  %439 = vmax.xlane.f32.xlu0 %v438
  %v440 = vpop.xlane.xlu0 %439
  %v441 = vsel %vm398, %v28, -inf
  %442 = vmax.xlane.f32.xlu0 %v441
  %v443 = vpop.xlane.xlu0 %442
  %v444 = vsel %vm398, %v29, -inf
  %445 = vmax.xlane.f32.xlu0 %v444
  %v446 = vpop.xlane.xlu0 %445
  %v447 = vsel %vm398, %v30, -inf
  %448 = vmax.xlane.f32.xlu0 %v447
  %v449 = vpop.xlane.xlu0 %448
  %v450 = vsel %vm398, %v31, -inf
  %451 = vmax.xlane.f32.xlu0 %v450
  %v452 = vpop.xlane.xlu0 %451
  %v453 = vsel %vm398, %v32, -inf
  %454 = vmax.xlane.f32.xlu0 %v453
  %v455 = vpop.xlane.xlu0 %454
  %v456 = vsel %vm398, %v33, -inf
  %457 = vmax.xlane.f32.xlu0 %v456
  %v458 = vpop.xlane.xlu0 %457
  %v459 = vsel %vm398, %v34, -inf
  %460 = vmax.xlane.f32.xlu0 %v459
  %v461 = vpop.xlane.xlu0 %460
  %v462 = vsel %vm398, %v35, -inf
  %463 = vmax.xlane.f32.xlu0 %v462
  %v464 = vpop.xlane.xlu0 %463
  %v465 = vsel %vm398, %v36, -inf
  %466 = vmax.xlane.f32.xlu0 %v465
  %v467 = vpop.xlane.xlu0 %466
  %v468 = vsel %vm398, %v37, -inf
  %469 = vmax.xlane.f32.xlu0 %v468
  %v470 = vpop.xlane.xlu0 %469
  %v471 = vsel %vm398, %v38, -inf
  %472 = vmax.xlane.f32.xlu0 %v471
  %v473 = vpop.xlane.xlu0 %472
  %v474 = vsel %vm398, %v39, -inf
  %475 = vmax.xlane.f32.xlu0 %v474
  %v476 = vpop.xlane.xlu0 %475
  %v477 = vsel %vm398, %v40, -inf
  %478 = vmax.xlane.f32.xlu0 %v477
  %v479 = vpop.xlane.xlu0 %478
  %v480 = vsel %vm398, %v41, -inf
  %481 = vmax.xlane.f32.xlu0 %v480
  %v482 = vpop.xlane.xlu0 %481
  %v483 = vsel %vm398, %v42, -inf
  %484 = vmax.xlane.f32.xlu0 %v483
  %v485 = vpop.xlane.xlu0 %484
  %v486 = vsel %vm398, %v43, -inf
  %487 = vmax.xlane.f32.xlu0 %v486
  %v488 = vpop.xlane.xlu0 %487
  %v489 = vsel %vm398, %v44, -inf
  %490 = vmax.xlane.f32.xlu0 %v489
  %v491 = vpop.xlane.xlu0 %490
  %v492 = vsel %vm398, %v45, -inf
  %493 = vmax.xlane.f32.xlu0 %v492
  %v494 = vpop.xlane.xlu0 %493
  %v495 = vsel %vm398, %v46, -inf
  %496 = vmax.xlane.f32.xlu0 %v495
  %v497 = vpop.xlane.xlu0 %496
  %v498 = vsel %vm398, %v47, -inf
  %499 = vmax.xlane.f32.xlu0 %v498
  %v500 = vpop.xlane.xlu0 %499
  %v501 = vsel %vm398, %v48, -inf
  %502 = vmax.xlane.f32.xlu0 %v501
  %v503 = vpop.xlane.xlu0 %502
  %v504 = vsel %vm398, %v49, -inf
  %505 = vmax.xlane.f32.xlu0 %v504
  %v506 = vpop.xlane.xlu0 %505
  %v507 = vsel %vm398, %v50, -inf
  %508 = vmax.xlane.f32.xlu0 %v507
  %v509 = vpop.xlane.xlu0 %508
  %v510 = vsel %vm398, %v51, -inf
  %511 = vmax.xlane.f32.xlu0 %v510
  %v512 = vpop.xlane.xlu0 %511
  %v513 = vsel %vm398, %v52, -inf
  %514 = vmax.xlane.f32.xlu0 %v513
  %v515 = vpop.xlane.xlu0 %514
  %v516 = vsel %vm398, %v53, -inf
  %517 = vmax.xlane.f32.xlu0 %v516
  %v518 = vpop.xlane.xlu0 %517
  %v519 = vsel %vm398, %v54, -inf
  %520 = vmax.xlane.f32.xlu0 %v519
  %v521 = vpop.xlane.xlu0 %520
  %v522 = vsel %vm398, %v55, -inf
  %523 = vmax.xlane.f32.xlu0 %v522
  %v524 = vpop.xlane.xlu0 %523
  %v525 = vsel %vm398, %v56, -inf
  %526 = vmax.xlane.f32.xlu0 %v525
  %v527 = vpop.xlane.xlu0 %526
  %v528 = vsel %vm398, %v57, -inf
  %529 = vmax.xlane.f32.xlu0 %v528
  %v530 = vpop.xlane.xlu0 %529
  %v531 = vsel %vm398, %v58, -inf
  %532 = vmax.xlane.f32.xlu0 %v531
  %v533 = vpop.xlane.xlu0 %532
  %v534 = vsel %vm398, %v59, -inf
  %535 = vmax.xlane.f32.xlu0 %v534
  %v536 = vpop.xlane.xlu0 %535
  %v537 = vsel %vm398, %v60, -inf
  %538 = vmax.xlane.f32.xlu0 %v537
  %v539 = vpop.xlane.xlu0 %538
  %v540 = vsel %vm398, %v61, -inf
  %541 = vmax.xlane.f32.xlu0 %v540
  %v542 = vpop.xlane.xlu0 %541
  %v543 = vsel %vm398, %v62, -inf
  %544 = vmax.xlane.f32.xlu0 %v543
  %v545 = vpop.xlane.xlu0 %544
  %v546 = vsel %vm398, %v63, -inf
  %547 = vmax.xlane.f32.xlu0 %v546
  %v548 = vpop.xlane.xlu0 %547
  %v549 = vsel %vm398, %v64, -inf
  %550 = vmax.xlane.f32.xlu0 %v549
  %v551 = vpop.xlane.xlu0 %550
  %v552 = vsel %vm398, %v65, -inf
  %553 = vmax.xlane.f32.xlu0 %v552
  %v554 = vpop.xlane.xlu0 %553
  %v555 = vsel %vm398, %v66, -inf
  %556 = vmax.xlane.f32.xlu0 %v555
  %v557 = vpop.xlane.xlu0 %556
  %v558 = vsel %vm398, %v67, -inf
  %559 = vmax.xlane.f32.xlu0 %v558
  %v560 = vpop.xlane.xlu0 %559
  %v561 = vsel %vm398, %v68, -inf
  %562 = vmax.xlane.f32.xlu0 %v561
  %v563 = vpop.xlane.xlu0 %562
  %v564 = vsel %vm398, %v69, -inf
  %565 = vmax.xlane.f32.xlu0 %v564
  %v566 = vpop.xlane.xlu0 %565
  %v567 = vsel %vm398, %v70, -inf
  %568 = vmax.xlane.f32.xlu0 %v567
  %v569 = vpop.xlane.xlu0 %568
  %v570 = vsel %vm398, %v71, -inf
  %571 = vmax.xlane.f32.xlu0 %v570
  %v572 = vpop.xlane.xlu0 %571
  %v573 = vsel %vm398, %v72, -inf
  %574 = vmax.xlane.f32.xlu0 %v573
  %v575 = vpop.xlane.xlu0 %574
  %v576 = vsel %vm398, %v73, -inf
  %577 = vmax.xlane.f32.xlu0 %v576
  %v578 = vpop.xlane.xlu0 %577
  %v579 = vsel %vm398, %v74, -inf
  %580 = vmax.xlane.f32.xlu0 %v579
  %v581 = vpop.xlane.xlu0 %580
  %v582 = vsel %vm398, %v75, -inf
  %583 = vmax.xlane.f32.xlu0 %v582
  %v584 = vpop.xlane.xlu0 %583
  %v585 = vsel %vm398, %v76, -inf
  %586 = vmax.xlane.f32.xlu0 %v585
  %v587 = vpop.xlane.xlu0 %586
  %v588 = vsel %vm398, %v77, -inf
  %589 = vmax.xlane.f32.xlu0 %v588
  %v590 = vpop.xlane.xlu0 %589
  %v591 = vsel %vm398, %v78, -inf
  %592 = vmax.xlane.f32.xlu0 %v591
  %v593 = vpop.xlane.xlu0 %592
  %v594 = vsel %vm398, %v79, -inf
  %595 = vmax.xlane.f32.xlu0 %v594
  %v596 = vpop.xlane.xlu0 %595
  %v597 = vsel %vm398, %v80, -inf
  %598 = vmax.xlane.f32.xlu0 %v597
  %v599 = vpop.xlane.xlu0 %598
  %v600 = vsel %vm398, %v81, -inf
  %601 = vmax.xlane.f32.xlu0 %v600
  %v602 = vpop.xlane.xlu0 %601
  %v603 = vsel %vm398, %v82, -inf
  %604 = vmax.xlane.f32.xlu0 %v603
  %v605 = vpop.xlane.xlu0 %604
  %v606 = vsel %vm398, %v83, -inf
  %607 = vmax.xlane.f32.xlu0 %v606
  %v608 = vpop.xlane.xlu0 %607
  %v609 = vsel %vm398, %v84, -inf
  %610 = vmax.xlane.f32.xlu0 %v609
  %v611 = vpop.xlane.xlu0 %610
  %v612 = vsel %vm398, %v85, -inf
  %613 = vmax.xlane.f32.xlu0 %v612
  %v614 = vpop.xlane.xlu0 %613
  %v615 = vsel %vm398, %v86, -inf
  %616 = vmax.xlane.f32.xlu0 %v615
  %v617 = vpop.xlane.xlu0 %616
  %v618 = vsel %vm398, %v87, -inf
  %619 = vmax.xlane.f32.xlu0 %v618
  %v620 = vpop.xlane.xlu0 %619
  %v621 = vsel %vm398, %v88, -inf
  %622 = vmax.xlane.f32.xlu0 %v621
  %v623 = vpop.xlane.xlu0 %622
  %v624 = vsel %vm398, %v89, -inf
  %625 = vmax.xlane.f32.xlu0 %v624
  %v626 = vpop.xlane.xlu0 %625
  %v627 = vsel %vm398, %v90, -inf
  %628 = vmax.xlane.f32.xlu0 %v627
  %v629 = vpop.xlane.xlu0 %628
  %v630 = vsel %vm398, %v91, -inf
  %631 = vmax.xlane.f32.xlu0 %v630
  %v632 = vpop.xlane.xlu0 %631
  %v633 = vsel %vm398, %v92, -inf
  %634 = vmax.xlane.f32.xlu0 %v633
  %v635 = vpop.xlane.xlu0 %634
  %v636 = vsel %vm398, %v93, -inf
  %637 = vmax.xlane.f32.xlu0 %v636
  %v638 = vpop.xlane.xlu0 %637
  %v639 = vsel %vm398, %v94, -inf
  %640 = vmax.xlane.f32.xlu0 %v639
  %v641 = vpop.xlane.xlu0 %640
  %v642 = vsel %vm398, %v95, -inf
  %643 = vmax.xlane.f32.xlu0 %v642
  %v644 = vpop.xlane.xlu0 %643
  %v645 = vsel %vm398, %v96, -inf
  %646 = vmax.xlane.f32.xlu0 %v645
  %v647 = vpop.xlane.xlu0 %646
  %v648 = vsel %vm398, %v97, -inf
  %649 = vmax.xlane.f32.xlu0 %v648
  %v650 = vpop.xlane.xlu0 %649
  %v651 = vsel %vm398, %v98, -inf
  %652 = vmax.xlane.f32.xlu0 %v651
  %v653 = vpop.xlane.xlu0 %652
  %v654 = vsel %vm398, %v99, -inf
  %655 = vmax.xlane.f32.xlu0 %v654
  %v656 = vpop.xlane.xlu0 %655
  %v657 = vsel %vm398, %v100, -inf
  %658 = vmax.xlane.f32.xlu0 %v657
  %v659 = vpop.xlane.xlu0 %658
  %v660 = vsel %vm398, %v101, -inf
  %661 = vmax.xlane.f32.xlu0 %v660
  %v662 = vpop.xlane.xlu0 %661
  %v663 = vsel %vm398, %v102, -inf
  %664 = vmax.xlane.f32.xlu0 %v663
  %v665 = vpop.xlane.xlu0 %664
  %v666 = vsel %vm398, %v103, -inf
  %667 = vmax.xlane.f32.xlu0 %v666
  %v668 = vpop.xlane.xlu0 %667
  %v669 = vsel %vm398, %v104, -inf
  %670 = vmax.xlane.f32.xlu0 %v669
  %v671 = vpop.xlane.xlu0 %670
  %v672 = vsel %vm398, %v105, -inf
  %673 = vmax.xlane.f32.xlu0 %v672
  %v674 = vpop.xlane.xlu0 %673
  %v675 = vsel %vm398, %v106, -inf
  %676 = vmax.xlane.f32.xlu0 %v675
  %v677 = vpop.xlane.xlu0 %676
  %v678 = vsel %vm398, %v107, -inf
  %679 = vmax.xlane.f32.xlu0 %v678
  %v680 = vpop.xlane.xlu0 %679
  %v681 = vsel %vm398, %v108, -inf
  %682 = vmax.xlane.f32.xlu0 %v681
  %v683 = vpop.xlane.xlu0 %682
  %v684 = vsel %vm398, %v109, -inf
  %685 = vmax.xlane.f32.xlu0 %v684
  %v686 = vpop.xlane.xlu0 %685
  %v687 = vsel %vm398, %v110, -inf
  %688 = vmax.xlane.f32.xlu0 %v687
  %v689 = vpop.xlane.xlu0 %688
  %v690 = vsel %vm398, %v111, -inf
  %691 = vmax.xlane.f32.xlu0 %v690
  %v692 = vpop.xlane.xlu0 %691
  %v693 = vsel %vm398, %v112, -inf
  %694 = vmax.xlane.f32.xlu0 %v693
  %v695 = vpop.xlane.xlu0 %694
  %v696 = vsel %vm398, %v113, -inf
  %697 = vmax.xlane.f32.xlu0 %v696
  %v698 = vpop.xlane.xlu0 %697
  %v699 = vsel %vm398, %v114, -inf
  %700 = vmax.xlane.f32.xlu0 %v699
  %v701 = vpop.xlane.xlu0 %700
  %v702 = vsel %vm398, %v115, -inf
  %703 = vmax.xlane.f32.xlu0 %v702
  %v704 = vpop.xlane.xlu0 %703
  %v705 = vsel %vm398, %v116, -inf
  %706 = vmax.xlane.f32.xlu0 %v705
  %v707 = vpop.xlane.xlu0 %706
  %v708 = vsel %vm398, %v117, -inf
  %709 = vmax.xlane.f32.xlu0 %v708
  %v710 = vpop.xlane.xlu0 %709
  %v711 = vsel %vm398, %v118, -inf
  %712 = vmax.xlane.f32.xlu0 %v711
  %v713 = vpop.xlane.xlu0 %712
  %v714 = vsel %vm398, %v119, -inf
  %715 = vmax.xlane.f32.xlu0 %v714
  %v716 = vpop.xlane.xlu0 %715
  %v717 = vsel %vm398, %v120, -inf
  %718 = vmax.xlane.f32.xlu0 %v717
  %v719 = vpop.xlane.xlu0 %718
  %v720 = vsel %vm398, %v121, -inf
  %721 = vmax.xlane.f32.xlu0 %v720
  %v722 = vpop.xlane.xlu0 %721
  %v723 = vsel %vm398, %v122, -inf
  %724 = vmax.xlane.f32.xlu0 %v723
  %v725 = vpop.xlane.xlu0 %724
  %v726 = vsel %vm398, %v123, -inf
  %727 = vmax.xlane.f32.xlu0 %v726
  %v728 = vpop.xlane.xlu0 %727
  %v729 = vsel %vm398, %v124, -inf
  %730 = vmax.xlane.f32.xlu0 %v729
  %v731 = vpop.xlane.xlu0 %730
  %v732 = vsel %vm398, %v125, -inf
  %733 = vmax.xlane.f32.xlu0 %v732
  %v734 = vpop.xlane.xlu0 %733
  %v735 = vsel %vm398, %v126, -inf
  %736 = vmax.xlane.f32.xlu0 %v735
  %v737 = vpop.xlane.xlu0 %736
  %v738 = vsel %vm398, %v127, -inf
  %739 = vmax.xlane.f32.xlu0 %v738
  %v740 = vpop.xlane.xlu0 %739
  %v741 = vsel %vm398, %v128, -inf
  %742 = vmax.xlane.f32.xlu0 %v741
  %v743 = vpop.xlane.xlu0 %742
  %v744 = vsel %vm398, %v129, -inf
  %745 = vmax.xlane.f32.xlu0 %v744
  %v746 = vpop.xlane.xlu0 %745
  %v747 = vsel %vm398, %v130, -inf
  %748 = vmax.xlane.f32.xlu0 %v747
  %v749 = vpop.xlane.xlu0 %748
  %v750 = vsel %vm398, %v131, -inf
  %751 = vmax.xlane.f32.xlu0 %v750
  %v752 = vpop.xlane.xlu0 %751
  %v753 = vsel %vm398, %v132, -inf
  %754 = vmax.xlane.f32.xlu0 %v753
  %v755 = vpop.xlane.xlu0 %754
  %v756 = vsel %vm398, %v133, -inf
  %757 = vmax.xlane.f32.xlu0 %v756
  %v758 = vpop.xlane.xlu0 %757
  %v759 = vsel %vm398, %v134, -inf
  %760 = vmax.xlane.f32.xlu0 %v759
  %v761 = vpop.xlane.xlu0 %760
  %v762 = vsel %vm398, %v135, -inf
  %763 = vmax.xlane.f32.xlu0 %v762
  %v764 = vpop.xlane.xlu0 %763
  %v765 = vsel %vm398, %v136, -inf
  %766 = vmax.xlane.f32.xlu0 %v765
  %v767 = vpop.xlane.xlu0 %766
  %v768 = vsel %vm398, %v137, -inf
  %769 = vmax.xlane.f32.xlu0 %v768
  %v770 = vpop.xlane.xlu0 %769
  %v771 = vsel %vm398, %v138, -inf
  %772 = vmax.xlane.f32.xlu0 %v771
  %v773 = vpop.xlane.xlu0 %772
  %v774 = vsel %vm398, %v139, -inf
  %775 = vmax.xlane.f32.xlu0 %v774
  %v776 = vpop.xlane.xlu0 %775
  %v777 = vsel %vm398, %v140, -inf
  %778 = vmax.xlane.f32.xlu0 %v777
  %v779 = vpop.xlane.xlu0 %778
  %v780 = vsel %vm398, %v141, -inf
  %781 = vmax.xlane.f32.xlu0 %v780
  %v782 = vpop.xlane.xlu0 %781
  %v783 = vsub.f32 %v14, %v401
  %v784 = vsub.f32 %v15, %v404
  %v785 = vsub.f32 %v16, %v407
  %v786 = vsub.f32 %v17, %v410
  %v787 = vsub.f32 %v18, %v413
  %v788 = vsub.f32 %v19, %v416
  %v789 = vsub.f32 %v20, %v419
  %v790 = vsub.f32 %v21, %v422
  %v791 = vsub.f32 %v22, %v425
  %v792 = vsub.f32 %v23, %v428
  %v793 = vsub.f32 %v24, %v431
  %v794 = vsub.f32 %v25, %v434
  %v795 = vsub.f32 %v26, %v437
  %v796 = vsub.f32 %v27, %v440
  %v797 = vsub.f32 %v28, %v443
  %v798 = vsub.f32 %v29, %v446
  %v799 = vsub.f32 %v30, %v449
  %v800 = vsub.f32 %v31, %v452
  %v801 = vsub.f32 %v32, %v455
  %v802 = vsub.f32 %v33, %v458
  %v803 = vsub.f32 %v34, %v461
  %v804 = vsub.f32 %v35, %v464
  %v805 = vsub.f32 %v36, %v467
  %v806 = vsub.f32 %v37, %v470
  %v807 = vsub.f32 %v38, %v473
  %v808 = vsub.f32 %v39, %v476
  %v809 = vsub.f32 %v40, %v479
  %v810 = vsub.f32 %v41, %v482
  %v811 = vsub.f32 %v42, %v485
  %v812 = vsub.f32 %v43, %v488
  %v813 = vsub.f32 %v44, %v491
  %v814 = vsub.f32 %v45, %v494
  %v815 = vsub.f32 %v46, %v497
  %v816 = vsub.f32 %v47, %v500
  %v817 = vsub.f32 %v48, %v503
  %v818 = vsub.f32 %v49, %v506
  %v819 = vsub.f32 %v50, %v509
  %v820 = vsub.f32 %v51, %v512
  %v821 = vsub.f32 %v52, %v515
  %v822 = vsub.f32 %v53, %v518
  %v823 = vsub.f32 %v54, %v521
  %v824 = vsub.f32 %v55, %v524
  %v825 = vsub.f32 %v56, %v527
  %v826 = vsub.f32 %v57, %v530
  %v827 = vsub.f32 %v58, %v533
  %v828 = vsub.f32 %v59, %v536
  %v829 = vsub.f32 %v60, %v539
  %v830 = vsub.f32 %v61, %v542
  %v831 = vsub.f32 %v62, %v545
  %v832 = vsub.f32 %v63, %v548
  %v833 = vsub.f32 %v64, %v551
  %v834 = vsub.f32 %v65, %v554
  %v835 = vsub.f32 %v66, %v557
  %v836 = vsub.f32 %v67, %v560
  %v837 = vsub.f32 %v68, %v563
  %v838 = vsub.f32 %v69, %v566
  %v839 = vsub.f32 %v70, %v569
  %v840 = vsub.f32 %v71, %v572
  %v841 = vsub.f32 %v72, %v575
  %v842 = vsub.f32 %v73, %v578
  %v843 = vsub.f32 %v74, %v581
  %v844 = vsub.f32 %v75, %v584
  %v845 = vsub.f32 %v76, %v587
  %v846 = vsub.f32 %v77, %v590
  %v847 = vsub.f32 %v78, %v593
  %v848 = vsub.f32 %v79, %v596
  %v849 = vsub.f32 %v80, %v599
  %v850 = vsub.f32 %v81, %v602
  %v851 = vsub.f32 %v82, %v605
  %v852 = vsub.f32 %v83, %v608
  %v853 = vsub.f32 %v84, %v611
  %v854 = vsub.f32 %v85, %v614
  %v855 = vsub.f32 %v86, %v617
  %v856 = vsub.f32 %v87, %v620
  %v857 = vsub.f32 %v88, %v623
  %v858 = vsub.f32 %v89, %v626
  %v859 = vsub.f32 %v90, %v629
  %v860 = vsub.f32 %v91, %v632
  %v861 = vsub.f32 %v92, %v635
  %v862 = vsub.f32 %v93, %v638
  %v863 = vsub.f32 %v94, %v641
  %v864 = vsub.f32 %v95, %v644
  %v865 = vsub.f32 %v96, %v647
  %v866 = vsub.f32 %v97, %v650
  %v867 = vsub.f32 %v98, %v653
  %v868 = vsub.f32 %v99, %v656
  %v869 = vsub.f32 %v100, %v659
  %v870 = vsub.f32 %v101, %v662
  %v871 = vsub.f32 %v102, %v665
  %v872 = vsub.f32 %v103, %v668
  %v873 = vsub.f32 %v104, %v671
  %v874 = vsub.f32 %v105, %v674
  %v875 = vsub.f32 %v106, %v677
  %v876 = vsub.f32 %v107, %v680
  %v877 = vsub.f32 %v108, %v683
  %v878 = vsub.f32 %v109, %v686
  %v879 = vsub.f32 %v110, %v689
  %v880 = vsub.f32 %v111, %v692
  %v881 = vsub.f32 %v112, %v695
  %v882 = vsub.f32 %v113, %v698
  %v883 = vsub.f32 %v114, %v701
  %v884 = vsub.f32 %v115, %v704
  %v885 = vsub.f32 %v116, %v707
  %v886 = vsub.f32 %v117, %v710
  %v887 = vsub.f32 %v118, %v713
  %v888 = vsub.f32 %v119, %v716
  %v889 = vsub.f32 %v120, %v719
  %v890 = vsub.f32 %v121, %v722
  %v891 = vsub.f32 %v122, %v725
  %v892 = vsub.f32 %v123, %v728
  %v893 = vsub.f32 %v124, %v731
  %v894 = vsub.f32 %v125, %v734
  %v895 = vsub.f32 %v126, %v737
  %v896 = vsub.f32 %v127, %v740
  %v897 = vsub.f32 %v128, %v743
  %v898 = vsub.f32 %v129, %v746
  %v899 = vsub.f32 %v130, %v749
  %v900 = vsub.f32 %v131, %v752
  %v901 = vsub.f32 %v132, %v755
  %v902 = vsub.f32 %v133, %v758
  %v903 = vsub.f32 %v134, %v761
  %v904 = vsub.f32 %v135, %v764
  %v905 = vsub.f32 %v136, %v767
  %v906 = vsub.f32 %v137, %v770
  %v907 = vsub.f32 %v138, %v773
  %v908 = vsub.f32 %v139, %v776
  %v909 = vsub.f32 %v140, %v779
  %v910 = vsub.f32 %v141, %v782
  %v911 = vmul.f32 %v783, 1.442695
  %v912 = vpow.pop %v911
  %v913 = vmul.f32 %v784, 1.442695
  %v914 = vpow.pop %v913
  %v915 = vmul.f32 %v785, 1.442695
  %v916 = vpow.pop %v915
  %v917 = vmul.f32 %v786, 1.442695
  %v918 = vpow.pop %v917
  %v919 = vmul.f32 %v787, 1.442695
  %v920 = vpow.pop %v919
  %v921 = vmul.f32 %v788, 1.442695
  %v922 = vpow.pop %v921
  %v923 = vmul.f32 %v789, 1.442695
  %v924 = vpow.pop %v923
  %v925 = vmul.f32 %v790, 1.442695
  %v926 = vpow.pop %v925
  %v927 = vmul.f32 %v791, 1.442695
  %v928 = vpow.pop %v927
  %v929 = vmul.f32 %v792, 1.442695
  %v930 = vpow.pop %v929
  %v931 = vmul.f32 %v793, 1.442695
  %v932 = vpow.pop %v931
  %v933 = vmul.f32 %v794, 1.442695
  %v934 = vpow.pop %v933
  %v935 = vmul.f32 %v795, 1.442695
  %v936 = vpow.pop %v935
  %v937 = vmul.f32 %v796, 1.442695
  %v938 = vpow.pop %v937
  %v939 = vmul.f32 %v797, 1.442695
  %v940 = vpow.pop %v939
  %v941 = vmul.f32 %v798, 1.442695
  %v942 = vpow.pop %v941
  %v943 = vmul.f32 %v799, 1.442695
  %v944 = vpow.pop %v943
  %v945 = vmul.f32 %v800, 1.442695
  %v946 = vpow.pop %v945
  %v947 = vmul.f32 %v801, 1.442695
  %v948 = vpow.pop %v947
  %v949 = vmul.f32 %v802, 1.442695
  %v950 = vpow.pop %v949
  %v951 = vmul.f32 %v803, 1.442695
  %v952 = vpow.pop %v951
  %v953 = vmul.f32 %v804, 1.442695
  %v954 = vpow.pop %v953
  %v955 = vmul.f32 %v805, 1.442695
  %v956 = vpow.pop %v955
  %v957 = vmul.f32 %v806, 1.442695
  %v958 = vpow.pop %v957
  %v959 = vmul.f32 %v807, 1.442695
  %v960 = vpow.pop %v959
  %v961 = vmul.f32 %v808, 1.442695
  %v962 = vpow.pop %v961
  %v963 = vmul.f32 %v809, 1.442695
  %v964 = vpow.pop %v963
  %v965 = vmul.f32 %v810, 1.442695
  %v966 = vpow.pop %v965
  %v967 = vmul.f32 %v811, 1.442695
  %v968 = vpow.pop %v967
  %v969 = vmul.f32 %v812, 1.442695
  %v970 = vpow.pop %v969
  %v971 = vmul.f32 %v813, 1.442695
  %v972 = vpow.pop %v971
  %v973 = vmul.f32 %v814, 1.442695
  %v974 = vpow.pop %v973
  %v975 = vmul.f32 %v815, 1.442695
  %v976 = vpow.pop %v975
  %v977 = vmul.f32 %v816, 1.442695
  %v978 = vpow.pop %v977
  %v979 = vmul.f32 %v817, 1.442695
  %v980 = vpow.pop %v979
  %v981 = vmul.f32 %v818, 1.442695
  %v982 = vpow.pop %v981
  %v983 = vmul.f32 %v819, 1.442695
  %v984 = vpow.pop %v983
  %v985 = vmul.f32 %v820, 1.442695
  %v986 = vpow.pop %v985
  %v987 = vmul.f32 %v821, 1.442695
  %v988 = vpow.pop %v987
  %v989 = vmul.f32 %v822, 1.442695
  %v990 = vpow.pop %v989
  %v991 = vmul.f32 %v823, 1.442695
  %v992 = vpow.pop %v991
  %v993 = vmul.f32 %v824, 1.442695
  %v994 = vpow.pop %v993
  %v995 = vmul.f32 %v825, 1.442695
  %v996 = vpow.pop %v995
  %v997 = vmul.f32 %v826, 1.442695
  %v998 = vpow.pop %v997
  %v999 = vmul.f32 %v827, 1.442695
  %v1000 = vpow.pop %v999
  %v1001 = vmul.f32 %v828, 1.442695
  %v1002 = vpow.pop %v1001
  %v1003 = vmul.f32 %v829, 1.442695
  %v1004 = vpow.pop %v1003
  %v1005 = vmul.f32 %v830, 1.442695
  %v1006 = vpow.pop %v1005
  %v1007 = vmul.f32 %v831, 1.442695
  %v1008 = vpow.pop %v1007
  %v1009 = vmul.f32 %v832, 1.442695
  %v1010 = vpow.pop %v1009
  %v1011 = vmul.f32 %v833, 1.442695
  %v1012 = vpow.pop %v1011
  %v1013 = vmul.f32 %v834, 1.442695
  %v1014 = vpow.pop %v1013
  %v1015 = vmul.f32 %v835, 1.442695
  %v1016 = vpow.pop %v1015
  %v1017 = vmul.f32 %v836, 1.442695
  %v1018 = vpow.pop %v1017
  %v1019 = vmul.f32 %v837, 1.442695
  %v1020 = vpow.pop %v1019
  %v1021 = vmul.f32 %v838, 1.442695
  %v1022 = vpow.pop %v1021
  %v1023 = vmul.f32 %v839, 1.442695
  %v1024 = vpow.pop %v1023
  %v1025 = vmul.f32 %v840, 1.442695
  %v1026 = vpow.pop %v1025
  %v1027 = vmul.f32 %v841, 1.442695
  %v1028 = vpow.pop %v1027
  %v1029 = vmul.f32 %v842, 1.442695
  %v1030 = vpow.pop %v1029
  %v1031 = vmul.f32 %v843, 1.442695
  %v1032 = vpow.pop %v1031
  %v1033 = vmul.f32 %v844, 1.442695
  %v1034 = vpow.pop %v1033
  %v1035 = vmul.f32 %v845, 1.442695
  %v1036 = vpow.pop %v1035
  %v1037 = vmul.f32 %v846, 1.442695
  %v1038 = vpow.pop %v1037
  %v1039 = vmul.f32 %v847, 1.442695
  %v1040 = vpow.pop %v1039
  %v1041 = vmul.f32 %v848, 1.442695
  %v1042 = vpow.pop %v1041
  %v1043 = vmul.f32 %v849, 1.442695
  %v1044 = vpow.pop %v1043
  %v1045 = vmul.f32 %v850, 1.442695
  %v1046 = vpow.pop %v1045
  %v1047 = vmul.f32 %v851, 1.442695
  %v1048 = vpow.pop %v1047
  %v1049 = vmul.f32 %v852, 1.442695
  %v1050 = vpow.pop %v1049
  %v1051 = vmul.f32 %v853, 1.442695
  %v1052 = vpow.pop %v1051
  %v1053 = vmul.f32 %v854, 1.442695
  %v1054 = vpow.pop %v1053
  %v1055 = vmul.f32 %v855, 1.442695
  %v1056 = vpow.pop %v1055
  %v1057 = vmul.f32 %v856, 1.442695
  %v1058 = vpow.pop %v1057
  %v1059 = vmul.f32 %v857, 1.442695
  %v1060 = vpow.pop %v1059
  %v1061 = vmul.f32 %v858, 1.442695
  %v1062 = vpow.pop %v1061
  %v1063 = vmul.f32 %v859, 1.442695
  %v1064 = vpow.pop %v1063
  %v1065 = vmul.f32 %v860, 1.442695
  %v1066 = vpow.pop %v1065
  %v1067 = vmul.f32 %v861, 1.442695
  %v1068 = vpow.pop %v1067
  %v1069 = vmul.f32 %v862, 1.442695
  %v1070 = vpow.pop %v1069
  %v1071 = vmul.f32 %v863, 1.442695
  %v1072 = vpow.pop %v1071
  %v1073 = vmul.f32 %v864, 1.442695
  %v1074 = vpow.pop %v1073
  %v1075 = vmul.f32 %v865, 1.442695
  %v1076 = vpow.pop %v1075
  %v1077 = vmul.f32 %v866, 1.442695
  %v1078 = vpow.pop %v1077
  %v1079 = vmul.f32 %v867, 1.442695
  %v1080 = vpow.pop %v1079
  %v1081 = vmul.f32 %v868, 1.442695
  %v1082 = vpow.pop %v1081
  %v1083 = vmul.f32 %v869, 1.442695
  %v1084 = vpow.pop %v1083
  %v1085 = vmul.f32 %v870, 1.442695
  %v1086 = vpow.pop %v1085
  %v1087 = vmul.f32 %v871, 1.442695
  %v1088 = vpow.pop %v1087
  %v1089 = vmul.f32 %v872, 1.442695
  %v1090 = vpow.pop %v1089
  %v1091 = vmul.f32 %v873, 1.442695
  %v1092 = vpow.pop %v1091
  %v1093 = vmul.f32 %v874, 1.442695
  %v1094 = vpow.pop %v1093
  %v1095 = vmul.f32 %v875, 1.442695
  %v1096 = vpow.pop %v1095
  %v1097 = vmul.f32 %v876, 1.442695
  %v1098 = vpow.pop %v1097
  %v1099 = vmul.f32 %v877, 1.442695
  %v1100 = vpow.pop %v1099
  %v1101 = vmul.f32 %v878, 1.442695
  %v1102 = vpow.pop %v1101
  %v1103 = vmul.f32 %v879, 1.442695
  %v1104 = vpow.pop %v1103
  %v1105 = vmul.f32 %v880, 1.442695
  %v1106 = vpow.pop %v1105
  %v1107 = vmul.f32 %v881, 1.442695
  %v1108 = vpow.pop %v1107
  %v1109 = vmul.f32 %v882, 1.442695
  %v1110 = vpow.pop %v1109
  %v1111 = vmul.f32 %v883, 1.442695
  %v1112 = vpow.pop %v1111
  %v1113 = vmul.f32 %v884, 1.442695
  %v1114 = vpow.pop %v1113
  %v1115 = vmul.f32 %v885, 1.442695
  %v1116 = vpow.pop %v1115
  %v1117 = vmul.f32 %v886, 1.442695
  %v1118 = vpow.pop %v1117
  %v1119 = vmul.f32 %v887, 1.442695
  %v1120 = vpow.pop %v1119
  %v1121 = vmul.f32 %v888, 1.442695
  %v1122 = vpow.pop %v1121
  %v1123 = vmul.f32 %v889, 1.442695
  %v1124 = vpow.pop %v1123
  %v1125 = vmul.f32 %v890, 1.442695
  %v1126 = vpow.pop %v1125
  %v1127 = vmul.f32 %v891, 1.442695
  %v1128 = vpow.pop %v1127
  %v1129 = vmul.f32 %v892, 1.442695
  %v1130 = vpow.pop %v1129
  %v1131 = vmul.f32 %v893, 1.442695
  %v1132 = vpow.pop %v1131
  %v1133 = vmul.f32 %v894, 1.442695
  %v1134 = vpow.pop %v1133
  %v1135 = vmul.f32 %v895, 1.442695
  %v1136 = vpow.pop %v1135
  %v1137 = vmul.f32 %v896, 1.442695
  %v1138 = vpow.pop %v1137
  %v1139 = vmul.f32 %v897, 1.442695
  %v1140 = vpow.pop %v1139
  %v1141 = vmul.f32 %v898, 1.442695
  %v1142 = vpow.pop %v1141
  %v1143 = vmul.f32 %v899, 1.442695
  %v1144 = vpow.pop %v1143
  %v1145 = vmul.f32 %v900, 1.442695
  %v1146 = vpow.pop %v1145
  %v1147 = vmul.f32 %v901, 1.442695
  %v1148 = vpow.pop %v1147
  %v1149 = vmul.f32 %v902, 1.442695
  %v1150 = vpow.pop %v1149
  %v1151 = vmul.f32 %v903, 1.442695
  %v1152 = vpow.pop %v1151
  %v1153 = vmul.f32 %v904, 1.442695
  %v1154 = vpow.pop %v1153
  %v1155 = vmul.f32 %v905, 1.442695
  %v1156 = vpow.pop %v1155
  %v1157 = vmul.f32 %v906, 1.442695
  %v1158 = vpow.pop %v1157
  %v1159 = vmul.f32 %v907, 1.442695
  %v1160 = vpow.pop %v1159
  %v1161 = vmul.f32 %v908, 1.442695
  %v1162 = vpow.pop %v1161
  %v1163 = vmul.f32 %v909, 1.442695
  %v1164 = vpow.pop %v1163
  %v1165 = vmul.f32 %v910, 1.442695
  %v1166 = vpow.pop %v1165
  %v1167 = vsel %vm398, %v912, 0.0
  %1168 = vadd.xlane.f32.xlu0 %v1167
  %v1169 = vpop.xlane.xlu0 %1168
  %v1170 = vsel %vm398, %v914, 0.0
  %1171 = vadd.xlane.f32.xlu0 %v1170
  %v1172 = vpop.xlane.xlu0 %1171
  %v1173 = vsel %vm398, %v916, 0.0
  %1174 = vadd.xlane.f32.xlu0 %v1173
  %v1175 = vpop.xlane.xlu0 %1174
  %v1176 = vsel %vm398, %v918, 0.0
  %1177 = vadd.xlane.f32.xlu0 %v1176
  %v1178 = vpop.xlane.xlu0 %1177
  %v1179 = vsel %vm398, %v920, 0.0
  %1180 = vadd.xlane.f32.xlu0 %v1179
  %v1181 = vpop.xlane.xlu0 %1180
  %v1182 = vsel %vm398, %v922, 0.0
  %1183 = vadd.xlane.f32.xlu0 %v1182
  %v1184 = vpop.xlane.xlu0 %1183
  %v1185 = vsel %vm398, %v924, 0.0
  %1186 = vadd.xlane.f32.xlu0 %v1185
  %v1187 = vpop.xlane.xlu0 %1186
  %v1188 = vsel %vm398, %v926, 0.0
  %1189 = vadd.xlane.f32.xlu0 %v1188
  %v1190 = vpop.xlane.xlu0 %1189
  %v1191 = vsel %vm398, %v928, 0.0
  %1192 = vadd.xlane.f32.xlu0 %v1191
  %v1193 = vpop.xlane.xlu0 %1192
  %v1194 = vsel %vm398, %v930, 0.0
  %1195 = vadd.xlane.f32.xlu0 %v1194
  %v1196 = vpop.xlane.xlu0 %1195
  %v1197 = vsel %vm398, %v932, 0.0
  %1198 = vadd.xlane.f32.xlu0 %v1197
  %v1199 = vpop.xlane.xlu0 %1198
  %v1200 = vsel %vm398, %v934, 0.0
  %1201 = vadd.xlane.f32.xlu0 %v1200
  %v1202 = vpop.xlane.xlu0 %1201
  %v1203 = vsel %vm398, %v936, 0.0
  %1204 = vadd.xlane.f32.xlu0 %v1203
  %v1205 = vpop.xlane.xlu0 %1204
  %v1206 = vsel %vm398, %v938, 0.0
  %1207 = vadd.xlane.f32.xlu0 %v1206
  %v1208 = vpop.xlane.xlu0 %1207
  %v1209 = vsel %vm398, %v940, 0.0
  %1210 = vadd.xlane.f32.xlu0 %v1209
  %v1211 = vpop.xlane.xlu0 %1210
  %v1212 = vsel %vm398, %v942, 0.0
  %1213 = vadd.xlane.f32.xlu0 %v1212
  %v1214 = vpop.xlane.xlu0 %1213
  %v1215 = vsel %vm398, %v944, 0.0
  %1216 = vadd.xlane.f32.xlu0 %v1215
  %v1217 = vpop.xlane.xlu0 %1216
  %v1218 = vsel %vm398, %v946, 0.0
  %1219 = vadd.xlane.f32.xlu0 %v1218
  %v1220 = vpop.xlane.xlu0 %1219
  %v1221 = vsel %vm398, %v948, 0.0
  %1222 = vadd.xlane.f32.xlu0 %v1221
  %v1223 = vpop.xlane.xlu0 %1222
  %v1224 = vsel %vm398, %v950, 0.0
  %1225 = vadd.xlane.f32.xlu0 %v1224
  %v1226 = vpop.xlane.xlu0 %1225
  %v1227 = vsel %vm398, %v952, 0.0
  %1228 = vadd.xlane.f32.xlu0 %v1227
  %v1229 = vpop.xlane.xlu0 %1228
  %v1230 = vsel %vm398, %v954, 0.0
  %1231 = vadd.xlane.f32.xlu0 %v1230
  %v1232 = vpop.xlane.xlu0 %1231
  %v1233 = vsel %vm398, %v956, 0.0
  %1234 = vadd.xlane.f32.xlu0 %v1233
  %v1235 = vpop.xlane.xlu0 %1234
  %v1236 = vsel %vm398, %v958, 0.0
  %1237 = vadd.xlane.f32.xlu0 %v1236
  %v1238 = vpop.xlane.xlu0 %1237
  %v1239 = vsel %vm398, %v960, 0.0
  %1240 = vadd.xlane.f32.xlu0 %v1239
  %v1241 = vpop.xlane.xlu0 %1240
  %v1242 = vsel %vm398, %v962, 0.0
  %1243 = vadd.xlane.f32.xlu0 %v1242
  %v1244 = vpop.xlane.xlu0 %1243
  %v1245 = vsel %vm398, %v964, 0.0
  %1246 = vadd.xlane.f32.xlu0 %v1245
  %v1247 = vpop.xlane.xlu0 %1246
  %v1248 = vsel %vm398, %v966, 0.0
  %1249 = vadd.xlane.f32.xlu0 %v1248
  %v1250 = vpop.xlane.xlu0 %1249
  %v1251 = vsel %vm398, %v968, 0.0
  %1252 = vadd.xlane.f32.xlu0 %v1251
  %v1253 = vpop.xlane.xlu0 %1252
  %v1254 = vsel %vm398, %v970, 0.0
  %1255 = vadd.xlane.f32.xlu0 %v1254
  %v1256 = vpop.xlane.xlu0 %1255
  %v1257 = vsel %vm398, %v972, 0.0
  %1258 = vadd.xlane.f32.xlu0 %v1257
  %v1259 = vpop.xlane.xlu0 %1258
  %v1260 = vsel %vm398, %v974, 0.0
  %1261 = vadd.xlane.f32.xlu0 %v1260
  %v1262 = vpop.xlane.xlu0 %1261
  %v1263 = vsel %vm398, %v976, 0.0
  %1264 = vadd.xlane.f32.xlu0 %v1263
  %v1265 = vpop.xlane.xlu0 %1264
  %v1266 = vsel %vm398, %v978, 0.0
  %1267 = vadd.xlane.f32.xlu0 %v1266
  %v1268 = vpop.xlane.xlu0 %1267
  %v1269 = vsel %vm398, %v980, 0.0
  %1270 = vadd.xlane.f32.xlu0 %v1269
  %v1271 = vpop.xlane.xlu0 %1270
  %v1272 = vsel %vm398, %v982, 0.0
  %1273 = vadd.xlane.f32.xlu0 %v1272
  %v1274 = vpop.xlane.xlu0 %1273
  %v1275 = vsel %vm398, %v984, 0.0
  %1276 = vadd.xlane.f32.xlu0 %v1275
  %v1277 = vpop.xlane.xlu0 %1276
  %v1278 = vsel %vm398, %v986, 0.0
  %1279 = vadd.xlane.f32.xlu0 %v1278
  %v1280 = vpop.xlane.xlu0 %1279
  %v1281 = vsel %vm398, %v988, 0.0
  %1282 = vadd.xlane.f32.xlu0 %v1281
  %v1283 = vpop.xlane.xlu0 %1282
  %v1284 = vsel %vm398, %v990, 0.0
  %1285 = vadd.xlane.f32.xlu0 %v1284
  %v1286 = vpop.xlane.xlu0 %1285
  %v1287 = vsel %vm398, %v992, 0.0
  %1288 = vadd.xlane.f32.xlu0 %v1287
  %v1289 = vpop.xlane.xlu0 %1288
  %v1290 = vsel %vm398, %v994, 0.0
  %1291 = vadd.xlane.f32.xlu0 %v1290
  %v1292 = vpop.xlane.xlu0 %1291
  %v1293 = vsel %vm398, %v996, 0.0
  %1294 = vadd.xlane.f32.xlu0 %v1293
  %v1295 = vpop.xlane.xlu0 %1294
  %v1296 = vsel %vm398, %v998, 0.0
  %1297 = vadd.xlane.f32.xlu0 %v1296
  %v1298 = vpop.xlane.xlu0 %1297
  %v1299 = vsel %vm398, %v1000, 0.0
  %1300 = vadd.xlane.f32.xlu0 %v1299
  %v1301 = vpop.xlane.xlu0 %1300
  %v1302 = vsel %vm398, %v1002, 0.0
  %1303 = vadd.xlane.f32.xlu0 %v1302
  %v1304 = vpop.xlane.xlu0 %1303
  %v1305 = vsel %vm398, %v1004, 0.0
  %1306 = vadd.xlane.f32.xlu0 %v1305
  %v1307 = vpop.xlane.xlu0 %1306
  %v1308 = vsel %vm398, %v1006, 0.0
  %1309 = vadd.xlane.f32.xlu0 %v1308
  %v1310 = vpop.xlane.xlu0 %1309
  %v1311 = vsel %vm398, %v1008, 0.0
  %1312 = vadd.xlane.f32.xlu0 %v1311
  %v1313 = vpop.xlane.xlu0 %1312
  %v1314 = vsel %vm398, %v1010, 0.0
  %1315 = vadd.xlane.f32.xlu0 %v1314
  %v1316 = vpop.xlane.xlu0 %1315
  %v1317 = vsel %vm398, %v1012, 0.0
  %1318 = vadd.xlane.f32.xlu0 %v1317
  %v1319 = vpop.xlane.xlu0 %1318
  %v1320 = vsel %vm398, %v1014, 0.0
  %1321 = vadd.xlane.f32.xlu0 %v1320
  %v1322 = vpop.xlane.xlu0 %1321
  %v1323 = vsel %vm398, %v1016, 0.0
  %1324 = vadd.xlane.f32.xlu0 %v1323
  %v1325 = vpop.xlane.xlu0 %1324
  %v1326 = vsel %vm398, %v1018, 0.0
  %1327 = vadd.xlane.f32.xlu0 %v1326
  %v1328 = vpop.xlane.xlu0 %1327
  %v1329 = vsel %vm398, %v1020, 0.0
  %1330 = vadd.xlane.f32.xlu0 %v1329
  %v1331 = vpop.xlane.xlu0 %1330
  %v1332 = vsel %vm398, %v1022, 0.0
  %1333 = vadd.xlane.f32.xlu0 %v1332
  %v1334 = vpop.xlane.xlu0 %1333
  %v1335 = vsel %vm398, %v1024, 0.0
  %1336 = vadd.xlane.f32.xlu0 %v1335
  %v1337 = vpop.xlane.xlu0 %1336
  %v1338 = vsel %vm398, %v1026, 0.0
  %1339 = vadd.xlane.f32.xlu0 %v1338
  %v1340 = vpop.xlane.xlu0 %1339
  %v1341 = vsel %vm398, %v1028, 0.0
  %1342 = vadd.xlane.f32.xlu0 %v1341
  %v1343 = vpop.xlane.xlu0 %1342
  %v1344 = vsel %vm398, %v1030, 0.0
  %1345 = vadd.xlane.f32.xlu0 %v1344
  %v1346 = vpop.xlane.xlu0 %1345
  %v1347 = vsel %vm398, %v1032, 0.0
  %1348 = vadd.xlane.f32.xlu0 %v1347
  %v1349 = vpop.xlane.xlu0 %1348
  %v1350 = vsel %vm398, %v1034, 0.0
  %1351 = vadd.xlane.f32.xlu0 %v1350
  %v1352 = vpop.xlane.xlu0 %1351
  %v1353 = vsel %vm398, %v1036, 0.0
  %1354 = vadd.xlane.f32.xlu0 %v1353
  %v1355 = vpop.xlane.xlu0 %1354
  %v1356 = vsel %vm398, %v1038, 0.0
  %1357 = vadd.xlane.f32.xlu0 %v1356
  %v1358 = vpop.xlane.xlu0 %1357
  %v1359 = vsel %vm398, %v1040, 0.0
  %1360 = vadd.xlane.f32.xlu0 %v1359
  %v1361 = vpop.xlane.xlu0 %1360
  %v1362 = vsel %vm398, %v1042, 0.0
  %1363 = vadd.xlane.f32.xlu0 %v1362
  %v1364 = vpop.xlane.xlu0 %1363
  %v1365 = vsel %vm398, %v1044, 0.0
  %1366 = vadd.xlane.f32.xlu0 %v1365
  %v1367 = vpop.xlane.xlu0 %1366
  %v1368 = vsel %vm398, %v1046, 0.0
  %1369 = vadd.xlane.f32.xlu0 %v1368
  %v1370 = vpop.xlane.xlu0 %1369
  %v1371 = vsel %vm398, %v1048, 0.0
  %1372 = vadd.xlane.f32.xlu0 %v1371
  %v1373 = vpop.xlane.xlu0 %1372
  %v1374 = vsel %vm398, %v1050, 0.0
  %1375 = vadd.xlane.f32.xlu0 %v1374
  %v1376 = vpop.xlane.xlu0 %1375
  %v1377 = vsel %vm398, %v1052, 0.0
  %1378 = vadd.xlane.f32.xlu0 %v1377
  %v1379 = vpop.xlane.xlu0 %1378
  %v1380 = vsel %vm398, %v1054, 0.0
  %1381 = vadd.xlane.f32.xlu0 %v1380
  %v1382 = vpop.xlane.xlu0 %1381
  %v1383 = vsel %vm398, %v1056, 0.0
  %1384 = vadd.xlane.f32.xlu0 %v1383
  %v1385 = vpop.xlane.xlu0 %1384
  %v1386 = vsel %vm398, %v1058, 0.0
  %1387 = vadd.xlane.f32.xlu0 %v1386
  %v1388 = vpop.xlane.xlu0 %1387
  %v1389 = vsel %vm398, %v1060, 0.0
  %1390 = vadd.xlane.f32.xlu0 %v1389
  %v1391 = vpop.xlane.xlu0 %1390
  %v1392 = vsel %vm398, %v1062, 0.0
  %1393 = vadd.xlane.f32.xlu0 %v1392
  %v1394 = vpop.xlane.xlu0 %1393
  %v1395 = vsel %vm398, %v1064, 0.0
  %1396 = vadd.xlane.f32.xlu0 %v1395
  %v1397 = vpop.xlane.xlu0 %1396
  %v1398 = vsel %vm398, %v1066, 0.0
  %1399 = vadd.xlane.f32.xlu0 %v1398
  %v1400 = vpop.xlane.xlu0 %1399
  %v1401 = vsel %vm398, %v1068, 0.0
  %1402 = vadd.xlane.f32.xlu0 %v1401
  %v1403 = vpop.xlane.xlu0 %1402
  %v1404 = vsel %vm398, %v1070, 0.0
  %1405 = vadd.xlane.f32.xlu0 %v1404
  %v1406 = vpop.xlane.xlu0 %1405
  %v1407 = vsel %vm398, %v1072, 0.0
  %1408 = vadd.xlane.f32.xlu0 %v1407
  %v1409 = vpop.xlane.xlu0 %1408
  %v1410 = vsel %vm398, %v1074, 0.0
  %1411 = vadd.xlane.f32.xlu0 %v1410
  %v1412 = vpop.xlane.xlu0 %1411
  %v1413 = vsel %vm398, %v1076, 0.0
  %1414 = vadd.xlane.f32.xlu0 %v1413
  %v1415 = vpop.xlane.xlu0 %1414
  %v1416 = vsel %vm398, %v1078, 0.0
  %1417 = vadd.xlane.f32.xlu0 %v1416
  %v1418 = vpop.xlane.xlu0 %1417
  %v1419 = vsel %vm398, %v1080, 0.0
  %1420 = vadd.xlane.f32.xlu0 %v1419
  %v1421 = vpop.xlane.xlu0 %1420
  %v1422 = vsel %vm398, %v1082, 0.0
  %1423 = vadd.xlane.f32.xlu0 %v1422
  %v1424 = vpop.xlane.xlu0 %1423
  %v1425 = vsel %vm398, %v1084, 0.0
  %1426 = vadd.xlane.f32.xlu0 %v1425
  %v1427 = vpop.xlane.xlu0 %1426
  %v1428 = vsel %vm398, %v1086, 0.0
  %1429 = vadd.xlane.f32.xlu0 %v1428
  %v1430 = vpop.xlane.xlu0 %1429
  %v1431 = vsel %vm398, %v1088, 0.0
  %1432 = vadd.xlane.f32.xlu0 %v1431
  %v1433 = vpop.xlane.xlu0 %1432
  %v1434 = vsel %vm398, %v1090, 0.0
  %1435 = vadd.xlane.f32.xlu0 %v1434
  %v1436 = vpop.xlane.xlu0 %1435
  %v1437 = vsel %vm398, %v1092, 0.0
  %1438 = vadd.xlane.f32.xlu0 %v1437
  %v1439 = vpop.xlane.xlu0 %1438
  %v1440 = vsel %vm398, %v1094, 0.0
  %1441 = vadd.xlane.f32.xlu0 %v1440
  %v1442 = vpop.xlane.xlu0 %1441
  %v1443 = vsel %vm398, %v1096, 0.0
  %1444 = vadd.xlane.f32.xlu0 %v1443
  %v1445 = vpop.xlane.xlu0 %1444
  %v1446 = vsel %vm398, %v1098, 0.0
  %1447 = vadd.xlane.f32.xlu0 %v1446
  %v1448 = vpop.xlane.xlu0 %1447
  %v1449 = vsel %vm398, %v1100, 0.0
  %1450 = vadd.xlane.f32.xlu0 %v1449
  %v1451 = vpop.xlane.xlu0 %1450
  %v1452 = vsel %vm398, %v1102, 0.0
  %1453 = vadd.xlane.f32.xlu0 %v1452
  %v1454 = vpop.xlane.xlu0 %1453
  %v1455 = vsel %vm398, %v1104, 0.0
  %1456 = vadd.xlane.f32.xlu0 %v1455
  %v1457 = vpop.xlane.xlu0 %1456
  %v1458 = vsel %vm398, %v1106, 0.0
  %1459 = vadd.xlane.f32.xlu0 %v1458
  %v1460 = vpop.xlane.xlu0 %1459
  %v1461 = vsel %vm398, %v1108, 0.0
  %1462 = vadd.xlane.f32.xlu0 %v1461
  %v1463 = vpop.xlane.xlu0 %1462
  %v1464 = vsel %vm398, %v1110, 0.0
  %1465 = vadd.xlane.f32.xlu0 %v1464
  %v1466 = vpop.xlane.xlu0 %1465
  %v1467 = vsel %vm398, %v1112, 0.0
  %1468 = vadd.xlane.f32.xlu0 %v1467
  %v1469 = vpop.xlane.xlu0 %1468
  %v1470 = vsel %vm398, %v1114, 0.0
  %1471 = vadd.xlane.f32.xlu0 %v1470
  %v1472 = vpop.xlane.xlu0 %1471
  %v1473 = vsel %vm398, %v1116, 0.0
  %1474 = vadd.xlane.f32.xlu0 %v1473
  %v1475 = vpop.xlane.xlu0 %1474
  %v1476 = vsel %vm398, %v1118, 0.0
  %1477 = vadd.xlane.f32.xlu0 %v1476
  %v1478 = vpop.xlane.xlu0 %1477
  %v1479 = vsel %vm398, %v1120, 0.0
  %1480 = vadd.xlane.f32.xlu0 %v1479
  %v1481 = vpop.xlane.xlu0 %1480
  %v1482 = vsel %vm398, %v1122, 0.0
  %1483 = vadd.xlane.f32.xlu0 %v1482
  %v1484 = vpop.xlane.xlu0 %1483
  %v1485 = vsel %vm398, %v1124, 0.0
  %1486 = vadd.xlane.f32.xlu0 %v1485
  %v1487 = vpop.xlane.xlu0 %1486
  %v1488 = vsel %vm398, %v1126, 0.0
  %1489 = vadd.xlane.f32.xlu0 %v1488
  %v1490 = vpop.xlane.xlu0 %1489
  %v1491 = vsel %vm398, %v1128, 0.0
  %1492 = vadd.xlane.f32.xlu0 %v1491
  %v1493 = vpop.xlane.xlu0 %1492
  %v1494 = vsel %vm398, %v1130, 0.0
  %1495 = vadd.xlane.f32.xlu0 %v1494
  %v1496 = vpop.xlane.xlu0 %1495
  %v1497 = vsel %vm398, %v1132, 0.0
  %1498 = vadd.xlane.f32.xlu0 %v1497
  %v1499 = vpop.xlane.xlu0 %1498
  %v1500 = vsel %vm398, %v1134, 0.0
  %1501 = vadd.xlane.f32.xlu0 %v1500
  %v1502 = vpop.xlane.xlu0 %1501
  %v1503 = vsel %vm398, %v1136, 0.0
  %1504 = vadd.xlane.f32.xlu0 %v1503
  %v1505 = vpop.xlane.xlu0 %1504
  %v1506 = vsel %vm398, %v1138, 0.0
  %1507 = vadd.xlane.f32.xlu0 %v1506
  %v1508 = vpop.xlane.xlu0 %1507
  %v1509 = vsel %vm398, %v1140, 0.0
  %1510 = vadd.xlane.f32.xlu0 %v1509
  %v1511 = vpop.xlane.xlu0 %1510
  %v1512 = vsel %vm398, %v1142, 0.0
  %1513 = vadd.xlane.f32.xlu0 %v1512
  %v1514 = vpop.xlane.xlu0 %1513
  %v1515 = vsel %vm398, %v1144, 0.0
  %1516 = vadd.xlane.f32.xlu0 %v1515
  %v1517 = vpop.xlane.xlu0 %1516
  %v1518 = vsel %vm398, %v1146, 0.0
  %1519 = vadd.xlane.f32.xlu0 %v1518
  %v1520 = vpop.xlane.xlu0 %1519
  %v1521 = vsel %vm398, %v1148, 0.0
  %1522 = vadd.xlane.f32.xlu0 %v1521
  %v1523 = vpop.xlane.xlu0 %1522
  %v1524 = vsel %vm398, %v1150, 0.0
  %1525 = vadd.xlane.f32.xlu0 %v1524
  %v1526 = vpop.xlane.xlu0 %1525
  %v1527 = vsel %vm398, %v1152, 0.0
  %1528 = vadd.xlane.f32.xlu0 %v1527
  %v1529 = vpop.xlane.xlu0 %1528
  %v1530 = vsel %vm398, %v1154, 0.0
  %1531 = vadd.xlane.f32.xlu0 %v1530
  %v1532 = vpop.xlane.xlu0 %1531
  %v1533 = vsel %vm398, %v1156, 0.0
  %1534 = vadd.xlane.f32.xlu0 %v1533
  %v1535 = vpop.xlane.xlu0 %1534
  %v1536 = vsel %vm398, %v1158, 0.0
  %1537 = vadd.xlane.f32.xlu0 %v1536
  %v1538 = vpop.xlane.xlu0 %1537
  %v1539 = vsel %vm398, %v1160, 0.0
  %1540 = vadd.xlane.f32.xlu0 %v1539
  %v1541 = vpop.xlane.xlu0 %1540
  %v1542 = vsel %vm398, %v1162, 0.0
  %1543 = vadd.xlane.f32.xlu0 %v1542
  %v1544 = vpop.xlane.xlu0 %1543
  %v1545 = vsel %vm398, %v1164, 0.0
  %1546 = vadd.xlane.f32.xlu0 %v1545
  %v1547 = vpop.xlane.xlu0 %1546
  %v1548 = vsel %vm398, %v1166, 0.0
  %1549 = vadd.xlane.f32.xlu0 %v1548
  %v1550 = vpop.xlane.xlu0 %1549
  %v1551 = vlog2.pop %v1169
  %v1552 = vmul.f32 %v1551, 0.6931472
  %v1553 = vlog2.pop %v1172
  %v1554 = vmul.f32 %v1553, 0.6931472
  %v1555 = vlog2.pop %v1175
  %v1556 = vmul.f32 %v1555, 0.6931472
  %v1557 = vlog2.pop %v1178
  %v1558 = vmul.f32 %v1557, 0.6931472
  %v1559 = vlog2.pop %v1181
  %v1560 = vmul.f32 %v1559, 0.6931472
  %v1561 = vlog2.pop %v1184
  %v1562 = vmul.f32 %v1561, 0.6931472
  %v1563 = vlog2.pop %v1187
  %v1564 = vmul.f32 %v1563, 0.6931472
  %v1565 = vlog2.pop %v1190
  %v1566 = vmul.f32 %v1565, 0.6931472
  %v1567 = vlog2.pop %v1193
  %v1568 = vmul.f32 %v1567, 0.6931472
  %v1569 = vlog2.pop %v1196
  %v1570 = vmul.f32 %v1569, 0.6931472
  %v1571 = vlog2.pop %v1199
  %v1572 = vmul.f32 %v1571, 0.6931472
  %v1573 = vlog2.pop %v1202
  %v1574 = vmul.f32 %v1573, 0.6931472
  %v1575 = vlog2.pop %v1205
  %v1576 = vmul.f32 %v1575, 0.6931472
  %v1577 = vlog2.pop %v1208
  %v1578 = vmul.f32 %v1577, 0.6931472
  %v1579 = vlog2.pop %v1211
  %v1580 = vmul.f32 %v1579, 0.6931472
  %v1581 = vlog2.pop %v1214
  %v1582 = vmul.f32 %v1581, 0.6931472
  %v1583 = vlog2.pop %v1217
  %v1584 = vmul.f32 %v1583, 0.6931472
  %v1585 = vlog2.pop %v1220
  %v1586 = vmul.f32 %v1585, 0.6931472
  %v1587 = vlog2.pop %v1223
  %v1588 = vmul.f32 %v1587, 0.6931472
  %v1589 = vlog2.pop %v1226
  %v1590 = vmul.f32 %v1589, 0.6931472
  %v1591 = vlog2.pop %v1229
  %v1592 = vmul.f32 %v1591, 0.6931472
  %v1593 = vlog2.pop %v1232
  %v1594 = vmul.f32 %v1593, 0.6931472
  %v1595 = vlog2.pop %v1235
  %v1596 = vmul.f32 %v1595, 0.6931472
  %v1597 = vlog2.pop %v1238
  %v1598 = vmul.f32 %v1597, 0.6931472
  %v1599 = vlog2.pop %v1241
  %v1600 = vmul.f32 %v1599, 0.6931472
  %v1601 = vlog2.pop %v1244
  %v1602 = vmul.f32 %v1601, 0.6931472
  %v1603 = vlog2.pop %v1247
  %v1604 = vmul.f32 %v1603, 0.6931472
  %v1605 = vlog2.pop %v1250
  %v1606 = vmul.f32 %v1605, 0.6931472
  %v1607 = vlog2.pop %v1253
  %v1608 = vmul.f32 %v1607, 0.6931472
  %v1609 = vlog2.pop %v1256
  %v1610 = vmul.f32 %v1609, 0.6931472
  %v1611 = vlog2.pop %v1259
  %v1612 = vmul.f32 %v1611, 0.6931472
  %v1613 = vlog2.pop %v1262
  %v1614 = vmul.f32 %v1613, 0.6931472
  %v1615 = vlog2.pop %v1265
  %v1616 = vmul.f32 %v1615, 0.6931472
  %v1617 = vlog2.pop %v1268
  %v1618 = vmul.f32 %v1617, 0.6931472
  %v1619 = vlog2.pop %v1271
  %v1620 = vmul.f32 %v1619, 0.6931472
  %v1621 = vlog2.pop %v1274
  %v1622 = vmul.f32 %v1621, 0.6931472
  %v1623 = vlog2.pop %v1277
  %v1624 = vmul.f32 %v1623, 0.6931472
  %v1625 = vlog2.pop %v1280
  %v1626 = vmul.f32 %v1625, 0.6931472
  %v1627 = vlog2.pop %v1283
  %v1628 = vmul.f32 %v1627, 0.6931472
  %v1629 = vlog2.pop %v1286
  %v1630 = vmul.f32 %v1629, 0.6931472
  %v1631 = vlog2.pop %v1289
  %v1632 = vmul.f32 %v1631, 0.6931472
  %v1633 = vlog2.pop %v1292
  %v1634 = vmul.f32 %v1633, 0.6931472
  %v1635 = vlog2.pop %v1295
  %v1636 = vmul.f32 %v1635, 0.6931472
  %v1637 = vlog2.pop %v1298
  %v1638 = vmul.f32 %v1637, 0.6931472
  %v1639 = vlog2.pop %v1301
  %v1640 = vmul.f32 %v1639, 0.6931472
  %v1641 = vlog2.pop %v1304
  %v1642 = vmul.f32 %v1641, 0.6931472
  %v1643 = vlog2.pop %v1307
  %v1644 = vmul.f32 %v1643, 0.6931472
  %v1645 = vlog2.pop %v1310
  %v1646 = vmul.f32 %v1645, 0.6931472
  %v1647 = vlog2.pop %v1313
  %v1648 = vmul.f32 %v1647, 0.6931472
  %v1649 = vlog2.pop %v1316
  %v1650 = vmul.f32 %v1649, 0.6931472
  %v1651 = vlog2.pop %v1319
  %v1652 = vmul.f32 %v1651, 0.6931472
  %v1653 = vlog2.pop %v1322
  %v1654 = vmul.f32 %v1653, 0.6931472
  %v1655 = vlog2.pop %v1325
  %v1656 = vmul.f32 %v1655, 0.6931472
  %v1657 = vlog2.pop %v1328
  %v1658 = vmul.f32 %v1657, 0.6931472
  %v1659 = vlog2.pop %v1331
  %v1660 = vmul.f32 %v1659, 0.6931472
  %v1661 = vlog2.pop %v1334
  %v1662 = vmul.f32 %v1661, 0.6931472
  %v1663 = vlog2.pop %v1337
  %v1664 = vmul.f32 %v1663, 0.6931472
  %v1665 = vlog2.pop %v1340
  %v1666 = vmul.f32 %v1665, 0.6931472
  %v1667 = vlog2.pop %v1343
  %v1668 = vmul.f32 %v1667, 0.6931472
  %v1669 = vlog2.pop %v1346
  %v1670 = vmul.f32 %v1669, 0.6931472
  %v1671 = vlog2.pop %v1349
  %v1672 = vmul.f32 %v1671, 0.6931472
  %v1673 = vlog2.pop %v1352
  %v1674 = vmul.f32 %v1673, 0.6931472
  %v1675 = vlog2.pop %v1355
  %v1676 = vmul.f32 %v1675, 0.6931472
  %v1677 = vlog2.pop %v1358
  %v1678 = vmul.f32 %v1677, 0.6931472
  %v1679 = vlog2.pop %v1361
  %v1680 = vmul.f32 %v1679, 0.6931472
  %v1681 = vlog2.pop %v1364
  %v1682 = vmul.f32 %v1681, 0.6931472
  %v1683 = vlog2.pop %v1367
  %v1684 = vmul.f32 %v1683, 0.6931472
  %v1685 = vlog2.pop %v1370
  %v1686 = vmul.f32 %v1685, 0.6931472
  %v1687 = vlog2.pop %v1373
  %v1688 = vmul.f32 %v1687, 0.6931472
  %v1689 = vlog2.pop %v1376
  %v1690 = vmul.f32 %v1689, 0.6931472
  %v1691 = vlog2.pop %v1379
  %v1692 = vmul.f32 %v1691, 0.6931472
  %v1693 = vlog2.pop %v1382
  %v1694 = vmul.f32 %v1693, 0.6931472
  %v1695 = vlog2.pop %v1385
  %v1696 = vmul.f32 %v1695, 0.6931472
  %v1697 = vlog2.pop %v1388
  %v1698 = vmul.f32 %v1697, 0.6931472
  %v1699 = vlog2.pop %v1391
  %v1700 = vmul.f32 %v1699, 0.6931472
  %v1701 = vlog2.pop %v1394
  %v1702 = vmul.f32 %v1701, 0.6931472
  %v1703 = vlog2.pop %v1397
  %v1704 = vmul.f32 %v1703, 0.6931472
  %v1705 = vlog2.pop %v1400
  %v1706 = vmul.f32 %v1705, 0.6931472
  %v1707 = vlog2.pop %v1403
  %v1708 = vmul.f32 %v1707, 0.6931472
  %v1709 = vlog2.pop %v1406
  %v1710 = vmul.f32 %v1709, 0.6931472
  %v1711 = vlog2.pop %v1409
  %v1712 = vmul.f32 %v1711, 0.6931472
  %v1713 = vlog2.pop %v1412
  %v1714 = vmul.f32 %v1713, 0.6931472
  %v1715 = vlog2.pop %v1415
  %v1716 = vmul.f32 %v1715, 0.6931472
  %v1717 = vlog2.pop %v1418
  %v1718 = vmul.f32 %v1717, 0.6931472
  %v1719 = vlog2.pop %v1421
  %v1720 = vmul.f32 %v1719, 0.6931472
  %v1721 = vlog2.pop %v1424
  %v1722 = vmul.f32 %v1721, 0.6931472
  %v1723 = vlog2.pop %v1427
  %v1724 = vmul.f32 %v1723, 0.6931472
  %v1725 = vlog2.pop %v1430
  %v1726 = vmul.f32 %v1725, 0.6931472
  %v1727 = vlog2.pop %v1433
  %v1728 = vmul.f32 %v1727, 0.6931472
  %v1729 = vlog2.pop %v1436
  %v1730 = vmul.f32 %v1729, 0.6931472
  %v1731 = vlog2.pop %v1439
  %v1732 = vmul.f32 %v1731, 0.6931472
  %v1733 = vlog2.pop %v1442
  %v1734 = vmul.f32 %v1733, 0.6931472
  %v1735 = vlog2.pop %v1445
  %v1736 = vmul.f32 %v1735, 0.6931472
  %v1737 = vlog2.pop %v1448
  %v1738 = vmul.f32 %v1737, 0.6931472
  %v1739 = vlog2.pop %v1451
  %v1740 = vmul.f32 %v1739, 0.6931472
  %v1741 = vlog2.pop %v1454
  %v1742 = vmul.f32 %v1741, 0.6931472
  %v1743 = vlog2.pop %v1457
  %v1744 = vmul.f32 %v1743, 0.6931472
  %v1745 = vlog2.pop %v1460
  %v1746 = vmul.f32 %v1745, 0.6931472
  %v1747 = vlog2.pop %v1463
  %v1748 = vmul.f32 %v1747, 0.6931472
  %v1749 = vlog2.pop %v1466
  %v1750 = vmul.f32 %v1749, 0.6931472
  %v1751 = vlog2.pop %v1469
  %v1752 = vmul.f32 %v1751, 0.6931472
  %v1753 = vlog2.pop %v1472
  %v1754 = vmul.f32 %v1753, 0.6931472
  %v1755 = vlog2.pop %v1475
  %v1756 = vmul.f32 %v1755, 0.6931472
  %v1757 = vlog2.pop %v1478
  %v1758 = vmul.f32 %v1757, 0.6931472
  %v1759 = vlog2.pop %v1481
  %v1760 = vmul.f32 %v1759, 0.6931472
  %v1761 = vlog2.pop %v1484
  %v1762 = vmul.f32 %v1761, 0.6931472
  %v1763 = vlog2.pop %v1487
  %v1764 = vmul.f32 %v1763, 0.6931472
  %v1765 = vlog2.pop %v1490
  %v1766 = vmul.f32 %v1765, 0.6931472
  %v1767 = vlog2.pop %v1493
  %v1768 = vmul.f32 %v1767, 0.6931472
  %v1769 = vlog2.pop %v1496
  %v1770 = vmul.f32 %v1769, 0.6931472
  %v1771 = vlog2.pop %v1499
  %v1772 = vmul.f32 %v1771, 0.6931472
  %v1773 = vlog2.pop %v1502
  %v1774 = vmul.f32 %v1773, 0.6931472
  %v1775 = vlog2.pop %v1505
  %v1776 = vmul.f32 %v1775, 0.6931472
  %v1777 = vlog2.pop %v1508
  %v1778 = vmul.f32 %v1777, 0.6931472
  %v1779 = vlog2.pop %v1511
  %v1780 = vmul.f32 %v1779, 0.6931472
  %v1781 = vlog2.pop %v1514
  %v1782 = vmul.f32 %v1781, 0.6931472
  %v1783 = vlog2.pop %v1517
  %v1784 = vmul.f32 %v1783, 0.6931472
  %v1785 = vlog2.pop %v1520
  %v1786 = vmul.f32 %v1785, 0.6931472
  %v1787 = vlog2.pop %v1523
  %v1788 = vmul.f32 %v1787, 0.6931472
  %v1789 = vlog2.pop %v1526
  %v1790 = vmul.f32 %v1789, 0.6931472
  %v1791 = vlog2.pop %v1529
  %v1792 = vmul.f32 %v1791, 0.6931472
  %v1793 = vlog2.pop %v1532
  %v1794 = vmul.f32 %v1793, 0.6931472
  %v1795 = vlog2.pop %v1535
  %v1796 = vmul.f32 %v1795, 0.6931472
  %v1797 = vlog2.pop %v1538
  %v1798 = vmul.f32 %v1797, 0.6931472
  %v1799 = vlog2.pop %v1541
  %v1800 = vmul.f32 %v1799, 0.6931472
  %v1801 = vlog2.pop %v1544
  %v1802 = vmul.f32 %v1801, 0.6931472
  %v1803 = vlog2.pop %v1547
  %v1804 = vmul.f32 %v1803, 0.6931472
  %v1805 = vlog2.pop %v1550
  %v1806 = vmul.f32 %v1805, 0.6931472
  %v1807 = vlaneseq
  %v1808 = vand.u32 %v1807, 127
  %1809 = vset.pattern.permute.xlu0 0
  %1810 = vperm.xlu0 %1809, %v142
  %v1811 = vpop.permute.xlu0 %1810
  %1812 = vset.pattern.permute.xlu0 0
  %1813 = vperm.xlu0 %1812, %v143
  %v1814 = vpop.permute.xlu0 %1813
  %1815 = vset.pattern.permute.xlu0 0
  %1816 = vperm.xlu0 %1815, %v144
  %v1817 = vpop.permute.xlu0 %1816
  %1818 = vset.pattern.permute.xlu0 0
  %1819 = vperm.xlu0 %1818, %v145
  %v1820 = vpop.permute.xlu0 %1819
  %1821 = vset.pattern.permute.xlu0 0
  %1822 = vperm.xlu0 %1821, %v146
  %v1823 = vpop.permute.xlu0 %1822
  %1824 = vset.pattern.permute.xlu0 0
  %1825 = vperm.xlu0 %1824, %v147
  %v1826 = vpop.permute.xlu0 %1825
  %1827 = vset.pattern.permute.xlu0 0
  %1828 = vperm.xlu0 %1827, %v148
  %v1829 = vpop.permute.xlu0 %1828
  %1830 = vset.pattern.permute.xlu0 0
  %1831 = vperm.xlu0 %1830, %v149
  %v1832 = vpop.permute.xlu0 %1831
  %1833 = vset.pattern.permute.xlu0 0
  %1834 = vperm.xlu0 %1833, %v150
  %v1835 = vpop.permute.xlu0 %1834
  %1836 = vset.pattern.permute.xlu0 0
  %1837 = vperm.xlu0 %1836, %v151
  %v1838 = vpop.permute.xlu0 %1837
  %1839 = vset.pattern.permute.xlu0 0
  %1840 = vperm.xlu0 %1839, %v152
  %v1841 = vpop.permute.xlu0 %1840
  %1842 = vset.pattern.permute.xlu0 0
  %1843 = vperm.xlu0 %1842, %v153
  %v1844 = vpop.permute.xlu0 %1843
  %1845 = vset.pattern.permute.xlu0 0
  %1846 = vperm.xlu0 %1845, %v154
  %v1847 = vpop.permute.xlu0 %1846
  %1848 = vset.pattern.permute.xlu0 0
  %1849 = vperm.xlu0 %1848, %v155
  %v1850 = vpop.permute.xlu0 %1849
  %1851 = vset.pattern.permute.xlu0 0
  %1852 = vperm.xlu0 %1851, %v156
  %v1853 = vpop.permute.xlu0 %1852
  %1854 = vset.pattern.permute.xlu0 0
  %1855 = vperm.xlu0 %1854, %v157
  %v1856 = vpop.permute.xlu0 %1855
  %1857 = vset.pattern.permute.xlu0 0
  %1858 = vperm.xlu0 %1857, %v158
  %v1859 = vpop.permute.xlu0 %1858
  %1860 = vset.pattern.permute.xlu0 0
  %1861 = vperm.xlu0 %1860, %v159
  %v1862 = vpop.permute.xlu0 %1861
  %1863 = vset.pattern.permute.xlu0 0
  %1864 = vperm.xlu0 %1863, %v160
  %v1865 = vpop.permute.xlu0 %1864
  %1866 = vset.pattern.permute.xlu0 0
  %1867 = vperm.xlu0 %1866, %v161
  %v1868 = vpop.permute.xlu0 %1867
  %1869 = vset.pattern.permute.xlu0 0
  %1870 = vperm.xlu0 %1869, %v162
  %v1871 = vpop.permute.xlu0 %1870
  %1872 = vset.pattern.permute.xlu0 0
  %1873 = vperm.xlu0 %1872, %v163
  %v1874 = vpop.permute.xlu0 %1873
  %1875 = vset.pattern.permute.xlu0 0
  %1876 = vperm.xlu0 %1875, %v164
  %v1877 = vpop.permute.xlu0 %1876
  %1878 = vset.pattern.permute.xlu0 0
  %1879 = vperm.xlu0 %1878, %v165
  %v1880 = vpop.permute.xlu0 %1879
  %1881 = vset.pattern.permute.xlu0 0
  %1882 = vperm.xlu0 %1881, %v166
  %v1883 = vpop.permute.xlu0 %1882
  %1884 = vset.pattern.permute.xlu0 0
  %1885 = vperm.xlu0 %1884, %v167
  %v1886 = vpop.permute.xlu0 %1885
  %1887 = vset.pattern.permute.xlu0 0
  %1888 = vperm.xlu0 %1887, %v168
  %v1889 = vpop.permute.xlu0 %1888
  %1890 = vset.pattern.permute.xlu0 0
  %1891 = vperm.xlu0 %1890, %v169
  %v1892 = vpop.permute.xlu0 %1891
  %1893 = vset.pattern.permute.xlu0 0
  %1894 = vperm.xlu0 %1893, %v170
  %v1895 = vpop.permute.xlu0 %1894
  %1896 = vset.pattern.permute.xlu0 0
  %1897 = vperm.xlu0 %1896, %v171
  %v1898 = vpop.permute.xlu0 %1897
  %1899 = vset.pattern.permute.xlu0 0
  %1900 = vperm.xlu0 %1899, %v172
  %v1901 = vpop.permute.xlu0 %1900
  %1902 = vset.pattern.permute.xlu0 0
  %1903 = vperm.xlu0 %1902, %v173
  %v1904 = vpop.permute.xlu0 %1903
  %1905 = vset.pattern.permute.xlu0 0
  %1906 = vperm.xlu0 %1905, %v174
  %v1907 = vpop.permute.xlu0 %1906
  %1908 = vset.pattern.permute.xlu0 0
  %1909 = vperm.xlu0 %1908, %v175
  %v1910 = vpop.permute.xlu0 %1909
  %1911 = vset.pattern.permute.xlu0 0
  %1912 = vperm.xlu0 %1911, %v176
  %v1913 = vpop.permute.xlu0 %1912
  %1914 = vset.pattern.permute.xlu0 0
  %1915 = vperm.xlu0 %1914, %v177
  %v1916 = vpop.permute.xlu0 %1915
  %1917 = vset.pattern.permute.xlu0 0
  %1918 = vperm.xlu0 %1917, %v178
  %v1919 = vpop.permute.xlu0 %1918
  %1920 = vset.pattern.permute.xlu0 0
  %1921 = vperm.xlu0 %1920, %v179
  %v1922 = vpop.permute.xlu0 %1921
  %1923 = vset.pattern.permute.xlu0 0
  %1924 = vperm.xlu0 %1923, %v180
  %v1925 = vpop.permute.xlu0 %1924
  %1926 = vset.pattern.permute.xlu0 0
  %1927 = vperm.xlu0 %1926, %v181
  %v1928 = vpop.permute.xlu0 %1927
  %1929 = vset.pattern.permute.xlu0 0
  %1930 = vperm.xlu0 %1929, %v182
  %v1931 = vpop.permute.xlu0 %1930
  %1932 = vset.pattern.permute.xlu0 0
  %1933 = vperm.xlu0 %1932, %v183
  %v1934 = vpop.permute.xlu0 %1933
  %1935 = vset.pattern.permute.xlu0 0
  %1936 = vperm.xlu0 %1935, %v184
  %v1937 = vpop.permute.xlu0 %1936
  %1938 = vset.pattern.permute.xlu0 0
  %1939 = vperm.xlu0 %1938, %v185
  %v1940 = vpop.permute.xlu0 %1939
  %1941 = vset.pattern.permute.xlu0 0
  %1942 = vperm.xlu0 %1941, %v186
  %v1943 = vpop.permute.xlu0 %1942
  %1944 = vset.pattern.permute.xlu0 0
  %1945 = vperm.xlu0 %1944, %v187
  %v1946 = vpop.permute.xlu0 %1945
  %1947 = vset.pattern.permute.xlu0 0
  %1948 = vperm.xlu0 %1947, %v188
  %v1949 = vpop.permute.xlu0 %1948
  %1950 = vset.pattern.permute.xlu0 0
  %1951 = vperm.xlu0 %1950, %v189
  %v1952 = vpop.permute.xlu0 %1951
  %1953 = vset.pattern.permute.xlu0 0
  %1954 = vperm.xlu0 %1953, %v190
  %v1955 = vpop.permute.xlu0 %1954
  %1956 = vset.pattern.permute.xlu0 0
  %1957 = vperm.xlu0 %1956, %v191
  %v1958 = vpop.permute.xlu0 %1957
  %1959 = vset.pattern.permute.xlu0 0
  %1960 = vperm.xlu0 %1959, %v192
  %v1961 = vpop.permute.xlu0 %1960
  %1962 = vset.pattern.permute.xlu0 0
  %1963 = vperm.xlu0 %1962, %v193
  %v1964 = vpop.permute.xlu0 %1963
  %1965 = vset.pattern.permute.xlu0 0
  %1966 = vperm.xlu0 %1965, %v194
  %v1967 = vpop.permute.xlu0 %1966
  %1968 = vset.pattern.permute.xlu0 0
  %1969 = vperm.xlu0 %1968, %v195
  %v1970 = vpop.permute.xlu0 %1969
  %1971 = vset.pattern.permute.xlu0 0
  %1972 = vperm.xlu0 %1971, %v196
  %v1973 = vpop.permute.xlu0 %1972
  %1974 = vset.pattern.permute.xlu0 0
  %1975 = vperm.xlu0 %1974, %v197
  %v1976 = vpop.permute.xlu0 %1975
  %1977 = vset.pattern.permute.xlu0 0
  %1978 = vperm.xlu0 %1977, %v198
  %v1979 = vpop.permute.xlu0 %1978
  %1980 = vset.pattern.permute.xlu0 0
  %1981 = vperm.xlu0 %1980, %v199
  %v1982 = vpop.permute.xlu0 %1981
  %1983 = vset.pattern.permute.xlu0 0
  %1984 = vperm.xlu0 %1983, %v200
  %v1985 = vpop.permute.xlu0 %1984
  %1986 = vset.pattern.permute.xlu0 0
  %1987 = vperm.xlu0 %1986, %v201
  %v1988 = vpop.permute.xlu0 %1987
  %1989 = vset.pattern.permute.xlu0 0
  %1990 = vperm.xlu0 %1989, %v202
  %v1991 = vpop.permute.xlu0 %1990
  %1992 = vset.pattern.permute.xlu0 0
  %1993 = vperm.xlu0 %1992, %v203
  %v1994 = vpop.permute.xlu0 %1993
  %1995 = vset.pattern.permute.xlu0 0
  %1996 = vperm.xlu0 %1995, %v204
  %v1997 = vpop.permute.xlu0 %1996
  %1998 = vset.pattern.permute.xlu0 0
  %1999 = vperm.xlu0 %1998, %v205
  %v2000 = vpop.permute.xlu0 %1999
  %2001 = vset.pattern.permute.xlu0 0
  %2002 = vperm.xlu0 %2001, %v206
  %v2003 = vpop.permute.xlu0 %2002
  %2004 = vset.pattern.permute.xlu0 0
  %2005 = vperm.xlu0 %2004, %v207
  %v2006 = vpop.permute.xlu0 %2005
  %2007 = vset.pattern.permute.xlu0 0
  %2008 = vperm.xlu0 %2007, %v208
  %v2009 = vpop.permute.xlu0 %2008
  %2010 = vset.pattern.permute.xlu0 0
  %2011 = vperm.xlu0 %2010, %v209
  %v2012 = vpop.permute.xlu0 %2011
  %2013 = vset.pattern.permute.xlu0 0
  %2014 = vperm.xlu0 %2013, %v210
  %v2015 = vpop.permute.xlu0 %2014
  %2016 = vset.pattern.permute.xlu0 0
  %2017 = vperm.xlu0 %2016, %v211
  %v2018 = vpop.permute.xlu0 %2017
  %2019 = vset.pattern.permute.xlu0 0
  %2020 = vperm.xlu0 %2019, %v212
  %v2021 = vpop.permute.xlu0 %2020
  %2022 = vset.pattern.permute.xlu0 0
  %2023 = vperm.xlu0 %2022, %v213
  %v2024 = vpop.permute.xlu0 %2023
  %2025 = vset.pattern.permute.xlu0 0
  %2026 = vperm.xlu0 %2025, %v214
  %v2027 = vpop.permute.xlu0 %2026
  %2028 = vset.pattern.permute.xlu0 0
  %2029 = vperm.xlu0 %2028, %v215
  %v2030 = vpop.permute.xlu0 %2029
  %2031 = vset.pattern.permute.xlu0 0
  %2032 = vperm.xlu0 %2031, %v216
  %v2033 = vpop.permute.xlu0 %2032
  %2034 = vset.pattern.permute.xlu0 0
  %2035 = vperm.xlu0 %2034, %v217
  %v2036 = vpop.permute.xlu0 %2035
  %2037 = vset.pattern.permute.xlu0 0
  %2038 = vperm.xlu0 %2037, %v218
  %v2039 = vpop.permute.xlu0 %2038
  %2040 = vset.pattern.permute.xlu0 0
  %2041 = vperm.xlu0 %2040, %v219
  %v2042 = vpop.permute.xlu0 %2041
  %2043 = vset.pattern.permute.xlu0 0
  %2044 = vperm.xlu0 %2043, %v220
  %v2045 = vpop.permute.xlu0 %2044
  %2046 = vset.pattern.permute.xlu0 0
  %2047 = vperm.xlu0 %2046, %v221
  %v2048 = vpop.permute.xlu0 %2047
  %2049 = vset.pattern.permute.xlu0 0
  %2050 = vperm.xlu0 %2049, %v222
  %v2051 = vpop.permute.xlu0 %2050
  %2052 = vset.pattern.permute.xlu0 0
  %2053 = vperm.xlu0 %2052, %v223
  %v2054 = vpop.permute.xlu0 %2053
  %2055 = vset.pattern.permute.xlu0 0
  %2056 = vperm.xlu0 %2055, %v224
  %v2057 = vpop.permute.xlu0 %2056
  %2058 = vset.pattern.permute.xlu0 0
  %2059 = vperm.xlu0 %2058, %v225
  %v2060 = vpop.permute.xlu0 %2059
  %2061 = vset.pattern.permute.xlu0 0
  %2062 = vperm.xlu0 %2061, %v226
  %v2063 = vpop.permute.xlu0 %2062
  %2064 = vset.pattern.permute.xlu0 0
  %2065 = vperm.xlu0 %2064, %v227
  %v2066 = vpop.permute.xlu0 %2065
  %2067 = vset.pattern.permute.xlu0 0
  %2068 = vperm.xlu0 %2067, %v228
  %v2069 = vpop.permute.xlu0 %2068
  %2070 = vset.pattern.permute.xlu0 0
  %2071 = vperm.xlu0 %2070, %v229
  %v2072 = vpop.permute.xlu0 %2071
  %2073 = vset.pattern.permute.xlu0 0
  %2074 = vperm.xlu0 %2073, %v230
  %v2075 = vpop.permute.xlu0 %2074
  %2076 = vset.pattern.permute.xlu0 0
  %2077 = vperm.xlu0 %2076, %v231
  %v2078 = vpop.permute.xlu0 %2077
  %2079 = vset.pattern.permute.xlu0 0
  %2080 = vperm.xlu0 %2079, %v232
  %v2081 = vpop.permute.xlu0 %2080
  %2082 = vset.pattern.permute.xlu0 0
  %2083 = vperm.xlu0 %2082, %v233
  %v2084 = vpop.permute.xlu0 %2083
  %2085 = vset.pattern.permute.xlu0 0
  %2086 = vperm.xlu0 %2085, %v234
  %v2087 = vpop.permute.xlu0 %2086
  %2088 = vset.pattern.permute.xlu0 0
  %2089 = vperm.xlu0 %2088, %v235
  %v2090 = vpop.permute.xlu0 %2089
  %2091 = vset.pattern.permute.xlu0 0
  %2092 = vperm.xlu0 %2091, %v236
  %v2093 = vpop.permute.xlu0 %2092
  %2094 = vset.pattern.permute.xlu0 0
  %2095 = vperm.xlu0 %2094, %v237
  %v2096 = vpop.permute.xlu0 %2095
  %2097 = vset.pattern.permute.xlu0 0
  %2098 = vperm.xlu0 %2097, %v238
  %v2099 = vpop.permute.xlu0 %2098
  %2100 = vset.pattern.permute.xlu0 0
  %2101 = vperm.xlu0 %2100, %v239
  %v2102 = vpop.permute.xlu0 %2101
  %2103 = vset.pattern.permute.xlu0 0
  %2104 = vperm.xlu0 %2103, %v240
  %v2105 = vpop.permute.xlu0 %2104
  %2106 = vset.pattern.permute.xlu0 0
  %2107 = vperm.xlu0 %2106, %v241
  %v2108 = vpop.permute.xlu0 %2107
  %2109 = vset.pattern.permute.xlu0 0
  %2110 = vperm.xlu0 %2109, %v242
  %v2111 = vpop.permute.xlu0 %2110
  %2112 = vset.pattern.permute.xlu0 0
  %2113 = vperm.xlu0 %2112, %v243
  %v2114 = vpop.permute.xlu0 %2113
  %2115 = vset.pattern.permute.xlu0 0
  %2116 = vperm.xlu0 %2115, %v244
  %v2117 = vpop.permute.xlu0 %2116
  %2118 = vset.pattern.permute.xlu0 0
  %2119 = vperm.xlu0 %2118, %v245
  %v2120 = vpop.permute.xlu0 %2119
  %2121 = vset.pattern.permute.xlu0 0
  %2122 = vperm.xlu0 %2121, %v246
  %v2123 = vpop.permute.xlu0 %2122
  %2124 = vset.pattern.permute.xlu0 0
  %2125 = vperm.xlu0 %2124, %v247
  %v2126 = vpop.permute.xlu0 %2125
  %2127 = vset.pattern.permute.xlu0 0
  %2128 = vperm.xlu0 %2127, %v248
  %v2129 = vpop.permute.xlu0 %2128
  %2130 = vset.pattern.permute.xlu0 0
  %2131 = vperm.xlu0 %2130, %v249
  %v2132 = vpop.permute.xlu0 %2131
  %2133 = vset.pattern.permute.xlu0 0
  %2134 = vperm.xlu0 %2133, %v250
  %v2135 = vpop.permute.xlu0 %2134
  %2136 = vset.pattern.permute.xlu0 0
  %2137 = vperm.xlu0 %2136, %v251
  %v2138 = vpop.permute.xlu0 %2137
  %2139 = vset.pattern.permute.xlu0 0
  %2140 = vperm.xlu0 %2139, %v252
  %v2141 = vpop.permute.xlu0 %2140
  %2142 = vset.pattern.permute.xlu0 0
  %2143 = vperm.xlu0 %2142, %v253
  %v2144 = vpop.permute.xlu0 %2143
  %2145 = vset.pattern.permute.xlu0 0
  %2146 = vperm.xlu0 %2145, %v254
  %v2147 = vpop.permute.xlu0 %2146
  %2148 = vset.pattern.permute.xlu0 0
  %2149 = vperm.xlu0 %2148, %v255
  %v2150 = vpop.permute.xlu0 %2149
  %2151 = vset.pattern.permute.xlu0 0
  %2152 = vperm.xlu0 %2151, %v256
  %v2153 = vpop.permute.xlu0 %2152
  %2154 = vset.pattern.permute.xlu0 0
  %2155 = vperm.xlu0 %2154, %v257
  %v2156 = vpop.permute.xlu0 %2155
  %2157 = vset.pattern.permute.xlu0 0
  %2158 = vperm.xlu0 %2157, %v258
  %v2159 = vpop.permute.xlu0 %2158
  %2160 = vset.pattern.permute.xlu0 0
  %2161 = vperm.xlu0 %2160, %v259
  %v2162 = vpop.permute.xlu0 %2161
  %2163 = vset.pattern.permute.xlu0 0
  %2164 = vperm.xlu0 %2163, %v260
  %v2165 = vpop.permute.xlu0 %2164
  %2166 = vset.pattern.permute.xlu0 0
  %2167 = vperm.xlu0 %2166, %v261
  %v2168 = vpop.permute.xlu0 %2167
  %2169 = vset.pattern.permute.xlu0 0
  %2170 = vperm.xlu0 %2169, %v262
  %v2171 = vpop.permute.xlu0 %2170
  %2172 = vset.pattern.permute.xlu0 0
  %2173 = vperm.xlu0 %2172, %v263
  %v2174 = vpop.permute.xlu0 %2173
  %2175 = vset.pattern.permute.xlu0 0
  %2176 = vperm.xlu0 %2175, %v264
  %v2177 = vpop.permute.xlu0 %2176
  %2178 = vset.pattern.permute.xlu0 0
  %2179 = vperm.xlu0 %2178, %v265
  %v2180 = vpop.permute.xlu0 %2179
  %2181 = vset.pattern.permute.xlu0 0
  %2182 = vperm.xlu0 %2181, %v266
  %v2183 = vpop.permute.xlu0 %2182
  %2184 = vset.pattern.permute.xlu0 0
  %2185 = vperm.xlu0 %2184, %v267
  %v2186 = vpop.permute.xlu0 %2185
  %2187 = vset.pattern.permute.xlu0 0
  %2188 = vperm.xlu0 %2187, %v268
  %v2189 = vpop.permute.xlu0 %2188
  %2190 = vset.pattern.permute.xlu0 0
  %2191 = vperm.xlu0 %2190, %v269
  %v2192 = vpop.permute.xlu0 %2191
  %vm2193 = vcmp.eq.s32.totalorder %v1808, %v1811
  %vm2194 = vcmp.eq.s32.totalorder %v1808, %v1814
  %vm2195 = vcmp.eq.s32.totalorder %v1808, %v1817
  %vm2196 = vcmp.eq.s32.totalorder %v1808, %v1820
  %vm2197 = vcmp.eq.s32.totalorder %v1808, %v1823
  %vm2198 = vcmp.eq.s32.totalorder %v1808, %v1826
  %vm2199 = vcmp.eq.s32.totalorder %v1808, %v1829
  %vm2200 = vcmp.eq.s32.totalorder %v1808, %v1832
  %vm2201 = vcmp.eq.s32.totalorder %v1808, %v1835
  %vm2202 = vcmp.eq.s32.totalorder %v1808, %v1838
  %vm2203 = vcmp.eq.s32.totalorder %v1808, %v1841
  %vm2204 = vcmp.eq.s32.totalorder %v1808, %v1844
  %vm2205 = vcmp.eq.s32.totalorder %v1808, %v1847
  %vm2206 = vcmp.eq.s32.totalorder %v1808, %v1850
  %vm2207 = vcmp.eq.s32.totalorder %v1808, %v1853
  %vm2208 = vcmp.eq.s32.totalorder %v1808, %v1856
  %vm2209 = vcmp.eq.s32.totalorder %v1808, %v1859
  %vm2210 = vcmp.eq.s32.totalorder %v1808, %v1862
  %vm2211 = vcmp.eq.s32.totalorder %v1808, %v1865
  %vm2212 = vcmp.eq.s32.totalorder %v1808, %v1868
  %vm2213 = vcmp.eq.s32.totalorder %v1808, %v1871
  %vm2214 = vcmp.eq.s32.totalorder %v1808, %v1874
  %vm2215 = vcmp.eq.s32.totalorder %v1808, %v1877
  %vm2216 = vcmp.eq.s32.totalorder %v1808, %v1880
  %vm2217 = vcmp.eq.s32.totalorder %v1808, %v1883
  %vm2218 = vcmp.eq.s32.totalorder %v1808, %v1886
  %vm2219 = vcmp.eq.s32.totalorder %v1808, %v1889
  %vm2220 = vcmp.eq.s32.totalorder %v1808, %v1892
  %vm2221 = vcmp.eq.s32.totalorder %v1808, %v1895
  %vm2222 = vcmp.eq.s32.totalorder %v1808, %v1898
  %vm2223 = vcmp.eq.s32.totalorder %v1808, %v1901
  %vm2224 = vcmp.eq.s32.totalorder %v1808, %v1904
  %vm2225 = vcmp.eq.s32.totalorder %v1808, %v1907
  %vm2226 = vcmp.eq.s32.totalorder %v1808, %v1910
  %vm2227 = vcmp.eq.s32.totalorder %v1808, %v1913
  %vm2228 = vcmp.eq.s32.totalorder %v1808, %v1916
  %vm2229 = vcmp.eq.s32.totalorder %v1808, %v1919
  %vm2230 = vcmp.eq.s32.totalorder %v1808, %v1922
  %vm2231 = vcmp.eq.s32.totalorder %v1808, %v1925
  %vm2232 = vcmp.eq.s32.totalorder %v1808, %v1928
  %vm2233 = vcmp.eq.s32.totalorder %v1808, %v1931
  %vm2234 = vcmp.eq.s32.totalorder %v1808, %v1934
  %vm2235 = vcmp.eq.s32.totalorder %v1808, %v1937
  %vm2236 = vcmp.eq.s32.totalorder %v1808, %v1940
  %vm2237 = vcmp.eq.s32.totalorder %v1808, %v1943
  %vm2238 = vcmp.eq.s32.totalorder %v1808, %v1946
  %vm2239 = vcmp.eq.s32.totalorder %v1808, %v1949
  %vm2240 = vcmp.eq.s32.totalorder %v1808, %v1952
  %vm2241 = vcmp.eq.s32.totalorder %v1808, %v1955
  %vm2242 = vcmp.eq.s32.totalorder %v1808, %v1958
  %vm2243 = vcmp.eq.s32.totalorder %v1808, %v1961
  %vm2244 = vcmp.eq.s32.totalorder %v1808, %v1964
  %vm2245 = vcmp.eq.s32.totalorder %v1808, %v1967
  %vm2246 = vcmp.eq.s32.totalorder %v1808, %v1970
  %vm2247 = vcmp.eq.s32.totalorder %v1808, %v1973
  %vm2248 = vcmp.eq.s32.totalorder %v1808, %v1976
  %vm2249 = vcmp.eq.s32.totalorder %v1808, %v1979
  %vm2250 = vcmp.eq.s32.totalorder %v1808, %v1982
  %vm2251 = vcmp.eq.s32.totalorder %v1808, %v1985
  %vm2252 = vcmp.eq.s32.totalorder %v1808, %v1988
  %vm2253 = vcmp.eq.s32.totalorder %v1808, %v1991
  %vm2254 = vcmp.eq.s32.totalorder %v1808, %v1994
  %vm2255 = vcmp.eq.s32.totalorder %v1808, %v1997
  %vm2256 = vcmp.eq.s32.totalorder %v1808, %v2000
  %vm2257 = vcmp.eq.s32.totalorder %v1808, %v2003
  %vm2258 = vcmp.eq.s32.totalorder %v1808, %v2006
  %vm2259 = vcmp.eq.s32.totalorder %v1808, %v2009
  %vm2260 = vcmp.eq.s32.totalorder %v1808, %v2012
  %vm2261 = vcmp.eq.s32.totalorder %v1808, %v2015
  %vm2262 = vcmp.eq.s32.totalorder %v1808, %v2018
  %vm2263 = vcmp.eq.s32.totalorder %v1808, %v2021
  %vm2264 = vcmp.eq.s32.totalorder %v1808, %v2024
  %vm2265 = vcmp.eq.s32.totalorder %v1808, %v2027
  %vm2266 = vcmp.eq.s32.totalorder %v1808, %v2030
  %vm2267 = vcmp.eq.s32.totalorder %v1808, %v2033
  %vm2268 = vcmp.eq.s32.totalorder %v1808, %v2036
  %vm2269 = vcmp.eq.s32.totalorder %v1808, %v2039
  %vm2270 = vcmp.eq.s32.totalorder %v1808, %v2042
  %vm2271 = vcmp.eq.s32.totalorder %v1808, %v2045
  %vm2272 = vcmp.eq.s32.totalorder %v1808, %v2048
  %vm2273 = vcmp.eq.s32.totalorder %v1808, %v2051
  %vm2274 = vcmp.eq.s32.totalorder %v1808, %v2054
  %vm2275 = vcmp.eq.s32.totalorder %v1808, %v2057
  %vm2276 = vcmp.eq.s32.totalorder %v1808, %v2060
  %vm2277 = vcmp.eq.s32.totalorder %v1808, %v2063
  %vm2278 = vcmp.eq.s32.totalorder %v1808, %v2066
  %vm2279 = vcmp.eq.s32.totalorder %v1808, %v2069
  %vm2280 = vcmp.eq.s32.totalorder %v1808, %v2072
  %vm2281 = vcmp.eq.s32.totalorder %v1808, %v2075
  %vm2282 = vcmp.eq.s32.totalorder %v1808, %v2078
  %vm2283 = vcmp.eq.s32.totalorder %v1808, %v2081
  %vm2284 = vcmp.eq.s32.totalorder %v1808, %v2084
  %vm2285 = vcmp.eq.s32.totalorder %v1808, %v2087
  %vm2286 = vcmp.eq.s32.totalorder %v1808, %v2090
  %vm2287 = vcmp.eq.s32.totalorder %v1808, %v2093
  %vm2288 = vcmp.eq.s32.totalorder %v1808, %v2096
  %vm2289 = vcmp.eq.s32.totalorder %v1808, %v2099
  %vm2290 = vcmp.eq.s32.totalorder %v1808, %v2102
  %vm2291 = vcmp.eq.s32.totalorder %v1808, %v2105
  %vm2292 = vcmp.eq.s32.totalorder %v1808, %v2108
  %vm2293 = vcmp.eq.s32.totalorder %v1808, %v2111
  %vm2294 = vcmp.eq.s32.totalorder %v1808, %v2114
  %vm2295 = vcmp.eq.s32.totalorder %v1808, %v2117
  %vm2296 = vcmp.eq.s32.totalorder %v1808, %v2120
  %vm2297 = vcmp.eq.s32.totalorder %v1808, %v2123
  %vm2298 = vcmp.eq.s32.totalorder %v1808, %v2126
  %vm2299 = vcmp.eq.s32.totalorder %v1808, %v2129
  %vm2300 = vcmp.eq.s32.totalorder %v1808, %v2132
  %vm2301 = vcmp.eq.s32.totalorder %v1808, %v2135
  %vm2302 = vcmp.eq.s32.totalorder %v1808, %v2138
  %vm2303 = vcmp.eq.s32.totalorder %v1808, %v2141
  %vm2304 = vcmp.eq.s32.totalorder %v1808, %v2144
  %vm2305 = vcmp.eq.s32.totalorder %v1808, %v2147
  %vm2306 = vcmp.eq.s32.totalorder %v1808, %v2150
  %vm2307 = vcmp.eq.s32.totalorder %v1808, %v2153
  %vm2308 = vcmp.eq.s32.totalorder %v1808, %v2156
  %vm2309 = vcmp.eq.s32.totalorder %v1808, %v2159
  %vm2310 = vcmp.eq.s32.totalorder %v1808, %v2162
  %vm2311 = vcmp.eq.s32.totalorder %v1808, %v2165
  %vm2312 = vcmp.eq.s32.totalorder %v1808, %v2168
  %vm2313 = vcmp.eq.s32.totalorder %v1808, %v2171
  %vm2314 = vcmp.eq.s32.totalorder %v1808, %v2174
  %vm2315 = vcmp.eq.s32.totalorder %v1808, %v2177
  %vm2316 = vcmp.eq.s32.totalorder %v1808, %v2180
  %vm2317 = vcmp.eq.s32.totalorder %v1808, %v2183
  %vm2318 = vcmp.eq.s32.totalorder %v1808, %v2186
  %vm2319 = vcmp.eq.s32.totalorder %v1808, %v2189
  %vm2320 = vcmp.eq.s32.totalorder %v1808, %v2192
  %v2321 = vsel %vm2193, %v783, 0.0
  %v2322 = vsel %vm2194, %v784, 0.0
  %v2323 = vsel %vm2195, %v785, 0.0
  %v2324 = vsel %vm2196, %v786, 0.0
  %v2325 = vsel %vm2197, %v787, 0.0
  %v2326 = vsel %vm2198, %v788, 0.0
  %v2327 = vsel %vm2199, %v789, 0.0
  %v2328 = vsel %vm2200, %v790, 0.0
  %v2329 = vsel %vm2201, %v791, 0.0
  %v2330 = vsel %vm2202, %v792, 0.0
  %v2331 = vsel %vm2203, %v793, 0.0
  %v2332 = vsel %vm2204, %v794, 0.0
  %v2333 = vsel %vm2205, %v795, 0.0
  %v2334 = vsel %vm2206, %v796, 0.0
  %v2335 = vsel %vm2207, %v797, 0.0
  %v2336 = vsel %vm2208, %v798, 0.0
  %v2337 = vsel %vm2209, %v799, 0.0
  %v2338 = vsel %vm2210, %v800, 0.0
  %v2339 = vsel %vm2211, %v801, 0.0
  %v2340 = vsel %vm2212, %v802, 0.0
  %v2341 = vsel %vm2213, %v803, 0.0
  %v2342 = vsel %vm2214, %v804, 0.0
  %v2343 = vsel %vm2215, %v805, 0.0
  %v2344 = vsel %vm2216, %v806, 0.0
  %v2345 = vsel %vm2217, %v807, 0.0
  %v2346 = vsel %vm2218, %v808, 0.0
  %v2347 = vsel %vm2219, %v809, 0.0
  %v2348 = vsel %vm2220, %v810, 0.0
  %v2349 = vsel %vm2221, %v811, 0.0
  %v2350 = vsel %vm2222, %v812, 0.0
  %v2351 = vsel %vm2223, %v813, 0.0
  %v2352 = vsel %vm2224, %v814, 0.0
  %v2353 = vsel %vm2225, %v815, 0.0
  %v2354 = vsel %vm2226, %v816, 0.0
  %v2355 = vsel %vm2227, %v817, 0.0
  %v2356 = vsel %vm2228, %v818, 0.0
  %v2357 = vsel %vm2229, %v819, 0.0
  %v2358 = vsel %vm2230, %v820, 0.0
  %v2359 = vsel %vm2231, %v821, 0.0
  %v2360 = vsel %vm2232, %v822, 0.0
  %v2361 = vsel %vm2233, %v823, 0.0
  %v2362 = vsel %vm2234, %v824, 0.0
  %v2363 = vsel %vm2235, %v825, 0.0
  %v2364 = vsel %vm2236, %v826, 0.0
  %v2365 = vsel %vm2237, %v827, 0.0
  %v2366 = vsel %vm2238, %v828, 0.0
  %v2367 = vsel %vm2239, %v829, 0.0
  %v2368 = vsel %vm2240, %v830, 0.0
  %v2369 = vsel %vm2241, %v831, 0.0
  %v2370 = vsel %vm2242, %v832, 0.0
  %v2371 = vsel %vm2243, %v833, 0.0
  %v2372 = vsel %vm2244, %v834, 0.0
  %v2373 = vsel %vm2245, %v835, 0.0
  %v2374 = vsel %vm2246, %v836, 0.0
  %v2375 = vsel %vm2247, %v837, 0.0
  %v2376 = vsel %vm2248, %v838, 0.0
  %v2377 = vsel %vm2249, %v839, 0.0
  %v2378 = vsel %vm2250, %v840, 0.0
  %v2379 = vsel %vm2251, %v841, 0.0
  %v2380 = vsel %vm2252, %v842, 0.0
  %v2381 = vsel %vm2253, %v843, 0.0
  %v2382 = vsel %vm2254, %v844, 0.0
  %v2383 = vsel %vm2255, %v845, 0.0
  %v2384 = vsel %vm2256, %v846, 0.0
  %v2385 = vsel %vm2257, %v847, 0.0
  %v2386 = vsel %vm2258, %v848, 0.0
  %v2387 = vsel %vm2259, %v849, 0.0
  %v2388 = vsel %vm2260, %v850, 0.0
  %v2389 = vsel %vm2261, %v851, 0.0
  %v2390 = vsel %vm2262, %v852, 0.0
  %v2391 = vsel %vm2263, %v853, 0.0
  %v2392 = vsel %vm2264, %v854, 0.0
  %v2393 = vsel %vm2265, %v855, 0.0
  %v2394 = vsel %vm2266, %v856, 0.0
  %v2395 = vsel %vm2267, %v857, 0.0
  %v2396 = vsel %vm2268, %v858, 0.0
  %v2397 = vsel %vm2269, %v859, 0.0
  %v2398 = vsel %vm2270, %v860, 0.0
  %v2399 = vsel %vm2271, %v861, 0.0
  %v2400 = vsel %vm2272, %v862, 0.0
  %v2401 = vsel %vm2273, %v863, 0.0
  %v2402 = vsel %vm2274, %v864, 0.0
  %v2403 = vsel %vm2275, %v865, 0.0
  %v2404 = vsel %vm2276, %v866, 0.0
  %v2405 = vsel %vm2277, %v867, 0.0
  %v2406 = vsel %vm2278, %v868, 0.0
  %v2407 = vsel %vm2279, %v869, 0.0
  %v2408 = vsel %vm2280, %v870, 0.0
  %v2409 = vsel %vm2281, %v871, 0.0
  %v2410 = vsel %vm2282, %v872, 0.0
  %v2411 = vsel %vm2283, %v873, 0.0
  %v2412 = vsel %vm2284, %v874, 0.0
  %v2413 = vsel %vm2285, %v875, 0.0
  %v2414 = vsel %vm2286, %v876, 0.0
  %v2415 = vsel %vm2287, %v877, 0.0
  %v2416 = vsel %vm2288, %v878, 0.0
  %v2417 = vsel %vm2289, %v879, 0.0
  %v2418 = vsel %vm2290, %v880, 0.0
  %v2419 = vsel %vm2291, %v881, 0.0
  %v2420 = vsel %vm2292, %v882, 0.0
  %v2421 = vsel %vm2293, %v883, 0.0
  %v2422 = vsel %vm2294, %v884, 0.0
  %v2423 = vsel %vm2295, %v885, 0.0
  %v2424 = vsel %vm2296, %v886, 0.0
  %v2425 = vsel %vm2297, %v887, 0.0
  %v2426 = vsel %vm2298, %v888, 0.0
  %v2427 = vsel %vm2299, %v889, 0.0
  %v2428 = vsel %vm2300, %v890, 0.0
  %v2429 = vsel %vm2301, %v891, 0.0
  %v2430 = vsel %vm2302, %v892, 0.0
  %v2431 = vsel %vm2303, %v893, 0.0
  %v2432 = vsel %vm2304, %v894, 0.0
  %v2433 = vsel %vm2305, %v895, 0.0
  %v2434 = vsel %vm2306, %v896, 0.0
  %v2435 = vsel %vm2307, %v897, 0.0
  %v2436 = vsel %vm2308, %v898, 0.0
  %v2437 = vsel %vm2309, %v899, 0.0
  %v2438 = vsel %vm2310, %v900, 0.0
  %v2439 = vsel %vm2311, %v901, 0.0
  %v2440 = vsel %vm2312, %v902, 0.0
  %v2441 = vsel %vm2313, %v903, 0.0
  %v2442 = vsel %vm2314, %v904, 0.0
  %v2443 = vsel %vm2315, %v905, 0.0
  %v2444 = vsel %vm2316, %v906, 0.0
  %v2445 = vsel %vm2317, %v907, 0.0
  %v2446 = vsel %vm2318, %v908, 0.0
  %v2447 = vsel %vm2319, %v909, 0.0
  %v2448 = vsel %vm2320, %v910, 0.0
  %v2449 = vsel %vm398, %v2321, 0.0
  %2450 = vadd.xlane.f32.xlu0 %v2449
  %v2451 = vpop.xlane.xlu0 %2450
  %v2452 = vsel %vm398, %v2322, 0.0
  %2453 = vadd.xlane.f32.xlu0 %v2452
  %v2454 = vpop.xlane.xlu0 %2453
  %v2455 = vsel %vm398, %v2323, 0.0
  %2456 = vadd.xlane.f32.xlu0 %v2455
  %v2457 = vpop.xlane.xlu0 %2456
  %v2458 = vsel %vm398, %v2324, 0.0
  %2459 = vadd.xlane.f32.xlu0 %v2458
  %v2460 = vpop.xlane.xlu0 %2459
  %v2461 = vsel %vm398, %v2325, 0.0
  %2462 = vadd.xlane.f32.xlu0 %v2461
  %v2463 = vpop.xlane.xlu0 %2462
  %v2464 = vsel %vm398, %v2326, 0.0
  %2465 = vadd.xlane.f32.xlu0 %v2464
  %v2466 = vpop.xlane.xlu0 %2465
  %v2467 = vsel %vm398, %v2327, 0.0
  %2468 = vadd.xlane.f32.xlu0 %v2467
  %v2469 = vpop.xlane.xlu0 %2468
  %v2470 = vsel %vm398, %v2328, 0.0
  %2471 = vadd.xlane.f32.xlu0 %v2470
  %v2472 = vpop.xlane.xlu0 %2471
  %v2473 = vsel %vm398, %v2329, 0.0
  %2474 = vadd.xlane.f32.xlu0 %v2473
  %v2475 = vpop.xlane.xlu0 %2474
  %v2476 = vsel %vm398, %v2330, 0.0
  %2477 = vadd.xlane.f32.xlu0 %v2476
  %v2478 = vpop.xlane.xlu0 %2477
  %v2479 = vsel %vm398, %v2331, 0.0
  %2480 = vadd.xlane.f32.xlu0 %v2479
  %v2481 = vpop.xlane.xlu0 %2480
  %v2482 = vsel %vm398, %v2332, 0.0
  %2483 = vadd.xlane.f32.xlu0 %v2482
  %v2484 = vpop.xlane.xlu0 %2483
  %v2485 = vsel %vm398, %v2333, 0.0
  %2486 = vadd.xlane.f32.xlu0 %v2485
  %v2487 = vpop.xlane.xlu0 %2486
  %v2488 = vsel %vm398, %v2334, 0.0
  %2489 = vadd.xlane.f32.xlu0 %v2488
  %v2490 = vpop.xlane.xlu0 %2489
  %v2491 = vsel %vm398, %v2335, 0.0
  %2492 = vadd.xlane.f32.xlu0 %v2491
  %v2493 = vpop.xlane.xlu0 %2492
  %v2494 = vsel %vm398, %v2336, 0.0
  %2495 = vadd.xlane.f32.xlu0 %v2494
  %v2496 = vpop.xlane.xlu0 %2495
  %v2497 = vsel %vm398, %v2337, 0.0
  %2498 = vadd.xlane.f32.xlu0 %v2497
  %v2499 = vpop.xlane.xlu0 %2498
  %v2500 = vsel %vm398, %v2338, 0.0
  %2501 = vadd.xlane.f32.xlu0 %v2500
  %v2502 = vpop.xlane.xlu0 %2501
  %v2503 = vsel %vm398, %v2339, 0.0
  %2504 = vadd.xlane.f32.xlu0 %v2503
  %v2505 = vpop.xlane.xlu0 %2504
  %v2506 = vsel %vm398, %v2340, 0.0
  %2507 = vadd.xlane.f32.xlu0 %v2506
  %v2508 = vpop.xlane.xlu0 %2507
  %v2509 = vsel %vm398, %v2341, 0.0
  %2510 = vadd.xlane.f32.xlu0 %v2509
  %v2511 = vpop.xlane.xlu0 %2510
  %v2512 = vsel %vm398, %v2342, 0.0
  %2513 = vadd.xlane.f32.xlu0 %v2512
  %v2514 = vpop.xlane.xlu0 %2513
  %v2515 = vsel %vm398, %v2343, 0.0
  %2516 = vadd.xlane.f32.xlu0 %v2515
  %v2517 = vpop.xlane.xlu0 %2516
  %v2518 = vsel %vm398, %v2344, 0.0
  %2519 = vadd.xlane.f32.xlu0 %v2518
  %v2520 = vpop.xlane.xlu0 %2519
  %v2521 = vsel %vm398, %v2345, 0.0
  %2522 = vadd.xlane.f32.xlu0 %v2521
  %v2523 = vpop.xlane.xlu0 %2522
  %v2524 = vsel %vm398, %v2346, 0.0
  %2525 = vadd.xlane.f32.xlu0 %v2524
  %v2526 = vpop.xlane.xlu0 %2525
  %v2527 = vsel %vm398, %v2347, 0.0
  %2528 = vadd.xlane.f32.xlu0 %v2527
  %v2529 = vpop.xlane.xlu0 %2528
  %v2530 = vsel %vm398, %v2348, 0.0
  %2531 = vadd.xlane.f32.xlu0 %v2530
  %v2532 = vpop.xlane.xlu0 %2531
  %v2533 = vsel %vm398, %v2349, 0.0
  %2534 = vadd.xlane.f32.xlu0 %v2533
  %v2535 = vpop.xlane.xlu0 %2534
  %v2536 = vsel %vm398, %v2350, 0.0
  %2537 = vadd.xlane.f32.xlu0 %v2536
  %v2538 = vpop.xlane.xlu0 %2537
  %v2539 = vsel %vm398, %v2351, 0.0
  %2540 = vadd.xlane.f32.xlu0 %v2539
  %v2541 = vpop.xlane.xlu0 %2540
  %v2542 = vsel %vm398, %v2352, 0.0
  %2543 = vadd.xlane.f32.xlu0 %v2542
  %v2544 = vpop.xlane.xlu0 %2543
  %v2545 = vsel %vm398, %v2353, 0.0
  %2546 = vadd.xlane.f32.xlu0 %v2545
  %v2547 = vpop.xlane.xlu0 %2546
  %v2548 = vsel %vm398, %v2354, 0.0
  %2549 = vadd.xlane.f32.xlu0 %v2548
  %v2550 = vpop.xlane.xlu0 %2549
  %v2551 = vsel %vm398, %v2355, 0.0
  %2552 = vadd.xlane.f32.xlu0 %v2551
  %v2553 = vpop.xlane.xlu0 %2552
  %v2554 = vsel %vm398, %v2356, 0.0
  %2555 = vadd.xlane.f32.xlu0 %v2554
  %v2556 = vpop.xlane.xlu0 %2555
  %v2557 = vsel %vm398, %v2357, 0.0
  %2558 = vadd.xlane.f32.xlu0 %v2557
  %v2559 = vpop.xlane.xlu0 %2558
  %v2560 = vsel %vm398, %v2358, 0.0
  %2561 = vadd.xlane.f32.xlu0 %v2560
  %v2562 = vpop.xlane.xlu0 %2561
  %v2563 = vsel %vm398, %v2359, 0.0
  %2564 = vadd.xlane.f32.xlu0 %v2563
  %v2565 = vpop.xlane.xlu0 %2564
  %v2566 = vsel %vm398, %v2360, 0.0
  %2567 = vadd.xlane.f32.xlu0 %v2566
  %v2568 = vpop.xlane.xlu0 %2567
  %v2569 = vsel %vm398, %v2361, 0.0
  %2570 = vadd.xlane.f32.xlu0 %v2569
  %v2571 = vpop.xlane.xlu0 %2570
  %v2572 = vsel %vm398, %v2362, 0.0
  %2573 = vadd.xlane.f32.xlu0 %v2572
  %v2574 = vpop.xlane.xlu0 %2573
  %v2575 = vsel %vm398, %v2363, 0.0
  %2576 = vadd.xlane.f32.xlu0 %v2575
  %v2577 = vpop.xlane.xlu0 %2576
  %v2578 = vsel %vm398, %v2364, 0.0
  %2579 = vadd.xlane.f32.xlu0 %v2578
  %v2580 = vpop.xlane.xlu0 %2579
  %v2581 = vsel %vm398, %v2365, 0.0
  %2582 = vadd.xlane.f32.xlu0 %v2581
  %v2583 = vpop.xlane.xlu0 %2582
  %v2584 = vsel %vm398, %v2366, 0.0
  %2585 = vadd.xlane.f32.xlu0 %v2584
  %v2586 = vpop.xlane.xlu0 %2585
  %v2587 = vsel %vm398, %v2367, 0.0
  %2588 = vadd.xlane.f32.xlu0 %v2587
  %v2589 = vpop.xlane.xlu0 %2588
  %v2590 = vsel %vm398, %v2368, 0.0
  %2591 = vadd.xlane.f32.xlu0 %v2590
  %v2592 = vpop.xlane.xlu0 %2591
  %v2593 = vsel %vm398, %v2369, 0.0
  %2594 = vadd.xlane.f32.xlu0 %v2593
  %v2595 = vpop.xlane.xlu0 %2594
  %v2596 = vsel %vm398, %v2370, 0.0
  %2597 = vadd.xlane.f32.xlu0 %v2596
  %v2598 = vpop.xlane.xlu0 %2597
  %v2599 = vsel %vm398, %v2371, 0.0
  %2600 = vadd.xlane.f32.xlu0 %v2599
  %v2601 = vpop.xlane.xlu0 %2600
  %v2602 = vsel %vm398, %v2372, 0.0
  %2603 = vadd.xlane.f32.xlu0 %v2602
  %v2604 = vpop.xlane.xlu0 %2603
  %v2605 = vsel %vm398, %v2373, 0.0
  %2606 = vadd.xlane.f32.xlu0 %v2605
  %v2607 = vpop.xlane.xlu0 %2606
  %v2608 = vsel %vm398, %v2374, 0.0
  %2609 = vadd.xlane.f32.xlu0 %v2608
  %v2610 = vpop.xlane.xlu0 %2609
  %v2611 = vsel %vm398, %v2375, 0.0
  %2612 = vadd.xlane.f32.xlu0 %v2611
  %v2613 = vpop.xlane.xlu0 %2612
  %v2614 = vsel %vm398, %v2376, 0.0
  %2615 = vadd.xlane.f32.xlu0 %v2614
  %v2616 = vpop.xlane.xlu0 %2615
  %v2617 = vsel %vm398, %v2377, 0.0
  %2618 = vadd.xlane.f32.xlu0 %v2617
  %v2619 = vpop.xlane.xlu0 %2618
  %v2620 = vsel %vm398, %v2378, 0.0
  %2621 = vadd.xlane.f32.xlu0 %v2620
  %v2622 = vpop.xlane.xlu0 %2621
  %v2623 = vsel %vm398, %v2379, 0.0
  %2624 = vadd.xlane.f32.xlu0 %v2623
  %v2625 = vpop.xlane.xlu0 %2624
  %v2626 = vsel %vm398, %v2380, 0.0
  %2627 = vadd.xlane.f32.xlu0 %v2626
  %v2628 = vpop.xlane.xlu0 %2627
  %v2629 = vsel %vm398, %v2381, 0.0
  %2630 = vadd.xlane.f32.xlu0 %v2629
  %v2631 = vpop.xlane.xlu0 %2630
  %v2632 = vsel %vm398, %v2382, 0.0
  %2633 = vadd.xlane.f32.xlu0 %v2632
  %v2634 = vpop.xlane.xlu0 %2633
  %v2635 = vsel %vm398, %v2383, 0.0
  %2636 = vadd.xlane.f32.xlu0 %v2635
  %v2637 = vpop.xlane.xlu0 %2636
  %v2638 = vsel %vm398, %v2384, 0.0
  %2639 = vadd.xlane.f32.xlu0 %v2638
  %v2640 = vpop.xlane.xlu0 %2639
  %v2641 = vsel %vm398, %v2385, 0.0
  %2642 = vadd.xlane.f32.xlu0 %v2641
  %v2643 = vpop.xlane.xlu0 %2642
  %v2644 = vsel %vm398, %v2386, 0.0
  %2645 = vadd.xlane.f32.xlu0 %v2644
  %v2646 = vpop.xlane.xlu0 %2645
  %v2647 = vsel %vm398, %v2387, 0.0
  %2648 = vadd.xlane.f32.xlu0 %v2647
  %v2649 = vpop.xlane.xlu0 %2648
  %v2650 = vsel %vm398, %v2388, 0.0
  %2651 = vadd.xlane.f32.xlu0 %v2650
  %v2652 = vpop.xlane.xlu0 %2651
  %v2653 = vsel %vm398, %v2389, 0.0
  %2654 = vadd.xlane.f32.xlu0 %v2653
  %v2655 = vpop.xlane.xlu0 %2654
  %v2656 = vsel %vm398, %v2390, 0.0
  %2657 = vadd.xlane.f32.xlu0 %v2656
  %v2658 = vpop.xlane.xlu0 %2657
  %v2659 = vsel %vm398, %v2391, 0.0
  %2660 = vadd.xlane.f32.xlu0 %v2659
  %v2661 = vpop.xlane.xlu0 %2660
  %v2662 = vsel %vm398, %v2392, 0.0
  %2663 = vadd.xlane.f32.xlu0 %v2662
  %v2664 = vpop.xlane.xlu0 %2663
  %v2665 = vsel %vm398, %v2393, 0.0
  %2666 = vadd.xlane.f32.xlu0 %v2665
  %v2667 = vpop.xlane.xlu0 %2666
  %v2668 = vsel %vm398, %v2394, 0.0
  %2669 = vadd.xlane.f32.xlu0 %v2668
  %v2670 = vpop.xlane.xlu0 %2669
  %v2671 = vsel %vm398, %v2395, 0.0
  %2672 = vadd.xlane.f32.xlu0 %v2671
  %v2673 = vpop.xlane.xlu0 %2672
  %v2674 = vsel %vm398, %v2396, 0.0
  %2675 = vadd.xlane.f32.xlu0 %v2674
  %v2676 = vpop.xlane.xlu0 %2675
  %v2677 = vsel %vm398, %v2397, 0.0
  %2678 = vadd.xlane.f32.xlu0 %v2677
  %v2679 = vpop.xlane.xlu0 %2678
  %v2680 = vsel %vm398, %v2398, 0.0
  %2681 = vadd.xlane.f32.xlu0 %v2680
  %v2682 = vpop.xlane.xlu0 %2681
  %v2683 = vsel %vm398, %v2399, 0.0
  %2684 = vadd.xlane.f32.xlu0 %v2683
  %v2685 = vpop.xlane.xlu0 %2684
  %v2686 = vsel %vm398, %v2400, 0.0
  %2687 = vadd.xlane.f32.xlu0 %v2686
  %v2688 = vpop.xlane.xlu0 %2687
  %v2689 = vsel %vm398, %v2401, 0.0
  %2690 = vadd.xlane.f32.xlu0 %v2689
  %v2691 = vpop.xlane.xlu0 %2690
  %v2692 = vsel %vm398, %v2402, 0.0
  %2693 = vadd.xlane.f32.xlu0 %v2692
  %v2694 = vpop.xlane.xlu0 %2693
  %v2695 = vsel %vm398, %v2403, 0.0
  %2696 = vadd.xlane.f32.xlu0 %v2695
  %v2697 = vpop.xlane.xlu0 %2696
  %v2698 = vsel %vm398, %v2404, 0.0
  %2699 = vadd.xlane.f32.xlu0 %v2698
  %v2700 = vpop.xlane.xlu0 %2699
  %v2701 = vsel %vm398, %v2405, 0.0
  %2702 = vadd.xlane.f32.xlu0 %v2701
  %v2703 = vpop.xlane.xlu0 %2702
  %v2704 = vsel %vm398, %v2406, 0.0
  %2705 = vadd.xlane.f32.xlu0 %v2704
  %v2706 = vpop.xlane.xlu0 %2705
  %v2707 = vsel %vm398, %v2407, 0.0
  %2708 = vadd.xlane.f32.xlu0 %v2707
  %v2709 = vpop.xlane.xlu0 %2708
  %v2710 = vsel %vm398, %v2408, 0.0
  %2711 = vadd.xlane.f32.xlu0 %v2710
  %v2712 = vpop.xlane.xlu0 %2711
  %v2713 = vsel %vm398, %v2409, 0.0
  %2714 = vadd.xlane.f32.xlu0 %v2713
  %v2715 = vpop.xlane.xlu0 %2714
  %v2716 = vsel %vm398, %v2410, 0.0
  %2717 = vadd.xlane.f32.xlu0 %v2716
  %v2718 = vpop.xlane.xlu0 %2717
  %v2719 = vsel %vm398, %v2411, 0.0
  %2720 = vadd.xlane.f32.xlu0 %v2719
  %v2721 = vpop.xlane.xlu0 %2720
  %v2722 = vsel %vm398, %v2412, 0.0
  %2723 = vadd.xlane.f32.xlu0 %v2722
  %v2724 = vpop.xlane.xlu0 %2723
  %v2725 = vsel %vm398, %v2413, 0.0
  %2726 = vadd.xlane.f32.xlu0 %v2725
  %v2727 = vpop.xlane.xlu0 %2726
  %v2728 = vsel %vm398, %v2414, 0.0
  %2729 = vadd.xlane.f32.xlu0 %v2728
  %v2730 = vpop.xlane.xlu0 %2729
  %v2731 = vsel %vm398, %v2415, 0.0
  %2732 = vadd.xlane.f32.xlu0 %v2731
  %v2733 = vpop.xlane.xlu0 %2732
  %v2734 = vsel %vm398, %v2416, 0.0
  %2735 = vadd.xlane.f32.xlu0 %v2734
  %v2736 = vpop.xlane.xlu0 %2735
  %v2737 = vsel %vm398, %v2417, 0.0
  %2738 = vadd.xlane.f32.xlu0 %v2737
  %v2739 = vpop.xlane.xlu0 %2738
  %v2740 = vsel %vm398, %v2418, 0.0
  %2741 = vadd.xlane.f32.xlu0 %v2740
  %v2742 = vpop.xlane.xlu0 %2741
  %v2743 = vsel %vm398, %v2419, 0.0
  %2744 = vadd.xlane.f32.xlu0 %v2743
  %v2745 = vpop.xlane.xlu0 %2744
  %v2746 = vsel %vm398, %v2420, 0.0
  %2747 = vadd.xlane.f32.xlu0 %v2746
  %v2748 = vpop.xlane.xlu0 %2747
  %v2749 = vsel %vm398, %v2421, 0.0
  %2750 = vadd.xlane.f32.xlu0 %v2749
  %v2751 = vpop.xlane.xlu0 %2750
  %v2752 = vsel %vm398, %v2422, 0.0
  %2753 = vadd.xlane.f32.xlu0 %v2752
  %v2754 = vpop.xlane.xlu0 %2753
  %v2755 = vsel %vm398, %v2423, 0.0
  %2756 = vadd.xlane.f32.xlu0 %v2755
  %v2757 = vpop.xlane.xlu0 %2756
  %v2758 = vsel %vm398, %v2424, 0.0
  %2759 = vadd.xlane.f32.xlu0 %v2758
  %v2760 = vpop.xlane.xlu0 %2759
  %v2761 = vsel %vm398, %v2425, 0.0
  %2762 = vadd.xlane.f32.xlu0 %v2761
  %v2763 = vpop.xlane.xlu0 %2762
  %v2764 = vsel %vm398, %v2426, 0.0
  %2765 = vadd.xlane.f32.xlu0 %v2764
  %v2766 = vpop.xlane.xlu0 %2765
  %v2767 = vsel %vm398, %v2427, 0.0
  %2768 = vadd.xlane.f32.xlu0 %v2767
  %v2769 = vpop.xlane.xlu0 %2768
  %v2770 = vsel %vm398, %v2428, 0.0
  %2771 = vadd.xlane.f32.xlu0 %v2770
  %v2772 = vpop.xlane.xlu0 %2771
  %v2773 = vsel %vm398, %v2429, 0.0
  %2774 = vadd.xlane.f32.xlu0 %v2773
  %v2775 = vpop.xlane.xlu0 %2774
  %v2776 = vsel %vm398, %v2430, 0.0
  %2777 = vadd.xlane.f32.xlu0 %v2776
  %v2778 = vpop.xlane.xlu0 %2777
  %v2779 = vsel %vm398, %v2431, 0.0
  %2780 = vadd.xlane.f32.xlu0 %v2779
  %v2781 = vpop.xlane.xlu0 %2780
  %v2782 = vsel %vm398, %v2432, 0.0
  %2783 = vadd.xlane.f32.xlu0 %v2782
  %v2784 = vpop.xlane.xlu0 %2783
  %v2785 = vsel %vm398, %v2433, 0.0
  %2786 = vadd.xlane.f32.xlu0 %v2785
  %v2787 = vpop.xlane.xlu0 %2786
  %v2788 = vsel %vm398, %v2434, 0.0
  %2789 = vadd.xlane.f32.xlu0 %v2788
  %v2790 = vpop.xlane.xlu0 %2789
  %v2791 = vsel %vm398, %v2435, 0.0
  %2792 = vadd.xlane.f32.xlu0 %v2791
  %v2793 = vpop.xlane.xlu0 %2792
  %v2794 = vsel %vm398, %v2436, 0.0
  %2795 = vadd.xlane.f32.xlu0 %v2794
  %v2796 = vpop.xlane.xlu0 %2795
  %v2797 = vsel %vm398, %v2437, 0.0
  %2798 = vadd.xlane.f32.xlu0 %v2797
  %v2799 = vpop.xlane.xlu0 %2798
  %v2800 = vsel %vm398, %v2438, 0.0
  %2801 = vadd.xlane.f32.xlu0 %v2800
  %v2802 = vpop.xlane.xlu0 %2801
  %v2803 = vsel %vm398, %v2439, 0.0
  %2804 = vadd.xlane.f32.xlu0 %v2803
  %v2805 = vpop.xlane.xlu0 %2804
  %v2806 = vsel %vm398, %v2440, 0.0
  %2807 = vadd.xlane.f32.xlu0 %v2806
  %v2808 = vpop.xlane.xlu0 %2807
  %v2809 = vsel %vm398, %v2441, 0.0
  %2810 = vadd.xlane.f32.xlu0 %v2809
  %v2811 = vpop.xlane.xlu0 %2810
  %v2812 = vsel %vm398, %v2442, 0.0
  %2813 = vadd.xlane.f32.xlu0 %v2812
  %v2814 = vpop.xlane.xlu0 %2813
  %v2815 = vsel %vm398, %v2443, 0.0
  %2816 = vadd.xlane.f32.xlu0 %v2815
  %v2817 = vpop.xlane.xlu0 %2816
  %v2818 = vsel %vm398, %v2444, 0.0
  %2819 = vadd.xlane.f32.xlu0 %v2818
  %v2820 = vpop.xlane.xlu0 %2819
  %v2821 = vsel %vm398, %v2445, 0.0
  %2822 = vadd.xlane.f32.xlu0 %v2821
  %v2823 = vpop.xlane.xlu0 %2822
  %v2824 = vsel %vm398, %v2446, 0.0
  %2825 = vadd.xlane.f32.xlu0 %v2824
  %v2826 = vpop.xlane.xlu0 %2825
  %v2827 = vsel %vm398, %v2447, 0.0
  %2828 = vadd.xlane.f32.xlu0 %v2827
  %v2829 = vpop.xlane.xlu0 %2828
  %v2830 = vsel %vm398, %v2448, 0.0
  %2831 = vadd.xlane.f32.xlu0 %v2830
  %v2832 = vpop.xlane.xlu0 %2831
  %v2833 = vsub.f32 %v2451, %v1552
  %v2834 = vsub.f32 %v2454, %v1554
  %v2835 = vsub.f32 %v2457, %v1556
  %v2836 = vsub.f32 %v2460, %v1558
  %v2837 = vsub.f32 %v2463, %v1560
  %v2838 = vsub.f32 %v2466, %v1562
  %v2839 = vsub.f32 %v2469, %v1564
  %v2840 = vsub.f32 %v2472, %v1566
  %v2841 = vsub.f32 %v2475, %v1568
  %v2842 = vsub.f32 %v2478, %v1570
  %v2843 = vsub.f32 %v2481, %v1572
  %v2844 = vsub.f32 %v2484, %v1574
  %v2845 = vsub.f32 %v2487, %v1576
  %v2846 = vsub.f32 %v2490, %v1578
  %v2847 = vsub.f32 %v2493, %v1580
  %v2848 = vsub.f32 %v2496, %v1582
  %v2849 = vsub.f32 %v2499, %v1584
  %v2850 = vsub.f32 %v2502, %v1586
  %v2851 = vsub.f32 %v2505, %v1588
  %v2852 = vsub.f32 %v2508, %v1590
  %v2853 = vsub.f32 %v2511, %v1592
  %v2854 = vsub.f32 %v2514, %v1594
  %v2855 = vsub.f32 %v2517, %v1596
  %v2856 = vsub.f32 %v2520, %v1598
  %v2857 = vsub.f32 %v2523, %v1600
  %v2858 = vsub.f32 %v2526, %v1602
  %v2859 = vsub.f32 %v2529, %v1604
  %v2860 = vsub.f32 %v2532, %v1606
  %v2861 = vsub.f32 %v2535, %v1608
  %v2862 = vsub.f32 %v2538, %v1610
  %v2863 = vsub.f32 %v2541, %v1612
  %v2864 = vsub.f32 %v2544, %v1614
  %v2865 = vsub.f32 %v2547, %v1616
  %v2866 = vsub.f32 %v2550, %v1618
  %v2867 = vsub.f32 %v2553, %v1620
  %v2868 = vsub.f32 %v2556, %v1622
  %v2869 = vsub.f32 %v2559, %v1624
  %v2870 = vsub.f32 %v2562, %v1626
  %v2871 = vsub.f32 %v2565, %v1628
  %v2872 = vsub.f32 %v2568, %v1630
  %v2873 = vsub.f32 %v2571, %v1632
  %v2874 = vsub.f32 %v2574, %v1634
  %v2875 = vsub.f32 %v2577, %v1636
  %v2876 = vsub.f32 %v2580, %v1638
  %v2877 = vsub.f32 %v2583, %v1640
  %v2878 = vsub.f32 %v2586, %v1642
  %v2879 = vsub.f32 %v2589, %v1644
  %v2880 = vsub.f32 %v2592, %v1646
  %v2881 = vsub.f32 %v2595, %v1648
  %v2882 = vsub.f32 %v2598, %v1650
  %v2883 = vsub.f32 %v2601, %v1652
  %v2884 = vsub.f32 %v2604, %v1654
  %v2885 = vsub.f32 %v2607, %v1656
  %v2886 = vsub.f32 %v2610, %v1658
  %v2887 = vsub.f32 %v2613, %v1660
  %v2888 = vsub.f32 %v2616, %v1662
  %v2889 = vsub.f32 %v2619, %v1664
  %v2890 = vsub.f32 %v2622, %v1666
  %v2891 = vsub.f32 %v2625, %v1668
  %v2892 = vsub.f32 %v2628, %v1670
  %v2893 = vsub.f32 %v2631, %v1672
  %v2894 = vsub.f32 %v2634, %v1674
  %v2895 = vsub.f32 %v2637, %v1676
  %v2896 = vsub.f32 %v2640, %v1678
  %v2897 = vsub.f32 %v2643, %v1680
  %v2898 = vsub.f32 %v2646, %v1682
  %v2899 = vsub.f32 %v2649, %v1684
  %v2900 = vsub.f32 %v2652, %v1686
  %v2901 = vsub.f32 %v2655, %v1688
  %v2902 = vsub.f32 %v2658, %v1690
  %v2903 = vsub.f32 %v2661, %v1692
  %v2904 = vsub.f32 %v2664, %v1694
  %v2905 = vsub.f32 %v2667, %v1696
  %v2906 = vsub.f32 %v2670, %v1698
  %v2907 = vsub.f32 %v2673, %v1700
  %v2908 = vsub.f32 %v2676, %v1702
  %v2909 = vsub.f32 %v2679, %v1704
  %v2910 = vsub.f32 %v2682, %v1706
  %v2911 = vsub.f32 %v2685, %v1708
  %v2912 = vsub.f32 %v2688, %v1710
  %v2913 = vsub.f32 %v2691, %v1712
  %v2914 = vsub.f32 %v2694, %v1714
  %v2915 = vsub.f32 %v2697, %v1716
  %v2916 = vsub.f32 %v2700, %v1718
  %v2917 = vsub.f32 %v2703, %v1720
  %v2918 = vsub.f32 %v2706, %v1722
  %v2919 = vsub.f32 %v2709, %v1724
  %v2920 = vsub.f32 %v2712, %v1726
  %v2921 = vsub.f32 %v2715, %v1728
  %v2922 = vsub.f32 %v2718, %v1730
  %v2923 = vsub.f32 %v2721, %v1732
  %v2924 = vsub.f32 %v2724, %v1734
  %v2925 = vsub.f32 %v2727, %v1736
  %v2926 = vsub.f32 %v2730, %v1738
  %v2927 = vsub.f32 %v2733, %v1740
  %v2928 = vsub.f32 %v2736, %v1742
  %v2929 = vsub.f32 %v2739, %v1744
  %v2930 = vsub.f32 %v2742, %v1746
  %v2931 = vsub.f32 %v2745, %v1748
  %v2932 = vsub.f32 %v2748, %v1750
  %v2933 = vsub.f32 %v2751, %v1752
  %v2934 = vsub.f32 %v2754, %v1754
  %v2935 = vsub.f32 %v2757, %v1756
  %v2936 = vsub.f32 %v2760, %v1758
  %v2937 = vsub.f32 %v2763, %v1760
  %v2938 = vsub.f32 %v2766, %v1762
  %v2939 = vsub.f32 %v2769, %v1764
  %v2940 = vsub.f32 %v2772, %v1766
  %v2941 = vsub.f32 %v2775, %v1768
  %v2942 = vsub.f32 %v2778, %v1770
  %v2943 = vsub.f32 %v2781, %v1772
  %v2944 = vsub.f32 %v2784, %v1774
  %v2945 = vsub.f32 %v2787, %v1776
  %v2946 = vsub.f32 %v2790, %v1778
  %v2947 = vsub.f32 %v2793, %v1780
  %v2948 = vsub.f32 %v2796, %v1782
  %v2949 = vsub.f32 %v2799, %v1784
  %v2950 = vsub.f32 %v2802, %v1786
  %v2951 = vsub.f32 %v2805, %v1788
  %v2952 = vsub.f32 %v2808, %v1790
  %v2953 = vsub.f32 %v2811, %v1792
  %v2954 = vsub.f32 %v2814, %v1794
  %v2955 = vsub.f32 %v2817, %v1796
  %v2956 = vsub.f32 %v2820, %v1798
  %v2957 = vsub.f32 %v2823, %v1800
  %v2958 = vsub.f32 %v2826, %v1802
  %v2959 = vsub.f32 %v2829, %v1804
  %v2960 = vsub.f32 %v2832, %v1806
  %v2961 = vmul.f32 %v2833, 1.442695
  %v2962 = vpow.pop %v2961
  %v2963 = vmul.f32 %v2834, 1.442695
  %v2964 = vpow.pop %v2963
  %v2965 = vmul.f32 %v2835, 1.442695
  %v2966 = vpow.pop %v2965
  %v2967 = vmul.f32 %v2836, 1.442695
  %v2968 = vpow.pop %v2967
  %v2969 = vmul.f32 %v2837, 1.442695
  %v2970 = vpow.pop %v2969
  %v2971 = vmul.f32 %v2838, 1.442695
  %v2972 = vpow.pop %v2971
  %v2973 = vmul.f32 %v2839, 1.442695
  %v2974 = vpow.pop %v2973
  %v2975 = vmul.f32 %v2840, 1.442695
  %v2976 = vpow.pop %v2975
  %v2977 = vmul.f32 %v2841, 1.442695
  %v2978 = vpow.pop %v2977
  %v2979 = vmul.f32 %v2842, 1.442695
  %v2980 = vpow.pop %v2979
  %v2981 = vmul.f32 %v2843, 1.442695
  %v2982 = vpow.pop %v2981
  %v2983 = vmul.f32 %v2844, 1.442695
  %v2984 = vpow.pop %v2983
  %v2985 = vmul.f32 %v2845, 1.442695
  %v2986 = vpow.pop %v2985
  %v2987 = vmul.f32 %v2846, 1.442695
  %v2988 = vpow.pop %v2987
  %v2989 = vmul.f32 %v2847, 1.442695
  %v2990 = vpow.pop %v2989
  %v2991 = vmul.f32 %v2848, 1.442695
  %v2992 = vpow.pop %v2991
  %v2993 = vmul.f32 %v2849, 1.442695
  %v2994 = vpow.pop %v2993
  %v2995 = vmul.f32 %v2850, 1.442695
  %v2996 = vpow.pop %v2995
  %v2997 = vmul.f32 %v2851, 1.442695
  %v2998 = vpow.pop %v2997
  %v2999 = vmul.f32 %v2852, 1.442695
  %v3000 = vpow.pop %v2999
  %v3001 = vmul.f32 %v2853, 1.442695
  %v3002 = vpow.pop %v3001
  %v3003 = vmul.f32 %v2854, 1.442695
  %v3004 = vpow.pop %v3003
  %v3005 = vmul.f32 %v2855, 1.442695
  %v3006 = vpow.pop %v3005
  %v3007 = vmul.f32 %v2856, 1.442695
  %v3008 = vpow.pop %v3007
  %v3009 = vmul.f32 %v2857, 1.442695
  %v3010 = vpow.pop %v3009
  %v3011 = vmul.f32 %v2858, 1.442695
  %v3012 = vpow.pop %v3011
  %v3013 = vmul.f32 %v2859, 1.442695
  %v3014 = vpow.pop %v3013
  %v3015 = vmul.f32 %v2860, 1.442695
  %v3016 = vpow.pop %v3015
  %v3017 = vmul.f32 %v2861, 1.442695
  %v3018 = vpow.pop %v3017
  %v3019 = vmul.f32 %v2862, 1.442695
  %v3020 = vpow.pop %v3019
  %v3021 = vmul.f32 %v2863, 1.442695
  %v3022 = vpow.pop %v3021
  %v3023 = vmul.f32 %v2864, 1.442695
  %v3024 = vpow.pop %v3023
  %v3025 = vmul.f32 %v2865, 1.442695
  %v3026 = vpow.pop %v3025
  %v3027 = vmul.f32 %v2866, 1.442695
  %v3028 = vpow.pop %v3027
  %v3029 = vmul.f32 %v2867, 1.442695
  %v3030 = vpow.pop %v3029
  %v3031 = vmul.f32 %v2868, 1.442695
  %v3032 = vpow.pop %v3031
  %v3033 = vmul.f32 %v2869, 1.442695
  %v3034 = vpow.pop %v3033
  %v3035 = vmul.f32 %v2870, 1.442695
  %v3036 = vpow.pop %v3035
  %v3037 = vmul.f32 %v2871, 1.442695
  %v3038 = vpow.pop %v3037
  %v3039 = vmul.f32 %v2872, 1.442695
  %v3040 = vpow.pop %v3039
  %v3041 = vmul.f32 %v2873, 1.442695
  %v3042 = vpow.pop %v3041
  %v3043 = vmul.f32 %v2874, 1.442695
  %v3044 = vpow.pop %v3043
  %v3045 = vmul.f32 %v2875, 1.442695
  %v3046 = vpow.pop %v3045
  %v3047 = vmul.f32 %v2876, 1.442695
  %v3048 = vpow.pop %v3047
  %v3049 = vmul.f32 %v2877, 1.442695
  %v3050 = vpow.pop %v3049
  %v3051 = vmul.f32 %v2878, 1.442695
  %v3052 = vpow.pop %v3051
  %v3053 = vmul.f32 %v2879, 1.442695
  %v3054 = vpow.pop %v3053
  %v3055 = vmul.f32 %v2880, 1.442695
  %v3056 = vpow.pop %v3055
  %v3057 = vmul.f32 %v2881, 1.442695
  %v3058 = vpow.pop %v3057
  %v3059 = vmul.f32 %v2882, 1.442695
  %v3060 = vpow.pop %v3059
  %v3061 = vmul.f32 %v2883, 1.442695
  %v3062 = vpow.pop %v3061
  %v3063 = vmul.f32 %v2884, 1.442695
  %v3064 = vpow.pop %v3063
  %v3065 = vmul.f32 %v2885, 1.442695
  %v3066 = vpow.pop %v3065
  %v3067 = vmul.f32 %v2886, 1.442695
  %v3068 = vpow.pop %v3067
  %v3069 = vmul.f32 %v2887, 1.442695
  %v3070 = vpow.pop %v3069
  %v3071 = vmul.f32 %v2888, 1.442695
  %v3072 = vpow.pop %v3071
  %v3073 = vmul.f32 %v2889, 1.442695
  %v3074 = vpow.pop %v3073
  %v3075 = vmul.f32 %v2890, 1.442695
  %v3076 = vpow.pop %v3075
  %v3077 = vmul.f32 %v2891, 1.442695
  %v3078 = vpow.pop %v3077
  %v3079 = vmul.f32 %v2892, 1.442695
  %v3080 = vpow.pop %v3079
  %v3081 = vmul.f32 %v2893, 1.442695
  %v3082 = vpow.pop %v3081
  %v3083 = vmul.f32 %v2894, 1.442695
  %v3084 = vpow.pop %v3083
  %v3085 = vmul.f32 %v2895, 1.442695
  %v3086 = vpow.pop %v3085
  %v3087 = vmul.f32 %v2896, 1.442695
  %v3088 = vpow.pop %v3087
  %v3089 = vmul.f32 %v2897, 1.442695
  %v3090 = vpow.pop %v3089
  %v3091 = vmul.f32 %v2898, 1.442695
  %v3092 = vpow.pop %v3091
  %v3093 = vmul.f32 %v2899, 1.442695
  %v3094 = vpow.pop %v3093
  %v3095 = vmul.f32 %v2900, 1.442695
  %v3096 = vpow.pop %v3095
  %v3097 = vmul.f32 %v2901, 1.442695
  %v3098 = vpow.pop %v3097
  %v3099 = vmul.f32 %v2902, 1.442695
  %v3100 = vpow.pop %v3099
  %v3101 = vmul.f32 %v2903, 1.442695
  %v3102 = vpow.pop %v3101
  %v3103 = vmul.f32 %v2904, 1.442695
  %v3104 = vpow.pop %v3103
  %v3105 = vmul.f32 %v2905, 1.442695
  %v3106 = vpow.pop %v3105
  %v3107 = vmul.f32 %v2906, 1.442695
  %v3108 = vpow.pop %v3107
  %v3109 = vmul.f32 %v2907, 1.442695
  %v3110 = vpow.pop %v3109
  %v3111 = vmul.f32 %v2908, 1.442695
  %v3112 = vpow.pop %v3111
  %v3113 = vmul.f32 %v2909, 1.442695
  %v3114 = vpow.pop %v3113
  %v3115 = vmul.f32 %v2910, 1.442695
  %v3116 = vpow.pop %v3115
  %v3117 = vmul.f32 %v2911, 1.442695
  %v3118 = vpow.pop %v3117
  %v3119 = vmul.f32 %v2912, 1.442695
  %v3120 = vpow.pop %v3119
  %v3121 = vmul.f32 %v2913, 1.442695
  %v3122 = vpow.pop %v3121
  %v3123 = vmul.f32 %v2914, 1.442695
  %v3124 = vpow.pop %v3123
  %v3125 = vmul.f32 %v2915, 1.442695
  %v3126 = vpow.pop %v3125
  %v3127 = vmul.f32 %v2916, 1.442695
  %v3128 = vpow.pop %v3127
  %v3129 = vmul.f32 %v2917, 1.442695
  %v3130 = vpow.pop %v3129
  %v3131 = vmul.f32 %v2918, 1.442695
  %v3132 = vpow.pop %v3131
  %v3133 = vmul.f32 %v2919, 1.442695
  %v3134 = vpow.pop %v3133
  %v3135 = vmul.f32 %v2920, 1.442695
  %v3136 = vpow.pop %v3135
  %v3137 = vmul.f32 %v2921, 1.442695
  %v3138 = vpow.pop %v3137
  %v3139 = vmul.f32 %v2922, 1.442695
  %v3140 = vpow.pop %v3139
  %v3141 = vmul.f32 %v2923, 1.442695
  %v3142 = vpow.pop %v3141
  %v3143 = vmul.f32 %v2924, 1.442695
  %v3144 = vpow.pop %v3143
  %v3145 = vmul.f32 %v2925, 1.442695
  %v3146 = vpow.pop %v3145
  %v3147 = vmul.f32 %v2926, 1.442695
  %v3148 = vpow.pop %v3147
  %v3149 = vmul.f32 %v2927, 1.442695
  %v3150 = vpow.pop %v3149
  %v3151 = vmul.f32 %v2928, 1.442695
  %v3152 = vpow.pop %v3151
  %v3153 = vmul.f32 %v2929, 1.442695
  %v3154 = vpow.pop %v3153
  %v3155 = vmul.f32 %v2930, 1.442695
  %v3156 = vpow.pop %v3155
  %v3157 = vmul.f32 %v2931, 1.442695
  %v3158 = vpow.pop %v3157
  %v3159 = vmul.f32 %v2932, 1.442695
  %v3160 = vpow.pop %v3159
  %v3161 = vmul.f32 %v2933, 1.442695
  %v3162 = vpow.pop %v3161
  %v3163 = vmul.f32 %v2934, 1.442695
  %v3164 = vpow.pop %v3163
  %v3165 = vmul.f32 %v2935, 1.442695
  %v3166 = vpow.pop %v3165
  %v3167 = vmul.f32 %v2936, 1.442695
  %v3168 = vpow.pop %v3167
  %v3169 = vmul.f32 %v2937, 1.442695
  %v3170 = vpow.pop %v3169
  %v3171 = vmul.f32 %v2938, 1.442695
  %v3172 = vpow.pop %v3171
  %v3173 = vmul.f32 %v2939, 1.442695
  %v3174 = vpow.pop %v3173
  %v3175 = vmul.f32 %v2940, 1.442695
  %v3176 = vpow.pop %v3175
  %v3177 = vmul.f32 %v2941, 1.442695
  %v3178 = vpow.pop %v3177
  %v3179 = vmul.f32 %v2942, 1.442695
  %v3180 = vpow.pop %v3179
  %v3181 = vmul.f32 %v2943, 1.442695
  %v3182 = vpow.pop %v3181
  %v3183 = vmul.f32 %v2944, 1.442695
  %v3184 = vpow.pop %v3183
  %v3185 = vmul.f32 %v2945, 1.442695
  %v3186 = vpow.pop %v3185
  %v3187 = vmul.f32 %v2946, 1.442695
  %v3188 = vpow.pop %v3187
  %v3189 = vmul.f32 %v2947, 1.442695
  %v3190 = vpow.pop %v3189
  %v3191 = vmul.f32 %v2948, 1.442695
  %v3192 = vpow.pop %v3191
  %v3193 = vmul.f32 %v2949, 1.442695
  %v3194 = vpow.pop %v3193
  %v3195 = vmul.f32 %v2950, 1.442695
  %v3196 = vpow.pop %v3195
  %v3197 = vmul.f32 %v2951, 1.442695
  %v3198 = vpow.pop %v3197
  %v3199 = vmul.f32 %v2952, 1.442695
  %v3200 = vpow.pop %v3199
  %v3201 = vmul.f32 %v2953, 1.442695
  %v3202 = vpow.pop %v3201
  %v3203 = vmul.f32 %v2954, 1.442695
  %v3204 = vpow.pop %v3203
  %v3205 = vmul.f32 %v2955, 1.442695
  %v3206 = vpow.pop %v3205
  %v3207 = vmul.f32 %v2956, 1.442695
  %v3208 = vpow.pop %v3207
  %v3209 = vmul.f32 %v2957, 1.442695
  %v3210 = vpow.pop %v3209
  %v3211 = vmul.f32 %v2958, 1.442695
  %v3212 = vpow.pop %v3211
  %v3213 = vmul.f32 %v2959, 1.442695
  %v3214 = vpow.pop %v3213
  %v3215 = vmul.f32 %v2960, 1.442695
  %v3216 = vpow.pop %v3215
  %v3217 = vmul.f32 %v2833, %v270
  %v3218 = vmul.f32 %v2834, %v271
  %v3219 = vmul.f32 %v2835, %v272
  %v3220 = vmul.f32 %v2836, %v273
  %v3221 = vmul.f32 %v2837, %v274
  %v3222 = vmul.f32 %v2838, %v275
  %v3223 = vmul.f32 %v2839, %v276
  %v3224 = vmul.f32 %v2840, %v277
  %v3225 = vmul.f32 %v2841, %v278
  %v3226 = vmul.f32 %v2842, %v279
  %v3227 = vmul.f32 %v2843, %v280
  %v3228 = vmul.f32 %v2844, %v281
  %v3229 = vmul.f32 %v2845, %v282
  %v3230 = vmul.f32 %v2846, %v283
  %v3231 = vmul.f32 %v2847, %v284
  %v3232 = vmul.f32 %v2848, %v285
  %v3233 = vmul.f32 %v2849, %v286
  %v3234 = vmul.f32 %v2850, %v287
  %v3235 = vmul.f32 %v2851, %v288
  %v3236 = vmul.f32 %v2852, %v289
  %v3237 = vmul.f32 %v2853, %v290
  %v3238 = vmul.f32 %v2854, %v291
  %v3239 = vmul.f32 %v2855, %v292
  %v3240 = vmul.f32 %v2856, %v293
  %v3241 = vmul.f32 %v2857, %v294
  %v3242 = vmul.f32 %v2858, %v295
  %v3243 = vmul.f32 %v2859, %v296
  %v3244 = vmul.f32 %v2860, %v297
  %v3245 = vmul.f32 %v2861, %v298
  %v3246 = vmul.f32 %v2862, %v299
  %v3247 = vmul.f32 %v2863, %v300
  %v3248 = vmul.f32 %v2864, %v301
  %v3249 = vmul.f32 %v2865, %v302
  %v3250 = vmul.f32 %v2866, %v303
  %v3251 = vmul.f32 %v2867, %v304
  %v3252 = vmul.f32 %v2868, %v305
  %v3253 = vmul.f32 %v2869, %v306
  %v3254 = vmul.f32 %v2870, %v307
  %v3255 = vmul.f32 %v2871, %v308
  %v3256 = vmul.f32 %v2872, %v309
  %v3257 = vmul.f32 %v2873, %v310
  %v3258 = vmul.f32 %v2874, %v311
  %v3259 = vmul.f32 %v2875, %v312
  %v3260 = vmul.f32 %v2876, %v313
  %v3261 = vmul.f32 %v2877, %v314
  %v3262 = vmul.f32 %v2878, %v315
  %v3263 = vmul.f32 %v2879, %v316
  %v3264 = vmul.f32 %v2880, %v317
  %v3265 = vmul.f32 %v2881, %v318
  %v3266 = vmul.f32 %v2882, %v319
  %v3267 = vmul.f32 %v2883, %v320
  %v3268 = vmul.f32 %v2884, %v321
  %v3269 = vmul.f32 %v2885, %v322
  %v3270 = vmul.f32 %v2886, %v323
  %v3271 = vmul.f32 %v2887, %v324
  %v3272 = vmul.f32 %v2888, %v325
  %v3273 = vmul.f32 %v2889, %v326
  %v3274 = vmul.f32 %v2890, %v327
  %v3275 = vmul.f32 %v2891, %v328
  %v3276 = vmul.f32 %v2892, %v329
  %v3277 = vmul.f32 %v2893, %v330
  %v3278 = vmul.f32 %v2894, %v331
  %v3279 = vmul.f32 %v2895, %v332
  %v3280 = vmul.f32 %v2896, %v333
  %v3281 = vmul.f32 %v2897, %v334
  %v3282 = vmul.f32 %v2898, %v335
  %v3283 = vmul.f32 %v2899, %v336
  %v3284 = vmul.f32 %v2900, %v337
  %v3285 = vmul.f32 %v2901, %v338
  %v3286 = vmul.f32 %v2902, %v339
  %v3287 = vmul.f32 %v2903, %v340
  %v3288 = vmul.f32 %v2904, %v341
  %v3289 = vmul.f32 %v2905, %v342
  %v3290 = vmul.f32 %v2906, %v343
  %v3291 = vmul.f32 %v2907, %v344
  %v3292 = vmul.f32 %v2908, %v345
  %v3293 = vmul.f32 %v2909, %v346
  %v3294 = vmul.f32 %v2910, %v347
  %v3295 = vmul.f32 %v2911, %v348
  %v3296 = vmul.f32 %v2912, %v349
  %v3297 = vmul.f32 %v2913, %v350
  %v3298 = vmul.f32 %v2914, %v351
  %v3299 = vmul.f32 %v2915, %v352
  %v3300 = vmul.f32 %v2916, %v353
  %v3301 = vmul.f32 %v2917, %v354
  %v3302 = vmul.f32 %v2918, %v355
  %v3303 = vmul.f32 %v2919, %v356
  %v3304 = vmul.f32 %v2920, %v357
  %v3305 = vmul.f32 %v2921, %v358
  %v3306 = vmul.f32 %v2922, %v359
  %v3307 = vmul.f32 %v2923, %v360
  %v3308 = vmul.f32 %v2924, %v361
  %v3309 = vmul.f32 %v2925, %v362
  %v3310 = vmul.f32 %v2926, %v363
  %v3311 = vmul.f32 %v2927, %v364
  %v3312 = vmul.f32 %v2928, %v365
  %v3313 = vmul.f32 %v2929, %v366
  %v3314 = vmul.f32 %v2930, %v367
  %v3315 = vmul.f32 %v2931, %v368
  %v3316 = vmul.f32 %v2932, %v369
  %v3317 = vmul.f32 %v2933, %v370
  %v3318 = vmul.f32 %v2934, %v371
  %v3319 = vmul.f32 %v2935, %v372
  %v3320 = vmul.f32 %v2936, %v373
  %v3321 = vmul.f32 %v2937, %v374
  %v3322 = vmul.f32 %v2938, %v375
  %v3323 = vmul.f32 %v2939, %v376
  %v3324 = vmul.f32 %v2940, %v377
  %v3325 = vmul.f32 %v2941, %v378
  %v3326 = vmul.f32 %v2942, %v379
  %v3327 = vmul.f32 %v2943, %v380
  %v3328 = vmul.f32 %v2944, %v381
  %v3329 = vmul.f32 %v2945, %v382
  %v3330 = vmul.f32 %v2946, %v383
  %v3331 = vmul.f32 %v2947, %v384
  %v3332 = vmul.f32 %v2948, %v385
  %v3333 = vmul.f32 %v2949, %v386
  %v3334 = vmul.f32 %v2950, %v387
  %v3335 = vmul.f32 %v2951, %v388
  %v3336 = vmul.f32 %v2952, %v389
  %v3337 = vmul.f32 %v2953, %v390
  %v3338 = vmul.f32 %v2954, %v391
  %v3339 = vmul.f32 %v2955, %v392
  %v3340 = vmul.f32 %v2956, %v393
  %v3341 = vmul.f32 %v2957, %v394
  %v3342 = vmul.f32 %v2958, %v395
  %v3343 = vmul.f32 %v2959, %v396
  %v3344 = vmul.f32 %v2960, %v397
  %v3345 = vsub.f32 1.0, %v2962
  %v3346 = vsub.f32 1.0, %v2964
  %v3347 = vsub.f32 1.0, %v2966
  %v3348 = vsub.f32 1.0, %v2968
  %v3349 = vsub.f32 1.0, %v2970
  %v3350 = vsub.f32 1.0, %v2972
  %v3351 = vsub.f32 1.0, %v2974
  %v3352 = vsub.f32 1.0, %v2976
  %v3353 = vsub.f32 1.0, %v2978
  %v3354 = vsub.f32 1.0, %v2980
  %v3355 = vsub.f32 1.0, %v2982
  %v3356 = vsub.f32 1.0, %v2984
  %v3357 = vsub.f32 1.0, %v2986
  %v3358 = vsub.f32 1.0, %v2988
  %v3359 = vsub.f32 1.0, %v2990
  %v3360 = vsub.f32 1.0, %v2992
  %v3361 = vsub.f32 1.0, %v2994
  %v3362 = vsub.f32 1.0, %v2996
  %v3363 = vsub.f32 1.0, %v2998
  %v3364 = vsub.f32 1.0, %v3000
  %v3365 = vsub.f32 1.0, %v3002
  %v3366 = vsub.f32 1.0, %v3004
  %v3367 = vsub.f32 1.0, %v3006
  %v3368 = vsub.f32 1.0, %v3008
  %v3369 = vsub.f32 1.0, %v3010
  %v3370 = vsub.f32 1.0, %v3012
  %v3371 = vsub.f32 1.0, %v3014
  %v3372 = vsub.f32 1.0, %v3016
  %v3373 = vsub.f32 1.0, %v3018
  %v3374 = vsub.f32 1.0, %v3020
  %v3375 = vsub.f32 1.0, %v3022
  %v3376 = vsub.f32 1.0, %v3024
  %v3377 = vsub.f32 1.0, %v3026
  %v3378 = vsub.f32 1.0, %v3028
  %v3379 = vsub.f32 1.0, %v3030
  %v3380 = vsub.f32 1.0, %v3032
  %v3381 = vsub.f32 1.0, %v3034
  %v3382 = vsub.f32 1.0, %v3036
  %v3383 = vsub.f32 1.0, %v3038
  %v3384 = vsub.f32 1.0, %v3040
  %v3385 = vsub.f32 1.0, %v3042
  %v3386 = vsub.f32 1.0, %v3044
  %v3387 = vsub.f32 1.0, %v3046
  %v3388 = vsub.f32 1.0, %v3048
  %v3389 = vsub.f32 1.0, %v3050
  %v3390 = vsub.f32 1.0, %v3052
  %v3391 = vsub.f32 1.0, %v3054
  %v3392 = vsub.f32 1.0, %v3056
  %v3393 = vsub.f32 1.0, %v3058
  %v3394 = vsub.f32 1.0, %v3060
  %v3395 = vsub.f32 1.0, %v3062
  %v3396 = vsub.f32 1.0, %v3064
  %v3397 = vsub.f32 1.0, %v3066
  %v3398 = vsub.f32 1.0, %v3068
  %v3399 = vsub.f32 1.0, %v3070
  %v3400 = vsub.f32 1.0, %v3072
  %v3401 = vsub.f32 1.0, %v3074
  %v3402 = vsub.f32 1.0, %v3076
  %v3403 = vsub.f32 1.0, %v3078
  %v3404 = vsub.f32 1.0, %v3080
  %v3405 = vsub.f32 1.0, %v3082
  %v3406 = vsub.f32 1.0, %v3084
  %v3407 = vsub.f32 1.0, %v3086
  %v3408 = vsub.f32 1.0, %v3088
  %v3409 = vsub.f32 1.0, %v3090
  %v3410 = vsub.f32 1.0, %v3092
  %v3411 = vsub.f32 1.0, %v3094
  %v3412 = vsub.f32 1.0, %v3096
  %v3413 = vsub.f32 1.0, %v3098
  %v3414 = vsub.f32 1.0, %v3100
  %v3415 = vsub.f32 1.0, %v3102
  %v3416 = vsub.f32 1.0, %v3104
  %v3417 = vsub.f32 1.0, %v3106
  %v3418 = vsub.f32 1.0, %v3108
  %v3419 = vsub.f32 1.0, %v3110
  %v3420 = vsub.f32 1.0, %v3112
  %v3421 = vsub.f32 1.0, %v3114
  %v3422 = vsub.f32 1.0, %v3116
  %v3423 = vsub.f32 1.0, %v3118
  %v3424 = vsub.f32 1.0, %v3120
  %v3425 = vsub.f32 1.0, %v3122
  %v3426 = vsub.f32 1.0, %v3124
  %v3427 = vsub.f32 1.0, %v3126
  %v3428 = vsub.f32 1.0, %v3128
  %v3429 = vsub.f32 1.0, %v3130
  %v3430 = vsub.f32 1.0, %v3132
  %v3431 = vsub.f32 1.0, %v3134
  %v3432 = vsub.f32 1.0, %v3136
  %v3433 = vsub.f32 1.0, %v3138
  %v3434 = vsub.f32 1.0, %v3140
  %v3435 = vsub.f32 1.0, %v3142
  %v3436 = vsub.f32 1.0, %v3144
  %v3437 = vsub.f32 1.0, %v3146
  %v3438 = vsub.f32 1.0, %v3148
  %v3439 = vsub.f32 1.0, %v3150
  %v3440 = vsub.f32 1.0, %v3152
  %v3441 = vsub.f32 1.0, %v3154
  %v3442 = vsub.f32 1.0, %v3156
  %v3443 = vsub.f32 1.0, %v3158
  %v3444 = vsub.f32 1.0, %v3160
  %v3445 = vsub.f32 1.0, %v3162
  %v3446 = vsub.f32 1.0, %v3164
  %v3447 = vsub.f32 1.0, %v3166
  %v3448 = vsub.f32 1.0, %v3168
  %v3449 = vsub.f32 1.0, %v3170
  %v3450 = vsub.f32 1.0, %v3172
  %v3451 = vsub.f32 1.0, %v3174
  %v3452 = vsub.f32 1.0, %v3176
  %v3453 = vsub.f32 1.0, %v3178
  %v3454 = vsub.f32 1.0, %v3180
  %v3455 = vsub.f32 1.0, %v3182
  %v3456 = vsub.f32 1.0, %v3184
  %v3457 = vsub.f32 1.0, %v3186
  %v3458 = vsub.f32 1.0, %v3188
  %v3459 = vsub.f32 1.0, %v3190
  %v3460 = vsub.f32 1.0, %v3192
  %v3461 = vsub.f32 1.0, %v3194
  %v3462 = vsub.f32 1.0, %v3196
  %v3463 = vsub.f32 1.0, %v3198
  %v3464 = vsub.f32 1.0, %v3200
  %v3465 = vsub.f32 1.0, %v3202
  %v3466 = vsub.f32 1.0, %v3204
  %v3467 = vsub.f32 1.0, %v3206
  %v3468 = vsub.f32 1.0, %v3208
  %v3469 = vsub.f32 1.0, %v3210
  %v3470 = vsub.f32 1.0, %v3212
  %v3471 = vsub.f32 1.0, %v3214
  %v3472 = vsub.f32 1.0, %v3216
  %v3473 = vmul.f32 %v3345, %v3345
  %v3474 = vmul.f32 %v3346, %v3346
  %v3475 = vmul.f32 %v3347, %v3347
  %v3476 = vmul.f32 %v3348, %v3348
  %v3477 = vmul.f32 %v3349, %v3349
  %v3478 = vmul.f32 %v3350, %v3350
  %v3479 = vmul.f32 %v3351, %v3351
  %v3480 = vmul.f32 %v3352, %v3352
  %v3481 = vmul.f32 %v3353, %v3353
  %v3482 = vmul.f32 %v3354, %v3354
  %v3483 = vmul.f32 %v3355, %v3355
  %v3484 = vmul.f32 %v3356, %v3356
  %v3485 = vmul.f32 %v3357, %v3357
  %v3486 = vmul.f32 %v3358, %v3358
  %v3487 = vmul.f32 %v3359, %v3359
  %v3488 = vmul.f32 %v3360, %v3360
  %v3489 = vmul.f32 %v3361, %v3361
  %v3490 = vmul.f32 %v3362, %v3362
  %v3491 = vmul.f32 %v3363, %v3363
  %v3492 = vmul.f32 %v3364, %v3364
  %v3493 = vmul.f32 %v3365, %v3365
  %v3494 = vmul.f32 %v3366, %v3366
  %v3495 = vmul.f32 %v3367, %v3367
  %v3496 = vmul.f32 %v3368, %v3368
  %v3497 = vmul.f32 %v3369, %v3369
  %v3498 = vmul.f32 %v3370, %v3370
  %v3499 = vmul.f32 %v3371, %v3371
  %v3500 = vmul.f32 %v3372, %v3372
  %v3501 = vmul.f32 %v3373, %v3373
  %v3502 = vmul.f32 %v3374, %v3374
  %v3503 = vmul.f32 %v3375, %v3375
  %v3504 = vmul.f32 %v3376, %v3376
  %v3505 = vmul.f32 %v3377, %v3377
  %v3506 = vmul.f32 %v3378, %v3378
  %v3507 = vmul.f32 %v3379, %v3379
  %v3508 = vmul.f32 %v3380, %v3380
  %v3509 = vmul.f32 %v3381, %v3381
  %v3510 = vmul.f32 %v3382, %v3382
  %v3511 = vmul.f32 %v3383, %v3383
  %v3512 = vmul.f32 %v3384, %v3384
  %v3513 = vmul.f32 %v3385, %v3385
  %v3514 = vmul.f32 %v3386, %v3386
  %v3515 = vmul.f32 %v3387, %v3387
  %v3516 = vmul.f32 %v3388, %v3388
  %v3517 = vmul.f32 %v3389, %v3389
  %v3518 = vmul.f32 %v3390, %v3390
  %v3519 = vmul.f32 %v3391, %v3391
  %v3520 = vmul.f32 %v3392, %v3392
  %v3521 = vmul.f32 %v3393, %v3393
  %v3522 = vmul.f32 %v3394, %v3394
  %v3523 = vmul.f32 %v3395, %v3395
  %v3524 = vmul.f32 %v3396, %v3396
  %v3525 = vmul.f32 %v3397, %v3397
  %v3526 = vmul.f32 %v3398, %v3398
  %v3527 = vmul.f32 %v3399, %v3399
  %v3528 = vmul.f32 %v3400, %v3400
  %v3529 = vmul.f32 %v3401, %v3401
  %v3530 = vmul.f32 %v3402, %v3402
  %v3531 = vmul.f32 %v3403, %v3403
  %v3532 = vmul.f32 %v3404, %v3404
  %v3533 = vmul.f32 %v3405, %v3405
  %v3534 = vmul.f32 %v3406, %v3406
  %v3535 = vmul.f32 %v3407, %v3407
  %v3536 = vmul.f32 %v3408, %v3408
  %v3537 = vmul.f32 %v3409, %v3409
  %v3538 = vmul.f32 %v3410, %v3410
  %v3539 = vmul.f32 %v3411, %v3411
  %v3540 = vmul.f32 %v3412, %v3412
  %v3541 = vmul.f32 %v3413, %v3413
  %v3542 = vmul.f32 %v3414, %v3414
  %v3543 = vmul.f32 %v3415, %v3415
  %v3544 = vmul.f32 %v3416, %v3416
  %v3545 = vmul.f32 %v3417, %v3417
  %v3546 = vmul.f32 %v3418, %v3418
  %v3547 = vmul.f32 %v3419, %v3419
  %v3548 = vmul.f32 %v3420, %v3420
  %v3549 = vmul.f32 %v3421, %v3421
  %v3550 = vmul.f32 %v3422, %v3422
  %v3551 = vmul.f32 %v3423, %v3423
  %v3552 = vmul.f32 %v3424, %v3424
  %v3553 = vmul.f32 %v3425, %v3425
  %v3554 = vmul.f32 %v3426, %v3426
  %v3555 = vmul.f32 %v3427, %v3427
  %v3556 = vmul.f32 %v3428, %v3428
  %v3557 = vmul.f32 %v3429, %v3429
  %v3558 = vmul.f32 %v3430, %v3430
  %v3559 = vmul.f32 %v3431, %v3431
  %v3560 = vmul.f32 %v3432, %v3432
  %v3561 = vmul.f32 %v3433, %v3433
  %v3562 = vmul.f32 %v3434, %v3434
  %v3563 = vmul.f32 %v3435, %v3435
  %v3564 = vmul.f32 %v3436, %v3436
  %v3565 = vmul.f32 %v3437, %v3437
  %v3566 = vmul.f32 %v3438, %v3438
  %v3567 = vmul.f32 %v3439, %v3439
  %v3568 = vmul.f32 %v3440, %v3440
  %v3569 = vmul.f32 %v3441, %v3441
  %v3570 = vmul.f32 %v3442, %v3442
  %v3571 = vmul.f32 %v3443, %v3443
  %v3572 = vmul.f32 %v3444, %v3444
  %v3573 = vmul.f32 %v3445, %v3445
  %v3574 = vmul.f32 %v3446, %v3446
  %v3575 = vmul.f32 %v3447, %v3447
  %v3576 = vmul.f32 %v3448, %v3448
  %v3577 = vmul.f32 %v3449, %v3449
  %v3578 = vmul.f32 %v3450, %v3450
  %v3579 = vmul.f32 %v3451, %v3451
  %v3580 = vmul.f32 %v3452, %v3452
  %v3581 = vmul.f32 %v3453, %v3453
  %v3582 = vmul.f32 %v3454, %v3454
  %v3583 = vmul.f32 %v3455, %v3455
  %v3584 = vmul.f32 %v3456, %v3456
  %v3585 = vmul.f32 %v3457, %v3457
  %v3586 = vmul.f32 %v3458, %v3458
  %v3587 = vmul.f32 %v3459, %v3459
  %v3588 = vmul.f32 %v3460, %v3460
  %v3589 = vmul.f32 %v3461, %v3461
  %v3590 = vmul.f32 %v3462, %v3462
  %v3591 = vmul.f32 %v3463, %v3463
  %v3592 = vmul.f32 %v3464, %v3464
  %v3593 = vmul.f32 %v3465, %v3465
  %v3594 = vmul.f32 %v3466, %v3466
  %v3595 = vmul.f32 %v3467, %v3467
  %v3596 = vmul.f32 %v3468, %v3468
  %v3597 = vmul.f32 %v3469, %v3469
  %v3598 = vmul.f32 %v3470, %v3470
  %v3599 = vmul.f32 %v3471, %v3471
  %v3600 = vmul.f32 %v3472, %v3472
  %v3601 = vmul.f32 %v3473, -1.0
  %v3602 = vmul.f32 %v3474, -1.0
  %v3603 = vmul.f32 %v3475, -1.0
  %v3604 = vmul.f32 %v3476, -1.0
  %v3605 = vmul.f32 %v3477, -1.0
  %v3606 = vmul.f32 %v3478, -1.0
  %v3607 = vmul.f32 %v3479, -1.0
  %v3608 = vmul.f32 %v3480, -1.0
  %v3609 = vmul.f32 %v3481, -1.0
  %v3610 = vmul.f32 %v3482, -1.0
  %v3611 = vmul.f32 %v3483, -1.0
  %v3612 = vmul.f32 %v3484, -1.0
  %v3613 = vmul.f32 %v3485, -1.0
  %v3614 = vmul.f32 %v3486, -1.0
  %v3615 = vmul.f32 %v3487, -1.0
  %v3616 = vmul.f32 %v3488, -1.0
  %v3617 = vmul.f32 %v3489, -1.0
  %v3618 = vmul.f32 %v3490, -1.0
  %v3619 = vmul.f32 %v3491, -1.0
  %v3620 = vmul.f32 %v3492, -1.0
  %v3621 = vmul.f32 %v3493, -1.0
  %v3622 = vmul.f32 %v3494, -1.0
  %v3623 = vmul.f32 %v3495, -1.0
  %v3624 = vmul.f32 %v3496, -1.0
  %v3625 = vmul.f32 %v3497, -1.0
  %v3626 = vmul.f32 %v3498, -1.0
  %v3627 = vmul.f32 %v3499, -1.0
  %v3628 = vmul.f32 %v3500, -1.0
  %v3629 = vmul.f32 %v3501, -1.0
  %v3630 = vmul.f32 %v3502, -1.0
  %v3631 = vmul.f32 %v3503, -1.0
  %v3632 = vmul.f32 %v3504, -1.0
  %v3633 = vmul.f32 %v3505, -1.0
  %v3634 = vmul.f32 %v3506, -1.0
  %v3635 = vmul.f32 %v3507, -1.0
  %v3636 = vmul.f32 %v3508, -1.0
  %v3637 = vmul.f32 %v3509, -1.0
  %v3638 = vmul.f32 %v3510, -1.0
  %v3639 = vmul.f32 %v3511, -1.0
  %v3640 = vmul.f32 %v3512, -1.0
  %v3641 = vmul.f32 %v3513, -1.0
  %v3642 = vmul.f32 %v3514, -1.0
  %v3643 = vmul.f32 %v3515, -1.0
  %v3644 = vmul.f32 %v3516, -1.0
  %v3645 = vmul.f32 %v3517, -1.0
  %v3646 = vmul.f32 %v3518, -1.0
  %v3647 = vmul.f32 %v3519, -1.0
  %v3648 = vmul.f32 %v3520, -1.0
  %v3649 = vmul.f32 %v3521, -1.0
  %v3650 = vmul.f32 %v3522, -1.0
  %v3651 = vmul.f32 %v3523, -1.0
  %v3652 = vmul.f32 %v3524, -1.0
  %v3653 = vmul.f32 %v3525, -1.0
  %v3654 = vmul.f32 %v3526, -1.0
  %v3655 = vmul.f32 %v3527, -1.0
  %v3656 = vmul.f32 %v3528, -1.0
  %v3657 = vmul.f32 %v3529, -1.0
  %v3658 = vmul.f32 %v3530, -1.0
  %v3659 = vmul.f32 %v3531, -1.0
  %v3660 = vmul.f32 %v3532, -1.0
  %v3661 = vmul.f32 %v3533, -1.0
  %v3662 = vmul.f32 %v3534, -1.0
  %v3663 = vmul.f32 %v3535, -1.0
  %v3664 = vmul.f32 %v3536, -1.0
  %v3665 = vmul.f32 %v3537, -1.0
  %v3666 = vmul.f32 %v3538, -1.0
  %v3667 = vmul.f32 %v3539, -1.0
  %v3668 = vmul.f32 %v3540, -1.0
  %v3669 = vmul.f32 %v3541, -1.0
  %v3670 = vmul.f32 %v3542, -1.0
  %v3671 = vmul.f32 %v3543, -1.0
  %v3672 = vmul.f32 %v3544, -1.0
  %v3673 = vmul.f32 %v3545, -1.0
  %v3674 = vmul.f32 %v3546, -1.0
  %v3675 = vmul.f32 %v3547, -1.0
  %v3676 = vmul.f32 %v3548, -1.0
  %v3677 = vmul.f32 %v3549, -1.0
  %v3678 = vmul.f32 %v3550, -1.0
  %v3679 = vmul.f32 %v3551, -1.0
  %v3680 = vmul.f32 %v3552, -1.0
  %v3681 = vmul.f32 %v3553, -1.0
  %v3682 = vmul.f32 %v3554, -1.0
  %v3683 = vmul.f32 %v3555, -1.0
  %v3684 = vmul.f32 %v3556, -1.0
  %v3685 = vmul.f32 %v3557, -1.0
  %v3686 = vmul.f32 %v3558, -1.0
  %v3687 = vmul.f32 %v3559, -1.0
  %v3688 = vmul.f32 %v3560, -1.0
  %v3689 = vmul.f32 %v3561, -1.0
  %v3690 = vmul.f32 %v3562, -1.0
  %v3691 = vmul.f32 %v3563, -1.0
  %v3692 = vmul.f32 %v3564, -1.0
  %v3693 = vmul.f32 %v3565, -1.0
  %v3694 = vmul.f32 %v3566, -1.0
  %v3695 = vmul.f32 %v3567, -1.0
  %v3696 = vmul.f32 %v3568, -1.0
  %v3697 = vmul.f32 %v3569, -1.0
  %v3698 = vmul.f32 %v3570, -1.0
  %v3699 = vmul.f32 %v3571, -1.0
  %v3700 = vmul.f32 %v3572, -1.0
  %v3701 = vmul.f32 %v3573, -1.0
  %v3702 = vmul.f32 %v3574, -1.0
  %v3703 = vmul.f32 %v3575, -1.0
  %v3704 = vmul.f32 %v3576, -1.0
  %v3705 = vmul.f32 %v3577, -1.0
  %v3706 = vmul.f32 %v3578, -1.0
  %v3707 = vmul.f32 %v3579, -1.0
  %v3708 = vmul.f32 %v3580, -1.0
  %v3709 = vmul.f32 %v3581, -1.0
  %v3710 = vmul.f32 %v3582, -1.0
  %v3711 = vmul.f32 %v3583, -1.0
  %v3712 = vmul.f32 %v3584, -1.0
  %v3713 = vmul.f32 %v3585, -1.0
  %v3714 = vmul.f32 %v3586, -1.0
  %v3715 = vmul.f32 %v3587, -1.0
  %v3716 = vmul.f32 %v3588, -1.0
  %v3717 = vmul.f32 %v3589, -1.0
  %v3718 = vmul.f32 %v3590, -1.0
  %v3719 = vmul.f32 %v3591, -1.0
  %v3720 = vmul.f32 %v3592, -1.0
  %v3721 = vmul.f32 %v3593, -1.0
  %v3722 = vmul.f32 %v3594, -1.0
  %v3723 = vmul.f32 %v3595, -1.0
  %v3724 = vmul.f32 %v3596, -1.0
  %v3725 = vmul.f32 %v3597, -1.0
  %v3726 = vmul.f32 %v3598, -1.0
  %v3727 = vmul.f32 %v3599, -1.0
  %v3728 = vmul.f32 %v3600, -1.0
  %v3729 = vmul.f32 %v3601, %v3217
  %v3730 = vmul.f32 %v3602, %v3218
  %v3731 = vmul.f32 %v3603, %v3219
  %v3732 = vmul.f32 %v3604, %v3220
  %v3733 = vmul.f32 %v3605, %v3221
  %v3734 = vmul.f32 %v3606, %v3222
  %v3735 = vmul.f32 %v3607, %v3223
  %v3736 = vmul.f32 %v3608, %v3224
  %v3737 = vmul.f32 %v3609, %v3225
  %v3738 = vmul.f32 %v3610, %v3226
  %v3739 = vmul.f32 %v3611, %v3227
  %v3740 = vmul.f32 %v3612, %v3228
  %v3741 = vmul.f32 %v3613, %v3229
  %v3742 = vmul.f32 %v3614, %v3230
  %v3743 = vmul.f32 %v3615, %v3231
  %v3744 = vmul.f32 %v3616, %v3232
  %v3745 = vmul.f32 %v3617, %v3233
  %v3746 = vmul.f32 %v3618, %v3234
  %v3747 = vmul.f32 %v3619, %v3235
  %v3748 = vmul.f32 %v3620, %v3236
  %v3749 = vmul.f32 %v3621, %v3237
  %v3750 = vmul.f32 %v3622, %v3238
  %v3751 = vmul.f32 %v3623, %v3239
  %v3752 = vmul.f32 %v3624, %v3240
  %v3753 = vmul.f32 %v3625, %v3241
  %v3754 = vmul.f32 %v3626, %v3242
  %v3755 = vmul.f32 %v3627, %v3243
  %v3756 = vmul.f32 %v3628, %v3244
  %v3757 = vmul.f32 %v3629, %v3245
  %v3758 = vmul.f32 %v3630, %v3246
  %v3759 = vmul.f32 %v3631, %v3247
  %v3760 = vmul.f32 %v3632, %v3248
  %v3761 = vmul.f32 %v3633, %v3249
  %v3762 = vmul.f32 %v3634, %v3250
  %v3763 = vmul.f32 %v3635, %v3251
  %v3764 = vmul.f32 %v3636, %v3252
  %v3765 = vmul.f32 %v3637, %v3253
  %v3766 = vmul.f32 %v3638, %v3254
  %v3767 = vmul.f32 %v3639, %v3255
  %v3768 = vmul.f32 %v3640, %v3256
  %v3769 = vmul.f32 %v3641, %v3257
  %v3770 = vmul.f32 %v3642, %v3258
  %v3771 = vmul.f32 %v3643, %v3259
  %v3772 = vmul.f32 %v3644, %v3260
  %v3773 = vmul.f32 %v3645, %v3261
  %v3774 = vmul.f32 %v3646, %v3262
  %v3775 = vmul.f32 %v3647, %v3263
  %v3776 = vmul.f32 %v3648, %v3264
  %v3777 = vmul.f32 %v3649, %v3265
  %v3778 = vmul.f32 %v3650, %v3266
  %v3779 = vmul.f32 %v3651, %v3267
  %v3780 = vmul.f32 %v3652, %v3268
  %v3781 = vmul.f32 %v3653, %v3269
  %v3782 = vmul.f32 %v3654, %v3270
  %v3783 = vmul.f32 %v3655, %v3271
  %v3784 = vmul.f32 %v3656, %v3272
  %v3785 = vmul.f32 %v3657, %v3273
  %v3786 = vmul.f32 %v3658, %v3274
  %v3787 = vmul.f32 %v3659, %v3275
  %v3788 = vmul.f32 %v3660, %v3276
  %v3789 = vmul.f32 %v3661, %v3277
  %v3790 = vmul.f32 %v3662, %v3278
  %v3791 = vmul.f32 %v3663, %v3279
  %v3792 = vmul.f32 %v3664, %v3280
  %v3793 = vmul.f32 %v3665, %v3281
  %v3794 = vmul.f32 %v3666, %v3282
  %v3795 = vmul.f32 %v3667, %v3283
  %v3796 = vmul.f32 %v3668, %v3284
  %v3797 = vmul.f32 %v3669, %v3285
  %v3798 = vmul.f32 %v3670, %v3286
  %v3799 = vmul.f32 %v3671, %v3287
  %v3800 = vmul.f32 %v3672, %v3288
  %v3801 = vmul.f32 %v3673, %v3289
  %v3802 = vmul.f32 %v3674, %v3290
  %v3803 = vmul.f32 %v3675, %v3291
  %v3804 = vmul.f32 %v3676, %v3292
  %v3805 = vmul.f32 %v3677, %v3293
  %v3806 = vmul.f32 %v3678, %v3294
  %v3807 = vmul.f32 %v3679, %v3295
  %v3808 = vmul.f32 %v3680, %v3296
  %v3809 = vmul.f32 %v3681, %v3297
  %v3810 = vmul.f32 %v3682, %v3298
  %v3811 = vmul.f32 %v3683, %v3299
  %v3812 = vmul.f32 %v3684, %v3300
  %v3813 = vmul.f32 %v3685, %v3301
  %v3814 = vmul.f32 %v3686, %v3302
  %v3815 = vmul.f32 %v3687, %v3303
  %v3816 = vmul.f32 %v3688, %v3304
  %v3817 = vmul.f32 %v3689, %v3305
  %v3818 = vmul.f32 %v3690, %v3306
  %v3819 = vmul.f32 %v3691, %v3307
  %v3820 = vmul.f32 %v3692, %v3308
  %v3821 = vmul.f32 %v3693, %v3309
  %v3822 = vmul.f32 %v3694, %v3310
  %v3823 = vmul.f32 %v3695, %v3311
  %v3824 = vmul.f32 %v3696, %v3312
  %v3825 = vmul.f32 %v3697, %v3313
  %v3826 = vmul.f32 %v3698, %v3314
  %v3827 = vmul.f32 %v3699, %v3315
  %v3828 = vmul.f32 %v3700, %v3316
  %v3829 = vmul.f32 %v3701, %v3317
  %v3830 = vmul.f32 %v3702, %v3318
  %v3831 = vmul.f32 %v3703, %v3319
  %v3832 = vmul.f32 %v3704, %v3320
  %v3833 = vmul.f32 %v3705, %v3321
  %v3834 = vmul.f32 %v3706, %v3322
  %v3835 = vmul.f32 %v3707, %v3323
  %v3836 = vmul.f32 %v3708, %v3324
  %v3837 = vmul.f32 %v3709, %v3325
  %v3838 = vmul.f32 %v3710, %v3326
  %v3839 = vmul.f32 %v3711, %v3327
  %v3840 = vmul.f32 %v3712, %v3328
  %v3841 = vmul.f32 %v3713, %v3329
  %v3842 = vmul.f32 %v3714, %v3330
  %v3843 = vmul.f32 %v3715, %v3331
  %v3844 = vmul.f32 %v3716, %v3332
  %v3845 = vmul.f32 %v3717, %v3333
  %v3846 = vmul.f32 %v3718, %v3334
  %v3847 = vmul.f32 %v3719, %v3335
  %v3848 = vmul.f32 %v3720, %v3336
  %v3849 = vmul.f32 %v3721, %v3337
  %v3850 = vmul.f32 %v3722, %v3338
  %v3851 = vmul.f32 %v3723, %v3339
  %v3852 = vmul.f32 %v3724, %v3340
  %v3853 = vmul.f32 %v3725, %v3341
  %v3854 = vmul.f32 %v3726, %v3342
  %v3855 = vmul.f32 %v3727, %v3343
  %v3856 = vmul.f32 %v3728, %v3344
  %vm3857 = vcmask 7168
  %3858 = vst.msk [vmem:[%s3] sm:$0xff] %vm3857, %v3729
  %3859 = vst.msk [vmem:[%s3 + $0x8] sm:$0xff] %vm3857, %v3730
  %3860 = vst.msk [vmem:[%s3 + $0x10] sm:$0xff] %vm3857, %v3731
  %3861 = vst.msk [vmem:[%s3 + $0x18] sm:$0xff] %vm3857, %v3732
  %3862 = vst.msk [vmem:[%s3 + $0x20] sm:$0xff] %vm3857, %v3733
  %3863 = vst.msk [vmem:[%s3 + $0x28] sm:$0xff] %vm3857, %v3734
  %3864 = vst.msk [vmem:[%s3 + $0x30] sm:$0xff] %vm3857, %v3735
  %3865 = vst.msk [vmem:[%s3 + $0x38] sm:$0xff] %vm3857, %v3736
  %3866 = vst.msk [vmem:[%s3 + $0x40] sm:$0xff] %vm3857, %v3737
  %3867 = vst.msk [vmem:[%s3 + $0x48] sm:$0xff] %vm3857, %v3738
  %3868 = vst.msk [vmem:[%s3 + $0x50] sm:$0xff] %vm3857, %v3739
  %3869 = vst.msk [vmem:[%s3 + $0x58] sm:$0xff] %vm3857, %v3740
  %3870 = vst.msk [vmem:[%s3 + $0x60] sm:$0xff] %vm3857, %v3741
  %3871 = vst.msk [vmem:[%s3 + $0x68] sm:$0xff] %vm3857, %v3742
  %3872 = vst.msk [vmem:[%s3 + $0x70] sm:$0xff] %vm3857, %v3743
  %3873 = vst.msk [vmem:[%s3 + $0x78] sm:$0xff] %vm3857, %v3744
  %3874 = vst.msk [vmem:[%s3 + $0x80] sm:$0xff] %vm3857, %v3745
  %3875 = vst.msk [vmem:[%s3 + $0x88] sm:$0xff] %vm3857, %v3746
  %3876 = vst.msk [vmem:[%s3 + $0x90] sm:$0xff] %vm3857, %v3747
  %3877 = vst.msk [vmem:[%s3 + $0x98] sm:$0xff] %vm3857, %v3748
  %3878 = vst.msk [vmem:[%s3 + $0xa0] sm:$0xff] %vm3857, %v3749
  %3879 = vst.msk [vmem:[%s3 + $0xa8] sm:$0xff] %vm3857, %v3750
  %3880 = vst.msk [vmem:[%s3 + $0xb0] sm:$0xff] %vm3857, %v3751
  %3881 = vst.msk [vmem:[%s3 + $0xb8] sm:$0xff] %vm3857, %v3752
  %3882 = vst.msk [vmem:[%s3 + $0xc0] sm:$0xff] %vm3857, %v3753
  %3883 = vst.msk [vmem:[%s3 + $0xc8] sm:$0xff] %vm3857, %v3754
  %3884 = vst.msk [vmem:[%s3 + $0xd0] sm:$0xff] %vm3857, %v3755
  %3885 = vst.msk [vmem:[%s3 + $0xd8] sm:$0xff] %vm3857, %v3756
  %3886 = vst.msk [vmem:[%s3 + $0xe0] sm:$0xff] %vm3857, %v3757
  %3887 = vst.msk [vmem:[%s3 + $0xe8] sm:$0xff] %vm3857, %v3758
  %3888 = vst.msk [vmem:[%s3 + $0xf0] sm:$0xff] %vm3857, %v3759
  %3889 = vst.msk [vmem:[%s3 + $0xf8] sm:$0xff] %vm3857, %v3760
  %3890 = vst.msk [vmem:[%s3 + $0x100] sm:$0xff] %vm3857, %v3761
  %3891 = vst.msk [vmem:[%s3 + $0x108] sm:$0xff] %vm3857, %v3762
  %3892 = vst.msk [vmem:[%s3 + $0x110] sm:$0xff] %vm3857, %v3763
  %3893 = vst.msk [vmem:[%s3 + $0x118] sm:$0xff] %vm3857, %v3764
  %3894 = vst.msk [vmem:[%s3 + $0x120] sm:$0xff] %vm3857, %v3765
  %3895 = vst.msk [vmem:[%s3 + $0x128] sm:$0xff] %vm3857, %v3766
  %3896 = vst.msk [vmem:[%s3 + $0x130] sm:$0xff] %vm3857, %v3767
  %3897 = vst.msk [vmem:[%s3 + $0x138] sm:$0xff] %vm3857, %v3768
  %3898 = vst.msk [vmem:[%s3 + $0x140] sm:$0xff] %vm3857, %v3769
  %3899 = vst.msk [vmem:[%s3 + $0x148] sm:$0xff] %vm3857, %v3770
  %3900 = vst.msk [vmem:[%s3 + $0x150] sm:$0xff] %vm3857, %v3771
  %3901 = vst.msk [vmem:[%s3 + $0x158] sm:$0xff] %vm3857, %v3772
  %3902 = vst.msk [vmem:[%s3 + $0x160] sm:$0xff] %vm3857, %v3773
  %3903 = vst.msk [vmem:[%s3 + $0x168] sm:$0xff] %vm3857, %v3774
  %3904 = vst.msk [vmem:[%s3 + $0x170] sm:$0xff] %vm3857, %v3775
  %3905 = vst.msk [vmem:[%s3 + $0x178] sm:$0xff] %vm3857, %v3776
  %3906 = vst.msk [vmem:[%s3 + $0x180] sm:$0xff] %vm3857, %v3777
  %3907 = vst.msk [vmem:[%s3 + $0x188] sm:$0xff] %vm3857, %v3778
  %3908 = vst.msk [vmem:[%s3 + $0x190] sm:$0xff] %vm3857, %v3779
  %3909 = vst.msk [vmem:[%s3 + $0x198] sm:$0xff] %vm3857, %v3780
  %3910 = vst.msk [vmem:[%s3 + $0x1a0] sm:$0xff] %vm3857, %v3781
  %3911 = vst.msk [vmem:[%s3 + $0x1a8] sm:$0xff] %vm3857, %v3782
  %3912 = vst.msk [vmem:[%s3 + $0x1b0] sm:$0xff] %vm3857, %v3783
  %3913 = vst.msk [vmem:[%s3 + $0x1b8] sm:$0xff] %vm3857, %v3784
  %3914 = vst.msk [vmem:[%s3 + $0x1c0] sm:$0xff] %vm3857, %v3785
  %3915 = vst.msk [vmem:[%s3 + $0x1c8] sm:$0xff] %vm3857, %v3786
  %3916 = vst.msk [vmem:[%s3 + $0x1d0] sm:$0xff] %vm3857, %v3787
  %3917 = vst.msk [vmem:[%s3 + $0x1d8] sm:$0xff] %vm3857, %v3788
  %3918 = vst.msk [vmem:[%s3 + $0x1e0] sm:$0xff] %vm3857, %v3789
  %3919 = vst.msk [vmem:[%s3 + $0x1e8] sm:$0xff] %vm3857, %v3790
  %3920 = vst.msk [vmem:[%s3 + $0x1f0] sm:$0xff] %vm3857, %v3791
  %3921 = vst.msk [vmem:[%s3 + $0x1f8] sm:$0xff] %vm3857, %v3792
  %3922 = vst.msk [vmem:[%s3 + $0x200] sm:$0xff] %vm3857, %v3793
  %3923 = vst.msk [vmem:[%s3 + $0x208] sm:$0xff] %vm3857, %v3794
  %3924 = vst.msk [vmem:[%s3 + $0x210] sm:$0xff] %vm3857, %v3795
  %3925 = vst.msk [vmem:[%s3 + $0x218] sm:$0xff] %vm3857, %v3796
  %3926 = vst.msk [vmem:[%s3 + $0x220] sm:$0xff] %vm3857, %v3797
  %3927 = vst.msk [vmem:[%s3 + $0x228] sm:$0xff] %vm3857, %v3798
  %3928 = vst.msk [vmem:[%s3 + $0x230] sm:$0xff] %vm3857, %v3799
  %3929 = vst.msk [vmem:[%s3 + $0x238] sm:$0xff] %vm3857, %v3800
  %3930 = vst.msk [vmem:[%s3 + $0x240] sm:$0xff] %vm3857, %v3801
  %3931 = vst.msk [vmem:[%s3 + $0x248] sm:$0xff] %vm3857, %v3802
  %3932 = vst.msk [vmem:[%s3 + $0x250] sm:$0xff] %vm3857, %v3803
  %3933 = vst.msk [vmem:[%s3 + $0x258] sm:$0xff] %vm3857, %v3804
  %3934 = vst.msk [vmem:[%s3 + $0x260] sm:$0xff] %vm3857, %v3805
  %3935 = vst.msk [vmem:[%s3 + $0x268] sm:$0xff] %vm3857, %v3806
  %3936 = vst.msk [vmem:[%s3 + $0x270] sm:$0xff] %vm3857, %v3807
  %3937 = vst.msk [vmem:[%s3 + $0x278] sm:$0xff] %vm3857, %v3808
  %3938 = vst.msk [vmem:[%s3 + $0x280] sm:$0xff] %vm3857, %v3809
  %3939 = vst.msk [vmem:[%s3 + $0x288] sm:$0xff] %vm3857, %v3810
  %3940 = vst.msk [vmem:[%s3 + $0x290] sm:$0xff] %vm3857, %v3811
  %3941 = vst.msk [vmem:[%s3 + $0x298] sm:$0xff] %vm3857, %v3812
  %3942 = vst.msk [vmem:[%s3 + $0x2a0] sm:$0xff] %vm3857, %v3813
  %3943 = vst.msk [vmem:[%s3 + $0x2a8] sm:$0xff] %vm3857, %v3814
  %3944 = vst.msk [vmem:[%s3 + $0x2b0] sm:$0xff] %vm3857, %v3815
  %3945 = vst.msk [vmem:[%s3 + $0x2b8] sm:$0xff] %vm3857, %v3816
  %3946 = vst.msk [vmem:[%s3 + $0x2c0] sm:$0xff] %vm3857, %v3817
  %3947 = vst.msk [vmem:[%s3 + $0x2c8] sm:$0xff] %vm3857, %v3818
  %3948 = vst.msk [vmem:[%s3 + $0x2d0] sm:$0xff] %vm3857, %v3819
  %3949 = vst.msk [vmem:[%s3 + $0x2d8] sm:$0xff] %vm3857, %v3820
  %3950 = vst.msk [vmem:[%s3 + $0x2e0] sm:$0xff] %vm3857, %v3821
  %3951 = vst.msk [vmem:[%s3 + $0x2e8] sm:$0xff] %vm3857, %v3822
  %3952 = vst.msk [vmem:[%s3 + $0x2f0] sm:$0xff] %vm3857, %v3823
  %3953 = vst.msk [vmem:[%s3 + $0x2f8] sm:$0xff] %vm3857, %v3824
  %3954 = vst.msk [vmem:[%s3 + $0x300] sm:$0xff] %vm3857, %v3825
  %3955 = vst.msk [vmem:[%s3 + $0x308] sm:$0xff] %vm3857, %v3826
  %3956 = vst.msk [vmem:[%s3 + $0x310] sm:$0xff] %vm3857, %v3827
  %3957 = vst.msk [vmem:[%s3 + $0x318] sm:$0xff] %vm3857, %v3828
  %3958 = vst.msk [vmem:[%s3 + $0x320] sm:$0xff] %vm3857, %v3829
  %3959 = vst.msk [vmem:[%s3 + $0x328] sm:$0xff] %vm3857, %v3830
  %3960 = vst.msk [vmem:[%s3 + $0x330] sm:$0xff] %vm3857, %v3831
  %3961 = vst.msk [vmem:[%s3 + $0x338] sm:$0xff] %vm3857, %v3832
  %3962 = vst.msk [vmem:[%s3 + $0x340] sm:$0xff] %vm3857, %v3833
  %3963 = vst.msk [vmem:[%s3 + $0x348] sm:$0xff] %vm3857, %v3834
  %3964 = vst.msk [vmem:[%s3 + $0x350] sm:$0xff] %vm3857, %v3835
  %3965 = vst.msk [vmem:[%s3 + $0x358] sm:$0xff] %vm3857, %v3836
  %3966 = vst.msk [vmem:[%s3 + $0x360] sm:$0xff] %vm3857, %v3837
  %3967 = vst.msk [vmem:[%s3 + $0x368] sm:$0xff] %vm3857, %v3838
  %3968 = vst.msk [vmem:[%s3 + $0x370] sm:$0xff] %vm3857, %v3839
  %3969 = vst.msk [vmem:[%s3 + $0x378] sm:$0xff] %vm3857, %v3840
  %3970 = vst.msk [vmem:[%s3 + $0x380] sm:$0xff] %vm3857, %v3841
  %3971 = vst.msk [vmem:[%s3 + $0x388] sm:$0xff] %vm3857, %v3842
  %3972 = vst.msk [vmem:[%s3 + $0x390] sm:$0xff] %vm3857, %v3843
  %3973 = vst.msk [vmem:[%s3 + $0x398] sm:$0xff] %vm3857, %v3844
  %3974 = vst.msk [vmem:[%s3 + $0x3a0] sm:$0xff] %vm3857, %v3845
  %3975 = vst.msk [vmem:[%s3 + $0x3a8] sm:$0xff] %vm3857, %v3846
  %3976 = vst.msk [vmem:[%s3 + $0x3b0] sm:$0xff] %vm3857, %v3847
  %3977 = vst.msk [vmem:[%s3 + $0x3b8] sm:$0xff] %vm3857, %v3848
  %3978 = vst.msk [vmem:[%s3 + $0x3c0] sm:$0xff] %vm3857, %v3849
  %3979 = vst.msk [vmem:[%s3 + $0x3c8] sm:$0xff] %vm3857, %v3850
  %3980 = vst.msk [vmem:[%s3 + $0x3d0] sm:$0xff] %vm3857, %v3851
  %3981 = vst.msk [vmem:[%s3 + $0x3d8] sm:$0xff] %vm3857, %v3852
  %3982 = vst.msk [vmem:[%s3 + $0x3e0] sm:$0xff] %vm3857, %v3853
  %3983 = vst.msk [vmem:[%s3 + $0x3e8] sm:$0xff] %vm3857, %v3854
  %3984 = vst.msk [vmem:[%s3 + $0x3f0] sm:$0xff] %vm3857, %v3855
  %3985 = vst.msk [vmem:[%s3 + $0x3f8] sm:$0xff] %vm3857, %v3856
  // Predicated region
  $region14: #{tpu_custom_call.1} parent=0 // pred_check
    _
  $region15: #{tpu_custom_call.1} parent=0 // pred_check_branch
    %3987 = sbr.rel (0) target = $region17
  $region16: #{tpu_custom_call.1} parent=0 // pred_region
    _
  $region17: #{tpu_custom_call.1} parent=0 // pred_fallthru
    _
  // Predicated region
  $region18: #{tpu_custom_call.1} parent=0 // pred_check
    _
  $region19: #{tpu_custom_call.1} parent=0 // pred_check_branch
    %3989 = sbr.rel (0) target = $region21
  $region20: #{tpu_custom_call.1} parent=0 // pred_region
    _
  $region21: #{tpu_custom_call.1} parent=0 // pred_fallthru
    _

</llo_original>
